<compile_context>
chip_gen: v7x
topology: tpu7x:2x2x1
jax: 0.10.0
libtpu: 0.0.40
codegen_flags: <defaults>
</compile_context>

<pallas_src>
import functools

import numpy as np
import jax
import jax.numpy as jnp
from jax import lax
from jax.experimental import pallas as pl
from jax.experimental.pallas import tpu as pltpu

EPS = 1e-5


def _round_up(v, m):
    return (v + m - 1) // m * m


def _recurrent_cbr_kernel(x_ref, wm_ref, par_ref, mask_ref, out_ref,
                          s_ref, col_ref, *,
                          taps, w0, q, cp, inv_count):
    """One conv3x3x3 + BatchNorm3d(batch stats) + ReLU pass per grid step.

    x_ref    : (CP, L)   f32  flattened zero-padded input (same block every step)
    wm_ref   : (CP, KPP) f32  weights: wm[co, tap*CP + ci] = w[co, ci, kd, kh, kw]
    par_ref  : (CP, 3)   f32  columns = [conv bias | bn gamma | bn beta]
    mask_ref : (1, Q)    f32  1.0 at interior voxels of the compute window, else 0.0
    out_ref  : (CP, Q)   f32  conv+BN+ReLU of the current pass (resident across steps)
    s_ref    : (CP, L)   f32  scratch: recurrent padded state (x, then pad(x + x1))
    col_ref  : (KPP, Q)  f32  scratch: im2col matrix
    """
    k = pl.program_id(0)
    last = pl.num_programs(0) - 1

    @pl.when(k == 0)
    def _init():
        s_ref[...] = x_ref[...]                  # pass 0 consumes pad(x); no add
        col_ref[...] = jnp.zeros_like(col_ref)   # zero the K-padding rows once

    # im2col: 27 lane-shifted contiguous slices of the flattened padded state.
    for tap, delta in enumerate(taps):
        start = w0 + delta                       # static python int
        col_ref[tap * cp:(tap + 1) * cp, :] = s_ref[:, start:start + q]

    # 3x3x3 conv as a single MXU matmul, f32 accumulation.
    y = jnp.dot(wm_ref[...], col_ref[...], preferred_element_type=jnp.float32)

    # conv bias + BatchNorm3d (training-mode batch stats, biased variance) + ReLU,
    # all channels at once; non-interior lanes are masked out of the statistics.
    bias = par_ref[:, 0:1]
    gamma = par_ref[:, 1:2]
    beta = par_ref[:, 2:3]
    m = mask_ref[...]                            # (1, Q)
    y = y + bias
    s1 = jnp.sum(y * m, axis=1, keepdims=True)          # (CP, 1)
    s2 = jnp.sum(y * y * m, axis=1, keepdims=True)      # (CP, 1)
    mean = s1 * inv_count
    var = s2 * inv_count - mean * mean                   # one-pass variance
    y = (y - mean) * lax.rsqrt(var + EPS) * gamma + beta
    y = jnp.maximum(y, 0.0)                               # ReLU

    out_ref[...] = y        # resident output; HBM writeback happens after last step

    # Carry for the next pass: s = pad(x + x1)  (mask re-zeroes halo / garbage lanes).
    @pl.when(k != last)
    def _carry():
        s_ref[:, w0:w0 + q] = m * (x_ref[:, w0:w0 + q] + y)


@functools.partial(jax.jit, static_argnames=("t",))
def recurrent_block_forward(x, w, b, gamma, beta, t=2):
    """x: (N, C, D, H, W) f32 NCDHW.  w: (C, C, 3, 3, 3).  Returns (N, C, D, H, W)."""
    N, C, D, H, W = x.shape
    Co = w.shape[0]
    assert Co == w.shape[1] == C, "recurrence requires in_channels == out_channels"
    assert t >= 1

    # Flattened-padded geometry (spatial flattened onto the lane axis).
    Sh = W + 2
    Sd = (H + 2) * Sh
    Sn = (D + 2) * Sd
    P = N * Sn                        # zero-padded volume, flattened length
    M0 = Sd + Sh + 1                  # flat offset of the first interior voxel
    CP = _round_up(C, 8)              # channel rows padded to a sublane tile
    KPP = _round_up(27 * CP, 128)     # im2col K padded to a lane tile
    m_l = (-M0) % 128                 # left margin so the compute window is 128-aligned
    Q = _round_up(P - 2 * M0, 128)    # compute window (covers every interior voxel)
    W0 = m_l + M0                     # window start in extended-flat coords (mult. of 128)
    L = _round_up(W0 + Q + M0, 128)   # extended-flat length (all tap slices in bounds)

    f32 = jnp.float32

    # ---- host-side glue: one-time relayout of inputs ----
    xp = jnp.pad(x.astype(f32), [(0, 0), (0, 0), (1, 1), (1, 1), (1, 1)])
    xf = jnp.transpose(xp, (1, 0, 2, 3, 4)).reshape(C, P)          # (C, P) lane-dense
    x_ext = jnp.pad(xf, ((0, CP - C), (m_l, L - m_l - P)))         # (CP, L)

    w_r = jnp.transpose(w.astype(f32), (2, 3, 4, 1, 0)).reshape(27, C, Co)
    w_full = jnp.zeros((27, CP, CP), f32).at[:, :C, :Co].set(w_r)  # [tap, ci, co]
    wm = w_full.reshape(27 * CP, CP).T                             # (CP, 27*CP)
    wm = jnp.pad(wm, ((0, 0), (0, KPP - 27 * CP)))                 # (CP, KPP)

    par = jnp.zeros((CP, 3), f32)
    par = par.at[:Co, 0].set(b.astype(f32))
    par = par.at[:Co, 1].set(gamma.astype(f32))
    par = par.at[:Co, 2].set(beta.astype(f32))

    # Interior mask over the compute window (static; built with numpy).
    qs = np.arange(Q, dtype=np.int64) + M0
    nn_ = qs // Sn
    dd_ = (qs % Sn) // Sd
    hh_ = (qs % Sd) // Sh
    ww_ = qs % Sh
    interior = ((nn_ < N) & (dd_ >= 1) & (dd_ <= D) & (hh_ >= 1) & (hh_ <= H)
                & (ww_ >= 1) & (ww_ <= W))
    mask = jnp.asarray(interior.astype(np.float32)).reshape(1, Q)

    taps = tuple((kd - 1) * Sd + (kh - 1) * Sh + (kw - 1)
                 for kd in range(3) for kh in range(3) for kw in range(3))

    kernel = functools.partial(
        _recurrent_cbr_kernel,
        taps=taps, w0=W0, q=Q, cp=CP, inv_count=1.0 / float(N * D * H * W))

    nsteps = t + 1                    # conv(x) once, then conv(x + x1) t times
    y = pl.pallas_call(
        kernel,
        out_shape=jax.ShapeDtypeStruct((CP, Q), f32),
        grid=(nsteps,),
        in_specs=[
            pl.BlockSpec((CP, L), lambda k: (0, 0)),     # pad(x): DMA'd once, reused
            pl.BlockSpec((CP, KPP), lambda k: (0, 0)),   # conv weights (matmul form)
            pl.BlockSpec((CP, 3), lambda k: (0, 0)),     # bias / gamma / beta
            pl.BlockSpec((1, Q), lambda k: (0, 0)),      # interior mask
        ],
        out_specs=pl.BlockSpec((CP, Q), lambda k: (0, 0)),
        scratch_shapes=[
            pltpu.VMEM((CP, L), f32),     # recurrent padded state (carried over steps)
            pltpu.VMEM((KPP, Q), f32),    # im2col matrix
        ],
        compiler_params=pltpu.CompilerParams(
            dimension_semantics=("arbitrary",)),
    )(x_ext, wm, par, mask)

    # ---- host-side glue: un-flatten the final x1 and strip padding ----
    y = jnp.pad(y[:Co, :P - 2 * M0], ((0, 0), (M0, M0)))           # (Co, P)
    y = y.reshape(Co, N, D + 2, H + 2, W + 2)[:, :, 1:-1, 1:-1, 1:-1]
    return jnp.transpose(y, (1, 0, 2, 3, 4))                       # (N, C, D, H, W)


# ---------------- pure-JAX reference (for correctness check) ----------------
def _conv_bn_relu_ref(x, w, b, gamma, beta):
    y = lax.conv_general_dilated(
        x, w, (1, 1, 1), [(1, 1)] * 3,
        dimension_numbers=("NCDHW", "OIDHW", "NCDHW"),
        precision=lax.Precision.HIGHEST)
    y = y + b.reshape(1, -1, 1, 1, 1)
    mean = jnp.mean(y, axis=(0, 2, 3, 4), keepdims=True)
    var = jnp.mean((y - mean) ** 2, axis=(0, 2, 3, 4), keepdims=True)
    y = (y - mean) * lax.rsqrt(var + EPS)
    y = y * gamma.reshape(1, -1, 1, 1, 1) + beta.reshape(1, -1, 1, 1, 1)
    return jnp.maximum(y, 0.0)


def recurrent_block_ref(x, w, b, gamma, beta, t=2):
    x1 = None
    for i in range(t):
        if i == 0:
            x1 = _conv_bn_relu_ref(x, w, b, gamma, beta)
        x1 = _conv_bn_relu_ref(x + x1, w, b, gamma, beta)
    return x1


if __name__ == "__main__":
    N, C, D, H, W = 2, 4, 8, 8, 8     # out_channel = 4
    t = 2

    key = jax.random.PRNGKey(0)
    kx, kwt, kb = jax.random.split(key, 3)

    x = jax.random.normal(kx, (N, C, D, H, W), jnp.float32)

    # Deterministic parameter init mirroring PyTorch defaults:
    # Conv3d: uniform(-1/sqrt(fan_in), 1/sqrt(fan_in)); BN: weight=1, bias=0.
    fan_in = C * 3 * 3 * 3
    bound = 1.0 / float(np.sqrt(fan_in))
    w = jax.random.uniform(kwt, (C, C, 3, 3, 3), jnp.float32, -bound, bound)
    b = jax.random.uniform(kb, (C,), jnp.float32, -bound, bound)
    gamma = jnp.ones((C,), jnp.float32)
    beta = jnp.zeros((C,), jnp.float32)

    out = recurrent_block_forward(x, w, b, gamma, beta, t=t)
    out = jax.block_until_ready(out)

    ref = recurrent_block_ref(x, w, b, gamma, beta, t=t)
    assert out.shape == (N, C, D, H, W)
    err = float(np.max(np.abs(np.asarray(out) - np.asarray(ref))))
    assert err < 1e-2, f"max abs err {err}"
    print("KERNEL_OK")
</pallas_src>

<mosaic_0001>
module attributes {stable_mosaic.version = 11 : i64} {
  func.func @_recurrent_cbr_kernel(%arg0: i32, %arg1: memref<8x2048xf32, #tpu.memory_space<vmem>>, %arg2: memref<8x256xf32, #tpu.memory_space<vmem>>, %arg3: memref<8x3xf32, #tpu.memory_space<vmem>>, %arg4: memref<1x1792xf32, #tpu.memory_space<vmem>>, %arg5: memref<8x1792xf32, #tpu.memory_space<vmem>>, %arg6: memref<8x2048xf32, #tpu.memory_space<vmem>>, %arg7: memref<256x1792xf32, #tpu.memory_space<vmem>>) attributes {dimension_semantics = [#tpu.dimension_semantics<arbitrary>], iteration_bounds = array<i64: 3>, scalar_prefetch = 0 : i64, scratch_operands = 2 : i64, tpu.core_type = #tpu.core_type<tc>, window_params = [{pipeline_mode = #tpu.pipeline_mode<synchronous>, transform_indices = @transform_0, window_bounds = array<i64: 8, 2048>}, {pipeline_mode = #tpu.pipeline_mode<synchronous>, transform_indices = @transform_1, window_bounds = array<i64: 8, 256>}, {pipeline_mode = #tpu.pipeline_mode<synchronous>, transform_indices = @transform_2, window_bounds = array<i64: 8, 3>}, {pipeline_mode = #tpu.pipeline_mode<synchronous>, transform_indices = @transform_3, window_bounds = array<i64: 1, 1792>}, {pipeline_mode = #tpu.pipeline_mode<synchronous>, transform_indices = @transform_4, window_bounds = array<i64: 8, 1792>}]} {
    %c0_i32 = arith.constant 0 : i32
    %0 = arith.cmpi eq, %arg0, %c0_i32 : i32
    %1 = arith.extui %0 : i1 to i32
    %c0_i32_0 = arith.constant 0 : i32
    %2 = arith.cmpi ne, %1, %c0_i32_0 : i32
    scf.if %2 {
      %c0_75 = arith.constant 0 : index
      %c0_76 = arith.constant 0 : index
      %98 = vector.load %arg1[%c0_75, %c0_76] : memref<8x2048xf32, #tpu.memory_space<vmem>>, vector<8x2048xf32>
      %c0_77 = arith.constant 0 : index
      %c0_78 = arith.constant 0 : index
      %99 = vector.load %arg6[%c0_77, %c0_78] : memref<8x2048xf32, #tpu.memory_space<vmem>>, vector<8x2048xf32>
      tpu.vector_store %arg6[%c0_77, %c0_78], %98 {strides = array<i32>} : memref<8x2048xf32, #tpu.memory_space<vmem>>, vector<8x2048xf32>,
      %cst_79 = arith.constant 0.000000e+00 : f32
      %100 = vector.broadcast %cst_79 : f32 to vector<256x1792xf32>
      %c0_80 = arith.constant 0 : index
      %c0_81 = arith.constant 0 : index
      %101 = vector.load %arg7[%c0_80, %c0_81] : memref<256x1792xf32, #tpu.memory_space<vmem>>, vector<256x1792xf32>
      tpu.vector_store %arg7[%c0_80, %c0_81], %100 {strides = array<i32>} : memref<256x1792xf32, #tpu.memory_space<vmem>>, vector<256x1792xf32>,
    } else {
    }
    %c0 = arith.constant 0 : index
    %c17 = arith.constant 17 : index
    %3 = vector.load %arg6[%c0, %c17] : memref<8x2048xf32, #tpu.memory_space<vmem>>, vector<8x1792xf32>
    %c0_1 = arith.constant 0 : index
    %c0_2 = arith.constant 0 : index
    %4 = vector.load %arg7[%c0_1, %c0_2] : memref<256x1792xf32, #tpu.memory_space<vmem>>, vector<8x1792xf32>
    tpu.vector_store %arg7[%c0_1, %c0_2], %3 {strides = array<i32>} : memref<256x1792xf32, #tpu.memory_space<vmem>>, vector<8x1792xf32>,
    %c0_3 = arith.constant 0 : index
    %c18 = arith.constant 18 : index
    %5 = vector.load %arg6[%c0_3, %c18] : memref<8x2048xf32, #tpu.memory_space<vmem>>, vector<8x1792xf32>
    %c8 = arith.constant 8 : index
    %c0_4 = arith.constant 0 : index
    %6 = vector.load %arg7[%c8, %c0_4] : memref<256x1792xf32, #tpu.memory_space<vmem>>, vector<8x1792xf32>
    tpu.vector_store %arg7[%c8, %c0_4], %5 {strides = array<i32>} : memref<256x1792xf32, #tpu.memory_space<vmem>>, vector<8x1792xf32>,
    %c0_5 = arith.constant 0 : index
    %c19 = arith.constant 19 : index
    %7 = vector.load %arg6[%c0_5, %c19] : memref<8x2048xf32, #tpu.memory_space<vmem>>, vector<8x1792xf32>
    %c16 = arith.constant 16 : index
    %c0_6 = arith.constant 0 : index
    %8 = vector.load %arg7[%c16, %c0_6] : memref<256x1792xf32, #tpu.memory_space<vmem>>, vector<8x1792xf32>
    tpu.vector_store %arg7[%c16, %c0_6], %7 {strides = array<i32>} : memref<256x1792xf32, #tpu.memory_space<vmem>>, vector<8x1792xf32>,
    %c0_7 = arith.constant 0 : index
    %c27 = arith.constant 27 : index
    %9 = vector.load %arg6[%c0_7, %c27] : memref<8x2048xf32, #tpu.memory_space<vmem>>, vector<8x1792xf32>
    %c24 = arith.constant 24 : index
    %c0_8 = arith.constant 0 : index
    %10 = vector.load %arg7[%c24, %c0_8] : memref<256x1792xf32, #tpu.memory_space<vmem>>, vector<8x1792xf32>
    tpu.vector_store %arg7[%c24, %c0_8], %9 {strides = array<i32>} : memref<256x1792xf32, #tpu.memory_space<vmem>>, vector<8x1792xf32>,
    %c0_9 = arith.constant 0 : index
    %c28 = arith.constant 28 : index
    %11 = vector.load %arg6[%c0_9, %c28] : memref<8x2048xf32, #tpu.memory_space<vmem>>, vector<8x1792xf32>
    %c32 = arith.constant 32 : index
    %c0_10 = arith.constant 0 : index
    %12 = vector.load %arg7[%c32, %c0_10] : memref<256x1792xf32, #tpu.memory_space<vmem>>, vector<8x1792xf32>
    tpu.vector_store %arg7[%c32, %c0_10], %11 {strides = array<i32>} : memref<256x1792xf32, #tpu.memory_space<vmem>>, vector<8x1792xf32>,
    %c0_11 = arith.constant 0 : index
    %c29 = arith.constant 29 : index
    %13 = vector.load %arg6[%c0_11, %c29] : memref<8x2048xf32, #tpu.memory_space<vmem>>, vector<8x1792xf32>
    %c40 = arith.constant 40 : index
    %c0_12 = arith.constant 0 : index
    %14 = vector.load %arg7[%c40, %c0_12] : memref<256x1792xf32, #tpu.memory_space<vmem>>, vector<8x1792xf32>
    tpu.vector_store %arg7[%c40, %c0_12], %13 {strides = array<i32>} : memref<256x1792xf32, #tpu.memory_space<vmem>>, vector<8x1792xf32>,
    %c0_13 = arith.constant 0 : index
    %c37 = arith.constant 37 : index
    %15 = vector.load %arg6[%c0_13, %c37] : memref<8x2048xf32, #tpu.memory_space<vmem>>, vector<8x1792xf32>
    %c48 = arith.constant 48 : index
    %c0_14 = arith.constant 0 : index
    %16 = vector.load %arg7[%c48, %c0_14] : memref<256x1792xf32, #tpu.memory_space<vmem>>, vector<8x1792xf32>
    tpu.vector_store %arg7[%c48, %c0_14], %15 {strides = array<i32>} : memref<256x1792xf32, #tpu.memory_space<vmem>>, vector<8x1792xf32>,
    %c0_15 = arith.constant 0 : index
    %c38 = arith.constant 38 : index
    %17 = vector.load %arg6[%c0_15, %c38] : memref<8x2048xf32, #tpu.memory_space<vmem>>, vector<8x1792xf32>
    %c56 = arith.constant 56 : index
    %c0_16 = arith.constant 0 : index
    %18 = vector.load %arg7[%c56, %c0_16] : memref<256x1792xf32, #tpu.memory_space<vmem>>, vector<8x1792xf32>
    tpu.vector_store %arg7[%c56, %c0_16], %17 {strides = array<i32>} : memref<256x1792xf32, #tpu.memory_space<vmem>>, vector<8x1792xf32>,
    %c0_17 = arith.constant 0 : index
    %c39 = arith.constant 39 : index
    %19 = vector.load %arg6[%c0_17, %c39] : memref<8x2048xf32, #tpu.memory_space<vmem>>, vector<8x1792xf32>
    %c64 = arith.constant 64 : index
    %c0_18 = arith.constant 0 : index
    %20 = vector.load %arg7[%c64, %c0_18] : memref<256x1792xf32, #tpu.memory_space<vmem>>, vector<8x1792xf32>
    tpu.vector_store %arg7[%c64, %c0_18], %19 {strides = array<i32>} : memref<256x1792xf32, #tpu.memory_space<vmem>>, vector<8x1792xf32>,
    %c0_19 = arith.constant 0 : index
    %c117 = arith.constant 117 : index
    %21 = vector.load %arg6[%c0_19, %c117] : memref<8x2048xf32, #tpu.memory_space<vmem>>, vector<8x1792xf32>
    %c72 = arith.constant 72 : index
    %c0_20 = arith.constant 0 : index
    %22 = vector.load %arg7[%c72, %c0_20] : memref<256x1792xf32, #tpu.memory_space<vmem>>, vector<8x1792xf32>
    tpu.vector_store %arg7[%c72, %c0_20], %21 {strides = array<i32>} : memref<256x1792xf32, #tpu.memory_space<vmem>>, vector<8x1792xf32>,
    %c0_21 = arith.constant 0 : index
    %c118 = arith.constant 118 : index
    %23 = vector.load %arg6[%c0_21, %c118] : memref<8x2048xf32, #tpu.memory_space<vmem>>, vector<8x1792xf32>
    %c80 = arith.constant 80 : index
    %c0_22 = arith.constant 0 : index
    %24 = vector.load %arg7[%c80, %c0_22] : memref<256x1792xf32, #tpu.memory_space<vmem>>, vector<8x1792xf32>
    tpu.vector_store %arg7[%c80, %c0_22], %23 {strides = array<i32>} : memref<256x1792xf32, #tpu.memory_space<vmem>>, vector<8x1792xf32>,
    %c0_23 = arith.constant 0 : index
    %c119 = arith.constant 119 : index
    %25 = vector.load %arg6[%c0_23, %c119] : memref<8x2048xf32, #tpu.memory_space<vmem>>, vector<8x1792xf32>
    %c88 = arith.constant 88 : index
    %c0_24 = arith.constant 0 : index
    %26 = vector.load %arg7[%c88, %c0_24] : memref<256x1792xf32, #tpu.memory_space<vmem>>, vector<8x1792xf32>
    tpu.vector_store %arg7[%c88, %c0_24], %25 {strides = array<i32>} : memref<256x1792xf32, #tpu.memory_space<vmem>>, vector<8x1792xf32>,
    %c0_25 = arith.constant 0 : index
    %c127 = arith.constant 127 : index
    %27 = vector.load %arg6[%c0_25, %c127] : memref<8x2048xf32, #tpu.memory_space<vmem>>, vector<8x1792xf32>
    %c96 = arith.constant 96 : index
    %c0_26 = arith.constant 0 : index
    %28 = vector.load %arg7[%c96, %c0_26] : memref<256x1792xf32, #tpu.memory_space<vmem>>, vector<8x1792xf32>
    tpu.vector_store %arg7[%c96, %c0_26], %27 {strides = array<i32>} : memref<256x1792xf32, #tpu.memory_space<vmem>>, vector<8x1792xf32>,
    %c0_27 = arith.constant 0 : index
    %c128 = arith.constant 128 : index
    %29 = vector.load %arg6[%c0_27, %c128] : memref<8x2048xf32, #tpu.memory_space<vmem>>, vector<8x1792xf32>
    %c104 = arith.constant 104 : index
    %c0_28 = arith.constant 0 : index
    %30 = vector.load %arg7[%c104, %c0_28] : memref<256x1792xf32, #tpu.memory_space<vmem>>, vector<8x1792xf32>
    tpu.vector_store %arg7[%c104, %c0_28], %29 {strides = array<i32>} : memref<256x1792xf32, #tpu.memory_space<vmem>>, vector<8x1792xf32>,
    %c0_29 = arith.constant 0 : index
    %c129 = arith.constant 129 : index
    %31 = vector.load %arg6[%c0_29, %c129] : memref<8x2048xf32, #tpu.memory_space<vmem>>, vector<8x1792xf32>
    %c112 = arith.constant 112 : index
    %c0_30 = arith.constant 0 : index
    %32 = vector.load %arg7[%c112, %c0_30] : memref<256x1792xf32, #tpu.memory_space<vmem>>, vector<8x1792xf32>
    tpu.vector_store %arg7[%c112, %c0_30], %31 {strides = array<i32>} : memref<256x1792xf32, #tpu.memory_space<vmem>>, vector<8x1792xf32>,
    %c0_31 = arith.constant 0 : index
    %c137 = arith.constant 137 : index
    %33 = vector.load %arg6[%c0_31, %c137] : memref<8x2048xf32, #tpu.memory_space<vmem>>, vector<8x1792xf32>
    %c120 = arith.constant 120 : index
    %c0_32 = arith.constant 0 : index
    %34 = vector.load %arg7[%c120, %c0_32] : memref<256x1792xf32, #tpu.memory_space<vmem>>, vector<8x1792xf32>
    tpu.vector_store %arg7[%c120, %c0_32], %33 {strides = array<i32>} : memref<256x1792xf32, #tpu.memory_space<vmem>>, vector<8x1792xf32>,
    %c0_33 = arith.constant 0 : index
    %c138 = arith.constant 138 : index
    %35 = vector.load %arg6[%c0_33, %c138] : memref<8x2048xf32, #tpu.memory_space<vmem>>, vector<8x1792xf32>
    %c128_34 = arith.constant 128 : index
    %c0_35 = arith.constant 0 : index
    %36 = vector.load %arg7[%c128_34, %c0_35] : memref<256x1792xf32, #tpu.memory_space<vmem>>, vector<8x1792xf32>
    tpu.vector_store %arg7[%c128_34, %c0_35], %35 {strides = array<i32>} : memref<256x1792xf32, #tpu.memory_space<vmem>>, vector<8x1792xf32>,
    %c0_36 = arith.constant 0 : index
    %c139 = arith.constant 139 : index
    %37 = vector.load %arg6[%c0_36, %c139] : memref<8x2048xf32, #tpu.memory_space<vmem>>, vector<8x1792xf32>
    %c136 = arith.constant 136 : index
    %c0_37 = arith.constant 0 : index
    %38 = vector.load %arg7[%c136, %c0_37] : memref<256x1792xf32, #tpu.memory_space<vmem>>, vector<8x1792xf32>
    tpu.vector_store %arg7[%c136, %c0_37], %37 {strides = array<i32>} : memref<256x1792xf32, #tpu.memory_space<vmem>>, vector<8x1792xf32>,
    %c0_38 = arith.constant 0 : index
    %c217 = arith.constant 217 : index
    %39 = vector.load %arg6[%c0_38, %c217] : memref<8x2048xf32, #tpu.memory_space<vmem>>, vector<8x1792xf32>
    %c144 = arith.constant 144 : index
    %c0_39 = arith.constant 0 : index
    %40 = vector.load %arg7[%c144, %c0_39] : memref<256x1792xf32, #tpu.memory_space<vmem>>, vector<8x1792xf32>
    tpu.vector_store %arg7[%c144, %c0_39], %39 {strides = array<i32>} : memref<256x1792xf32, #tpu.memory_space<vmem>>, vector<8x1792xf32>,
    %c0_40 = arith.constant 0 : index
    %c218 = arith.constant 218 : index
    %41 = vector.load %arg6[%c0_40, %c218] : memref<8x2048xf32, #tpu.memory_space<vmem>>, vector<8x1792xf32>
    %c152 = arith.constant 152 : index
    %c0_41 = arith.constant 0 : index
    %42 = vector.load %arg7[%c152, %c0_41] : memref<256x1792xf32, #tpu.memory_space<vmem>>, vector<8x1792xf32>
    tpu.vector_store %arg7[%c152, %c0_41], %41 {strides = array<i32>} : memref<256x1792xf32, #tpu.memory_space<vmem>>, vector<8x1792xf32>,
    %c0_42 = arith.constant 0 : index
    %c219 = arith.constant 219 : index
    %43 = vector.load %arg6[%c0_42, %c219] : memref<8x2048xf32, #tpu.memory_space<vmem>>, vector<8x1792xf32>
    %c160 = arith.constant 160 : index
    %c0_43 = arith.constant 0 : index
    %44 = vector.load %arg7[%c160, %c0_43] : memref<256x1792xf32, #tpu.memory_space<vmem>>, vector<8x1792xf32>
    tpu.vector_store %arg7[%c160, %c0_43], %43 {strides = array<i32>} : memref<256x1792xf32, #tpu.memory_space<vmem>>, vector<8x1792xf32>,
    %c0_44 = arith.constant 0 : index
    %c227 = arith.constant 227 : index
    %45 = vector.load %arg6[%c0_44, %c227] : memref<8x2048xf32, #tpu.memory_space<vmem>>, vector<8x1792xf32>
    %c168 = arith.constant 168 : index
    %c0_45 = arith.constant 0 : index
    %46 = vector.load %arg7[%c168, %c0_45] : memref<256x1792xf32, #tpu.memory_space<vmem>>, vector<8x1792xf32>
    tpu.vector_store %arg7[%c168, %c0_45], %45 {strides = array<i32>} : memref<256x1792xf32, #tpu.memory_space<vmem>>, vector<8x1792xf32>,
    %c0_46 = arith.constant 0 : index
    %c228 = arith.constant 228 : index
    %47 = vector.load %arg6[%c0_46, %c228] : memref<8x2048xf32, #tpu.memory_space<vmem>>, vector<8x1792xf32>
    %c176 = arith.constant 176 : index
    %c0_47 = arith.constant 0 : index
    %48 = vector.load %arg7[%c176, %c0_47] : memref<256x1792xf32, #tpu.memory_space<vmem>>, vector<8x1792xf32>
    tpu.vector_store %arg7[%c176, %c0_47], %47 {strides = array<i32>} : memref<256x1792xf32, #tpu.memory_space<vmem>>, vector<8x1792xf32>,
    %c0_48 = arith.constant 0 : index
    %c229 = arith.constant 229 : index
    %49 = vector.load %arg6[%c0_48, %c229] : memref<8x2048xf32, #tpu.memory_space<vmem>>, vector<8x1792xf32>
    %c184 = arith.constant 184 : index
    %c0_49 = arith.constant 0 : index
    %50 = vector.load %arg7[%c184, %c0_49] : memref<256x1792xf32, #tpu.memory_space<vmem>>, vector<8x1792xf32>
    tpu.vector_store %arg7[%c184, %c0_49], %49 {strides = array<i32>} : memref<256x1792xf32, #tpu.memory_space<vmem>>, vector<8x1792xf32>,
    %c0_50 = arith.constant 0 : index
    %c237 = arith.constant 237 : index
    %51 = vector.load %arg6[%c0_50, %c237] : memref<8x2048xf32, #tpu.memory_space<vmem>>, vector<8x1792xf32>
    %c192 = arith.constant 192 : index
    %c0_51 = arith.constant 0 : index
    %52 = vector.load %arg7[%c192, %c0_51] : memref<256x1792xf32, #tpu.memory_space<vmem>>, vector<8x1792xf32>
    tpu.vector_store %arg7[%c192, %c0_51], %51 {strides = array<i32>} : memref<256x1792xf32, #tpu.memory_space<vmem>>, vector<8x1792xf32>,
    %c0_52 = arith.constant 0 : index
    %c238 = arith.constant 238 : index
    %53 = vector.load %arg6[%c0_52, %c238] : memref<8x2048xf32, #tpu.memory_space<vmem>>, vector<8x1792xf32>
    %c200 = arith.constant 200 : index
    %c0_53 = arith.constant 0 : index
    %54 = vector.load %arg7[%c200, %c0_53] : memref<256x1792xf32, #tpu.memory_space<vmem>>, vector<8x1792xf32>
    tpu.vector_store %arg7[%c200, %c0_53], %53 {strides = array<i32>} : memref<256x1792xf32, #tpu.memory_space<vmem>>, vector<8x1792xf32>,
    %c0_54 = arith.constant 0 : index
    %c239 = arith.constant 239 : index
    %55 = vector.load %arg6[%c0_54, %c239] : memref<8x2048xf32, #tpu.memory_space<vmem>>, vector<8x1792xf32>
    %c208 = arith.constant 208 : index
    %c0_55 = arith.constant 0 : index
    %56 = vector.load %arg7[%c208, %c0_55] : memref<256x1792xf32, #tpu.memory_space<vmem>>, vector<8x1792xf32>
    tpu.vector_store %arg7[%c208, %c0_55], %55 {strides = array<i32>} : memref<256x1792xf32, #tpu.memory_space<vmem>>, vector<8x1792xf32>,
    %c0_56 = arith.constant 0 : index
    %c0_57 = arith.constant 0 : index
    %57 = vector.load %arg2[%c0_56, %c0_57] : memref<8x256xf32, #tpu.memory_space<vmem>>, vector<8x256xf32>
    %c0_58 = arith.constant 0 : index
    %c0_59 = arith.constant 0 : index
    %58 = vector.load %arg7[%c0_58, %c0_59] : memref<256x1792xf32, #tpu.memory_space<vmem>>, vector<256x1792xf32>
    %cst = arith.constant dense<0.000000e+00> : vector<8x1792xf32>
    %59 = tpu.matmul %57, %58, %cst {dimension_numbers = #tpu.dot_dimension_numbers<[1], [0], [0], [1], [0, 0, 1, 1], [], []>} : vector<8x256xf32>, vector<256x1792xf32>, vector<8x1792xf32> -> vector<8x1792xf32>
    %c0_60 = arith.constant 0 : index
    %c0_61 = arith.constant 0 : index
    %60 = vector.load %arg3[%c0_60, %c0_61] : memref<8x3xf32, #tpu.memory_space<vmem>>, vector<8x1xf32>
    %c0_62 = arith.constant 0 : index
    %c1 = arith.constant 1 : index
    %61 = vector.load %arg3[%c0_62, %c1] : memref<8x3xf32, #tpu.memory_space<vmem>>, vector<8x1xf32>
    %c0_63 = arith.constant 0 : index
    %c2 = arith.constant 2 : index
    %62 = vector.load %arg3[%c0_63, %c2] : memref<8x3xf32, #tpu.memory_space<vmem>>, vector<8x1xf32>
    %c0_64 = arith.constant 0 : index
    %c0_65 = arith.constant 0 : index
    %63 = vector.load %arg4[%c0_64, %c0_65] : memref<1x1792xf32, #tpu.memory_space<vmem>>, vector<1x1792xf32>
    %64 = vector.broadcast %60 : vector<8x1xf32> to vector<8x1792xf32>
    %65 = arith.addf %59, %64 : vector<8x1792xf32>
    %66 = vector.broadcast %63 : vector<1x1792xf32> to vector<8x1792xf32>
    %67 = arith.mulf %65, %66 : vector<8x1792xf32>
    %cst_66 = arith.constant dense<0.000000e+00> : vector<8xf32>
    %68 = vector.multi_reduction <add>, %67, %cst_66 [1] : vector<8x1792xf32> to vector<8xf32>
    %69 = vector.shape_cast %68 : vector<8xf32> to vector<8x1xf32>
    %70 = arith.mulf %65, %65 : vector<8x1792xf32>
    %71 = vector.broadcast %63 : vector<1x1792xf32> to vector<8x1792xf32>
    %72 = arith.mulf %70, %71 : vector<8x1792xf32>
    %cst_67 = arith.constant dense<0.000000e+00> : vector<8xf32>
    %73 = vector.multi_reduction <add>, %72, %cst_67 [1] : vector<8x1792xf32> to vector<8xf32>
    %74 = vector.shape_cast %73 : vector<8xf32> to vector<8x1xf32>
    %cst_68 = arith.constant 9.765625E-4 : f32
    %75 = vector.broadcast %cst_68 : f32 to vector<8x1xf32>
    %76 = arith.mulf %69, %75 : vector<8x1xf32>
    %cst_69 = arith.constant 9.765625E-4 : f32
    %77 = vector.broadcast %cst_69 : f32 to vector<8x1xf32>
    %78 = arith.mulf %74, %77 : vector<8x1xf32>
    %79 = arith.mulf %76, %76 : vector<8x1xf32>
    %80 = arith.subf %78, %79 : vector<8x1xf32>
    %81 = vector.broadcast %76 : vector<8x1xf32> to vector<8x1792xf32>
    %82 = arith.subf %65, %81 : vector<8x1792xf32>
    %cst_70 = arith.constant 9.99999974E-6 : f32
    %83 = vector.broadcast %cst_70 : f32 to vector<8x1xf32>
    %84 = arith.addf %80, %83 : vector<8x1xf32>
    %85 = math.rsqrt %84 : vector<8x1xf32>
    %86 = vector.broadcast %85 : vector<8x1xf32> to vector<8x1792xf32>
    %87 = arith.mulf %82, %86 : vector<8x1792xf32>
    %88 = vector.broadcast %61 : vector<8x1xf32> to vector<8x1792xf32>
    %89 = arith.mulf %87, %88 : vector<8x1792xf32>
    %90 = vector.broadcast %62 : vector<8x1xf32> to vector<8x1792xf32>
    %91 = arith.addf %89, %90 : vector<8x1792xf32>
    %cst_71 = arith.constant 0.000000e+00 : f32
    %92 = vector.broadcast %cst_71 : f32 to vector<8x1792xf32>
    %93 = arith.maximumf %91, %92 : vector<8x1792xf32>
    %c0_72 = arith.constant 0 : index
    %c0_73 = arith.constant 0 : index
    %94 = vector.load %arg5[%c0_72, %c0_73] : memref<8x1792xf32, #tpu.memory_space<vmem>>, vector<8x1792xf32>
    tpu.vector_store %arg5[%c0_72, %c0_73], %93 {strides = array<i32>} : memref<8x1792xf32, #tpu.memory_space<vmem>>, vector<8x1792xf32>,
    %c2_i32 = arith.constant 2 : i32
    %95 = arith.cmpi ne, %arg0, %c2_i32 : i32
    %96 = arith.extui %95 : i1 to i32
    %c0_i32_74 = arith.constant 0 : i32
    %97 = arith.cmpi ne, %96, %c0_i32_74 : i32
    scf.if %97 {
      %c0_75 = arith.constant 0 : index
      %c128_76 = arith.constant 128 : index
      %98 = vector.load %arg1[%c0_75, %c128_76] : memref<8x2048xf32, #tpu.memory_space<vmem>>, vector<8x1792xf32>
      %99 = arith.addf %98, %93 : vector<8x1792xf32>
      %100 = vector.broadcast %63 : vector<1x1792xf32> to vector<8x1792xf32>
      %101 = arith.mulf %100, %99 : vector<8x1792xf32>
      %c0_77 = arith.constant 0 : index
      %c128_78 = arith.constant 128 : index
      %102 = vector.load %arg6[%c0_77, %c128_78] : memref<8x2048xf32, #tpu.memory_space<vmem>>, vector<8x1792xf32>
      tpu.vector_store %arg6[%c0_77, %c128_78], %101 {strides = array<i32>} : memref<8x2048xf32, #tpu.memory_space<vmem>>, vector<8x1792xf32>,
    } else {
    }
    return
  }
  func.func @transform_0(%arg0: i32) -> (i32, i32) {
    %c0_i32 = arith.constant 0 : i32
    %c0_i32_0 = arith.constant 0 : i32
    %c0_i32_1 = arith.constant 0 : i32
    return %c0_i32, %c0_i32_0 : i32, i32
  }
  func.func @transform_1(%arg0: i32) -> (i32, i32) {
    %c0_i32 = arith.constant 0 : i32
    %c0_i32_0 = arith.constant 0 : i32
    %c0_i32_1 = arith.constant 0 : i32
    return %c0_i32, %c0_i32_0 : i32, i32
  }
  func.func @transform_2(%arg0: i32) -> (i32, i32) {
    %c0_i32 = arith.constant 0 : i32
    %c0_i32_0 = arith.constant 0 : i32
    %c0_i32_1 = arith.constant 0 : i32
    return %c0_i32, %c0_i32_0 : i32, i32
  }
  func.func @transform_3(%arg0: i32) -> (i32, i32) {
    %c0_i32 = arith.constant 0 : i32
    %c0_i32_0 = arith.constant 0 : i32
    %c0_i32_1 = arith.constant 0 : i32
    return %c0_i32, %c0_i32_0 : i32, i32
  }
  func.func @transform_4(%arg0: i32) -> (i32, i32) {
    %c0_i32 = arith.constant 0 : i32
    %c0_i32_0 = arith.constant 0 : i32
    %c0_i32_1 = arith.constant 0 : i32
    return %c0_i32, %c0_i32_0 : i32, i32
  }
}

</mosaic_0001>

<llo_original>
// kernel: recurrent_block_forward.1
$region0: #{recurrent_block_forward.1}
  #allocation0 [shape = 'u32[]', space=smem, size = 0x4, offset = 0x4, fixed_abs, tag = 'smem constant byte address 0x4 - core index']
  #allocation1 [shape = 'u32[144,128]{1,0:T(1,128)}', space=vmem, size = 0x12000, scoped, tag = 'internal scratch']
  #allocation2 [shape = 'f32[8,2048]{1,0:T(8,128)}', space=vmem, size = 0x10000, scoped, tag = 'scratch operand']
  #allocation3 [shape = 'f32[256,1792]{1,0:T(8,128)}', space=vmem, size = 0x1c0000, scoped, tag = 'scratch operand']
  %s0 = inlined_call_operand.vmem [shape: f32[8,2048], index: 0, kind: input, shape index: {}]
  %s1 = inlined_call_operand.vmem [shape: f32[8,256], index: 1, kind: input, shape index: {}]
  %s2 = inlined_call_operand.vmem [shape: f32[8,3], index: 2, kind: input, shape index: {}]
  %s3 = inlined_call_operand.vmem [shape: f32[1,1792], index: 3, kind: input, shape index: {}]
  %s4 = inlined_call_operand.vmem [shape: f32[8,1792], index: 4, kind: output, shape index: {}]
  %s5 = sld [smem:[#allocation0]]
  $region57: #{recurrent_block_forward.1} parent=0
    _
  %s7 = ssub.s32 1, %s5
  %s8 = scalar_select 0, %s7, %s5
  loop: start=0, step=1, limit=5
  $region2: #{recurrent_block_forward.1} parent=0 // loop_pre_header
    _
  $region3: #{recurrent_block_forward.1} parent=0 // loop_header
    %s10 = sphi 0, %s14
    %p11 = scmp.ge.s32.totalorder %s10, 5
    %s18 = sphi 0, %s18
    %s20 = sphi 0, %s18
    %s21 = sphi 0, %s20
    %s35 = sphi 0, %s21
    %s39 = sphi 0, %s39
    %s41 = sphi 0, %s39
    %s42 = sphi 0, %s41
    %s56 = sphi 0, %s42
    %s60 = sphi 0, %s60
    %s62 = sphi 0, %s60
    %s63 = sphi 0, %s62
    %s77 = sphi 0, %s63
    %s81 = sphi 0, %s81
    %s83 = sphi 0, %s81
    %s84 = sphi 0, %s83
    %s98 = sphi 0, %s84
    %s102 = sphi 0, %s102
    %s104 = sphi 0, %s102
    %s105 = sphi 0, %s104
    %s119 = sphi 0, %s105
  $region4: #{recurrent_block_forward.1} parent=0 // loop_header_branch
    %13 = sbr.rel (%p11) target = $region8
  $region5: #{recurrent_block_forward.1} parent=0 // loop_body
    %s15 = ssub.s32 %s10, 1
    %s16 = ssub.s32 %s10, 2
    %s17 = sadd.s32 %s10, 1
    %s19 = sadd.s32 %s18, 1
    %p22 = scmp.eq.s32.totalorder %s10, 2
    %p23 = scmp.ne.s32.totalorder %s18, %s20
    %p24 = scmp.eq.s32.totalorder %s10, 0
    %p25 = por %p23, %p24
    %p26 = scmp.ne.s32.totalorder %s18, %s20
    %p27 = scmp.eq.s32.totalorder %s15, 2
    %p28 = por %p26, %p27
    %p29 = scmp.ne.s32.totalorder %s20, %s21
    %p30 = scmp.eq.s32.totalorder %s15, 0
    %p31 = por %p29, %p30
    %p32 = scmp.ne.s32.totalorder %s20, %s21
    %p33 = scmp.eq.s32.totalorder %s16, 2
    %p34 = por %p32, %p33
    %p36 = scmp.ne.s32.totalorder %s21, %s35
    %p37 = scmp.eq.s32.totalorder %s16, 0
    %p38 = por %p36, %p37
    %s40 = sadd.s32 %s39, 1
    %p43 = scmp.eq.s32.totalorder %s10, 2
    %p44 = scmp.ne.s32.totalorder %s39, %s41
    %p45 = scmp.eq.s32.totalorder %s10, 0
    %p46 = por %p44, %p45
    %p47 = scmp.ne.s32.totalorder %s39, %s41
    %p48 = scmp.eq.s32.totalorder %s15, 2
    %p49 = por %p47, %p48
    %p50 = scmp.ne.s32.totalorder %s41, %s42
    %p51 = scmp.eq.s32.totalorder %s15, 0
    %p52 = por %p50, %p51
    %p53 = scmp.ne.s32.totalorder %s41, %s42
    %p54 = scmp.eq.s32.totalorder %s16, 2
    %p55 = por %p53, %p54
    %p57 = scmp.ne.s32.totalorder %s42, %s56
    %p58 = scmp.eq.s32.totalorder %s16, 0
    %p59 = por %p57, %p58
    %s61 = sadd.s32 %s60, 1
    %p64 = scmp.eq.s32.totalorder %s10, 2
    %p65 = scmp.ne.s32.totalorder %s60, %s62
    %p66 = scmp.eq.s32.totalorder %s10, 0
    %p67 = por %p65, %p66
    %p68 = scmp.ne.s32.totalorder %s60, %s62
    %p69 = scmp.eq.s32.totalorder %s15, 2
    %p70 = por %p68, %p69
    %p71 = scmp.ne.s32.totalorder %s62, %s63
    %p72 = scmp.eq.s32.totalorder %s15, 0
    %p73 = por %p71, %p72
    %p74 = scmp.ne.s32.totalorder %s62, %s63
    %p75 = scmp.eq.s32.totalorder %s16, 2
    %p76 = por %p74, %p75
    %p78 = scmp.ne.s32.totalorder %s63, %s77
    %p79 = scmp.eq.s32.totalorder %s16, 0
    %p80 = por %p78, %p79
    %s82 = sadd.s32 %s81, 1
    %p85 = scmp.eq.s32.totalorder %s10, 2
    %p86 = scmp.ne.s32.totalorder %s81, %s83
    %p87 = scmp.eq.s32.totalorder %s10, 0
    %p88 = por %p86, %p87
    %p89 = scmp.ne.s32.totalorder %s81, %s83
    %p90 = scmp.eq.s32.totalorder %s15, 2
    %p91 = por %p89, %p90
    %p92 = scmp.ne.s32.totalorder %s83, %s84
    %p93 = scmp.eq.s32.totalorder %s15, 0
    %p94 = por %p92, %p93
    %p95 = scmp.ne.s32.totalorder %s83, %s84
    %p96 = scmp.eq.s32.totalorder %s16, 2
    %p97 = por %p95, %p96
    %p99 = scmp.ne.s32.totalorder %s84, %s98
    %p100 = scmp.eq.s32.totalorder %s16, 0
    %p101 = por %p99, %p100
    %s103 = sadd.s32 %s102, 1
    %p106 = scmp.eq.s32.totalorder %s10, 2
    %p107 = scmp.ne.s32.totalorder %s102, %s104
    %p108 = scmp.eq.s32.totalorder %s10, 0
    %p109 = por %p107, %p108
    %p110 = scmp.ne.s32.totalorder %s102, %s104
    %p111 = scmp.eq.s32.totalorder %s15, 2
    %p112 = por %p110, %p111
    %p113 = scmp.ne.s32.totalorder %s104, %s105
    %p114 = scmp.eq.s32.totalorder %s15, 0
    %p115 = por %p113, %p114
    %p116 = scmp.ne.s32.totalorder %s104, %s105
    %p117 = scmp.eq.s32.totalorder %s16, 2
    %p118 = por %p116, %p117
    %p120 = scmp.ne.s32.totalorder %s105, %s119
    %p121 = scmp.eq.s32.totalorder %s16, 0
    %p122 = por %p120, %p121
    %p123 = scmp.le.s32.totalorder 1, %s10
    %p124 = scmp.lt.s32.totalorder %s10, 4
    %p125 = pnand %p123, %p124
    %p126 = pneg %p125
    // Predicated region
    $region9: #{recurrent_block_forward.1} parent=5 // pred_check
      _
    $region10: #{recurrent_block_forward.1} parent=5 // pred_check_branch
      %128 = sbr.rel (%p125) target = $region12
    $region11: #{recurrent_block_forward.1} parent=5 // pred_region
      %s129 = ssub.s32 %s10, 1
      // Predicated region
      $region13: #{recurrent_block_forward.1} parent=11 // pred_check
        %p130 = pneg %p31
      $region14: #{recurrent_block_forward.1} parent=11 // pred_check_branch
        %132 = sbr.rel (%p130) target = $region16
      $region15: #{recurrent_block_forward.1} parent=11 // pred_region
        _
      $region16: #{recurrent_block_forward.1} parent=11 // pred_fallthru
        _
      // Predicated region
      $region17: #{recurrent_block_forward.1} parent=11 // pred_check
        %p133 = pneg %p52
      $region18: #{recurrent_block_forward.1} parent=11 // pred_check_branch
        %135 = sbr.rel (%p133) target = $region20
      $region19: #{recurrent_block_forward.1} parent=11 // pred_region
        _
      $region20: #{recurrent_block_forward.1} parent=11 // pred_fallthru
        _
      // Predicated region
      $region21: #{recurrent_block_forward.1} parent=11 // pred_check
        %p136 = pneg %p73
      $region22: #{recurrent_block_forward.1} parent=11 // pred_check_branch
        %138 = sbr.rel (%p136) target = $region24
      $region23: #{recurrent_block_forward.1} parent=11 // pred_region
        _
      $region24: #{recurrent_block_forward.1} parent=11 // pred_fallthru
        _
      // Predicated region
      $region25: #{recurrent_block_forward.1} parent=11 // pred_check
        %p139 = pneg %p94
      $region26: #{recurrent_block_forward.1} parent=11 // pred_check_branch
        %141 = sbr.rel (%p139) target = $region28
      $region27: #{recurrent_block_forward.1} parent=11 // pred_region
        _
      $region28: #{recurrent_block_forward.1} parent=11 // pred_fallthru
        _
    $region12: #{recurrent_block_forward.1} parent=5 // pred_fallthru
      _
    %p142 = scmp.lt.s32.totalorder %s10, 3
    // Predicated region
    $region29: #{recurrent_block_forward.1} parent=5 // pred_check
      %p143 = pneg %p142
    $region30: #{recurrent_block_forward.1} parent=5 // pred_check_branch
      %145 = sbr.rel (%p143) target = $region32
    $region31: #{recurrent_block_forward.1} parent=5 // pred_region
      _
    $region32: #{recurrent_block_forward.1} parent=5 // pred_fallthru
      _
    %p146 = scmp.le.s32.totalorder 1, %s10
    %p147 = scmp.lt.s32.totalorder %s10, 4
    %p148 = pnand %p146, %p147
    %p149 = pneg %p148
    // Predicated region
    $region33: #{recurrent_block_forward.1} parent=5 // pred_check
      _
    $region34: #{recurrent_block_forward.1} parent=5 // pred_check_branch
      %151 = sbr.rel (%p148) target = $region36
    $region35: #{recurrent_block_forward.1} parent=5 // pred_region
      %s152 = ssub.s32 %s10, 1
      %p153 = pneg %p31
      %p154 = pneg %p28
      %p155 = pneg %p52
      %p156 = pneg %p49
      %p157 = pneg %p73
      %p158 = pneg %p70
      %p159 = pneg %p94
      %p160 = pneg %p91
      %p161 = pneg %p115
      %p162 = pneg %p112
      %p163 = scmp.eq.s32.totalorder %s15, 0
      // Predicated region
      $region37: #{recurrent_block_forward.1} parent=35 // pred_check
        %p164 = pneg %p163
      $region38: #{recurrent_block_forward.1} parent=35 // pred_check_branch
        %166 = sbr.rel (%p164) target = $region40
      $region39: #{recurrent_block_forward.1} parent=35 // pred_region
        %v167 = vld [vmem:[%s0] sm:$0xff]
        %v168 = vld [vmem:[%s0 + $0x8] sm:$0xff]
        %v169 = vld [vmem:[%s0 + $0x10] sm:$0xff]
        %v170 = vld [vmem:[%s0 + $0x18] sm:$0xff]
        %v171 = vld [vmem:[%s0 + $0x20] sm:$0xff]
        %v172 = vld [vmem:[%s0 + $0x28] sm:$0xff]
        %v173 = vld [vmem:[%s0 + $0x30] sm:$0xff]
        %v174 = vld [vmem:[%s0 + $0x38] sm:$0xff]
        %v175 = vld [vmem:[%s0 + $0x40] sm:$0xff]
        %v176 = vld [vmem:[%s0 + $0x48] sm:$0xff]
        %v177 = vld [vmem:[%s0 + $0x50] sm:$0xff]
        %v178 = vld [vmem:[%s0 + $0x58] sm:$0xff]
        %v179 = vld [vmem:[%s0 + $0x60] sm:$0xff]
        %v180 = vld [vmem:[%s0 + $0x68] sm:$0xff]
        %v181 = vld [vmem:[%s0 + $0x70] sm:$0xff]
        %v182 = vld [vmem:[%s0 + $0x78] sm:$0xff]
        %183 = vst [vmem:[#allocation2] sm:$0xff] %v167
        %184 = vst [vmem:[#allocation2 + $0x8] sm:$0xff] %v168
        %185 = vst [vmem:[#allocation2 + $0x10] sm:$0xff] %v169
        %186 = vst [vmem:[#allocation2 + $0x18] sm:$0xff] %v170
        %187 = vst [vmem:[#allocation2 + $0x20] sm:$0xff] %v171
        %188 = vst [vmem:[#allocation2 + $0x28] sm:$0xff] %v172
        %189 = vst [vmem:[#allocation2 + $0x30] sm:$0xff] %v173
        %190 = vst [vmem:[#allocation2 + $0x38] sm:$0xff] %v174
        %191 = vst [vmem:[#allocation2 + $0x40] sm:$0xff] %v175
        %192 = vst [vmem:[#allocation2 + $0x48] sm:$0xff] %v176
        %193 = vst [vmem:[#allocation2 + $0x50] sm:$0xff] %v177
        %194 = vst [vmem:[#allocation2 + $0x58] sm:$0xff] %v178
        %195 = vst [vmem:[#allocation2 + $0x60] sm:$0xff] %v179
        %196 = vst [vmem:[#allocation2 + $0x68] sm:$0xff] %v180
        %197 = vst [vmem:[#allocation2 + $0x70] sm:$0xff] %v181
        %198 = vst [vmem:[#allocation2 + $0x78] sm:$0xff] %v182
        %199 = vst [vmem:[#allocation3] sm:$0xff] 0.0
        %200 = vst [vmem:[#allocation3 + $0x8] sm:$0xff] 0.0
        %201 = vst [vmem:[#allocation3 + $0x10] sm:$0xff] 0.0
        %202 = vst [vmem:[#allocation3 + $0x18] sm:$0xff] 0.0
        %203 = vst [vmem:[#allocation3 + $0x20] sm:$0xff] 0.0
        %204 = vst [vmem:[#allocation3 + $0x28] sm:$0xff] 0.0
        %205 = vst [vmem:[#allocation3 + $0x30] sm:$0xff] 0.0
        %206 = vst [vmem:[#allocation3 + $0x38] sm:$0xff] 0.0
        %207 = vst [vmem:[#allocation3 + $0x40] sm:$0xff] 0.0
        %208 = vst [vmem:[#allocation3 + $0x48] sm:$0xff] 0.0
        %209 = vst [vmem:[#allocation3 + $0x50] sm:$0xff] 0.0
        %210 = vst [vmem:[#allocation3 + $0x58] sm:$0xff] 0.0
        %211 = vst [vmem:[#allocation3 + $0x60] sm:$0xff] 0.0
        %212 = vst [vmem:[#allocation3 + $0x68] sm:$0xff] 0.0
        %213 = vst [vmem:[#allocation3 + $0x70] sm:$0xff] 0.0
        %214 = vst [vmem:[#allocation3 + $0x78] sm:$0xff] 0.0
        %215 = vst [vmem:[#allocation3 + $0x80] sm:$0xff] 0.0
        %216 = vst [vmem:[#allocation3 + $0x88] sm:$0xff] 0.0
        %217 = vst [vmem:[#allocation3 + $0x90] sm:$0xff] 0.0
        %218 = vst [vmem:[#allocation3 + $0x98] sm:$0xff] 0.0
        %219 = vst [vmem:[#allocation3 + $0xa0] sm:$0xff] 0.0
        %220 = vst [vmem:[#allocation3 + $0xa8] sm:$0xff] 0.0
        %221 = vst [vmem:[#allocation3 + $0xb0] sm:$0xff] 0.0
        %222 = vst [vmem:[#allocation3 + $0xb8] sm:$0xff] 0.0
        %223 = vst [vmem:[#allocation3 + $0xc0] sm:$0xff] 0.0
        %224 = vst [vmem:[#allocation3 + $0xc8] sm:$0xff] 0.0
        %225 = vst [vmem:[#allocation3 + $0xd0] sm:$0xff] 0.0
        %226 = vst [vmem:[#allocation3 + $0xd8] sm:$0xff] 0.0
        %227 = vst [vmem:[#allocation3 + $0xe0] sm:$0xff] 0.0
        %228 = vst [vmem:[#allocation3 + $0xe8] sm:$0xff] 0.0
        %229 = vst [vmem:[#allocation3 + $0xf0] sm:$0xff] 0.0
        %230 = vst [vmem:[#allocation3 + $0xf8] sm:$0xff] 0.0
        %231 = vst [vmem:[#allocation3 + $0x100] sm:$0xff] 0.0
        %232 = vst [vmem:[#allocation3 + $0x108] sm:$0xff] 0.0
        %233 = vst [vmem:[#allocation3 + $0x110] sm:$0xff] 0.0
        %234 = vst [vmem:[#allocation3 + $0x118] sm:$0xff] 0.0
        %235 = vst [vmem:[#allocation3 + $0x120] sm:$0xff] 0.0
        %236 = vst [vmem:[#allocation3 + $0x128] sm:$0xff] 0.0
        %237 = vst [vmem:[#allocation3 + $0x130] sm:$0xff] 0.0
        %238 = vst [vmem:[#allocation3 + $0x138] sm:$0xff] 0.0
        %239 = vst [vmem:[#allocation3 + $0x140] sm:$0xff] 0.0
        %240 = vst [vmem:[#allocation3 + $0x148] sm:$0xff] 0.0
        %241 = vst [vmem:[#allocation3 + $0x150] sm:$0xff] 0.0
        %242 = vst [vmem:[#allocation3 + $0x158] sm:$0xff] 0.0
        %243 = vst [vmem:[#allocation3 + $0x160] sm:$0xff] 0.0
        %244 = vst [vmem:[#allocation3 + $0x168] sm:$0xff] 0.0
        %245 = vst [vmem:[#allocation3 + $0x170] sm:$0xff] 0.0
        %246 = vst [vmem:[#allocation3 + $0x178] sm:$0xff] 0.0
        %247 = vst [vmem:[#allocation3 + $0x180] sm:$0xff] 0.0
        %248 = vst [vmem:[#allocation3 + $0x188] sm:$0xff] 0.0
        %249 = vst [vmem:[#allocation3 + $0x190] sm:$0xff] 0.0
        %250 = vst [vmem:[#allocation3 + $0x198] sm:$0xff] 0.0
        %251 = vst [vmem:[#allocation3 + $0x1a0] sm:$0xff] 0.0
        %252 = vst [vmem:[#allocation3 + $0x1a8] sm:$0xff] 0.0
        %253 = vst [vmem:[#allocation3 + $0x1b0] sm:$0xff] 0.0
        %254 = vst [vmem:[#allocation3 + $0x1b8] sm:$0xff] 0.0
        %255 = vst [vmem:[#allocation3 + $0x1c0] sm:$0xff] 0.0
        %256 = vst [vmem:[#allocation3 + $0x1c8] sm:$0xff] 0.0
        %257 = vst [vmem:[#allocation3 + $0x1d0] sm:$0xff] 0.0
        %258 = vst [vmem:[#allocation3 + $0x1d8] sm:$0xff] 0.0
        %259 = vst [vmem:[#allocation3 + $0x1e0] sm:$0xff] 0.0
        %260 = vst [vmem:[#allocation3 + $0x1e8] sm:$0xff] 0.0
        %261 = vst [vmem:[#allocation3 + $0x1f0] sm:$0xff] 0.0
        %262 = vst [vmem:[#allocation3 + $0x1f8] sm:$0xff] 0.0
        %263 = vst [vmem:[#allocation3 + $0x200] sm:$0xff] 0.0
        %264 = vst [vmem:[#allocation3 + $0x208] sm:$0xff] 0.0
        %265 = vst [vmem:[#allocation3 + $0x210] sm:$0xff] 0.0
        %266 = vst [vmem:[#allocation3 + $0x218] sm:$0xff] 0.0
        %267 = vst [vmem:[#allocation3 + $0x220] sm:$0xff] 0.0
        %268 = vst [vmem:[#allocation3 + $0x228] sm:$0xff] 0.0
        %269 = vst [vmem:[#allocation3 + $0x230] sm:$0xff] 0.0
        %270 = vst [vmem:[#allocation3 + $0x238] sm:$0xff] 0.0
        %271 = vst [vmem:[#allocation3 + $0x240] sm:$0xff] 0.0
        %272 = vst [vmem:[#allocation3 + $0x248] sm:$0xff] 0.0
        %273 = vst [vmem:[#allocation3 + $0x250] sm:$0xff] 0.0
        %274 = vst [vmem:[#allocation3 + $0x258] sm:$0xff] 0.0
        %275 = vst [vmem:[#allocation3 + $0x260] sm:$0xff] 0.0
        %276 = vst [vmem:[#allocation3 + $0x268] sm:$0xff] 0.0
        %277 = vst [vmem:[#allocation3 + $0x270] sm:$0xff] 0.0
        %278 = vst [vmem:[#allocation3 + $0x278] sm:$0xff] 0.0
        %279 = vst [vmem:[#allocation3 + $0x280] sm:$0xff] 0.0
        %280 = vst [vmem:[#allocation3 + $0x288] sm:$0xff] 0.0
        %281 = vst [vmem:[#allocation3 + $0x290] sm:$0xff] 0.0
        %282 = vst [vmem:[#allocation3 + $0x298] sm:$0xff] 0.0
        %283 = vst [vmem:[#allocation3 + $0x2a0] sm:$0xff] 0.0
        %284 = vst [vmem:[#allocation3 + $0x2a8] sm:$0xff] 0.0
        %285 = vst [vmem:[#allocation3 + $0x2b0] sm:$0xff] 0.0
        %286 = vst [vmem:[#allocation3 + $0x2b8] sm:$0xff] 0.0
        %287 = vst [vmem:[#allocation3 + $0x2c0] sm:$0xff] 0.0
        %288 = vst [vmem:[#allocation3 + $0x2c8] sm:$0xff] 0.0
        %289 = vst [vmem:[#allocation3 + $0x2d0] sm:$0xff] 0.0
        %290 = vst [vmem:[#allocation3 + $0x2d8] sm:$0xff] 0.0
        %291 = vst [vmem:[#allocation3 + $0x2e0] sm:$0xff] 0.0
        %292 = vst [vmem:[#allocation3 + $0x2e8] sm:$0xff] 0.0
        %293 = vst [vmem:[#allocation3 + $0x2f0] sm:$0xff] 0.0
        %294 = vst [vmem:[#allocation3 + $0x2f8] sm:$0xff] 0.0
        %295 = vst [vmem:[#allocation3 + $0x300] sm:$0xff] 0.0
        %296 = vst [vmem:[#allocation3 + $0x308] sm:$0xff] 0.0
        %297 = vst [vmem:[#allocation3 + $0x310] sm:$0xff] 0.0
        %298 = vst [vmem:[#allocation3 + $0x318] sm:$0xff] 0.0
        %299 = vst [vmem:[#allocation3 + $0x320] sm:$0xff] 0.0
        %300 = vst [vmem:[#allocation3 + $0x328] sm:$0xff] 0.0
        %301 = vst [vmem:[#allocation3 + $0x330] sm:$0xff] 0.0
        %302 = vst [vmem:[#allocation3 + $0x338] sm:$0xff] 0.0
        %303 = vst [vmem:[#allocation3 + $0x340] sm:$0xff] 0.0
        %304 = vst [vmem:[#allocation3 + $0x348] sm:$0xff] 0.0
        %305 = vst [vmem:[#allocation3 + $0x350] sm:$0xff] 0.0
        %306 = vst [vmem:[#allocation3 + $0x358] sm:$0xff] 0.0
        %307 = vst [vmem:[#allocation3 + $0x360] sm:$0xff] 0.0
        %308 = vst [vmem:[#allocation3 + $0x368] sm:$0xff] 0.0
        %309 = vst [vmem:[#allocation3 + $0x370] sm:$0xff] 0.0
        %310 = vst [vmem:[#allocation3 + $0x378] sm:$0xff] 0.0
        %311 = vst [vmem:[#allocation3 + $0x380] sm:$0xff] 0.0
        %312 = vst [vmem:[#allocation3 + $0x388] sm:$0xff] 0.0
        %313 = vst [vmem:[#allocation3 + $0x390] sm:$0xff] 0.0
        %314 = vst [vmem:[#allocation3 + $0x398] sm:$0xff] 0.0
        %315 = vst [vmem:[#allocation3 + $0x3a0] sm:$0xff] 0.0
        %316 = vst [vmem:[#allocation3 + $0x3a8] sm:$0xff] 0.0
        %317 = vst [vmem:[#allocation3 + $0x3b0] sm:$0xff] 0.0
        %318 = vst [vmem:[#allocation3 + $0x3b8] sm:$0xff] 0.0
        %319 = vst [vmem:[#allocation3 + $0x3c0] sm:$0xff] 0.0
        %320 = vst [vmem:[#allocation3 + $0x3c8] sm:$0xff] 0.0
        %321 = vst [vmem:[#allocation3 + $0x3d0] sm:$0xff] 0.0
        %322 = vst [vmem:[#allocation3 + $0x3d8] sm:$0xff] 0.0
        %323 = vst [vmem:[#allocation3 + $0x3e0] sm:$0xff] 0.0
        %324 = vst [vmem:[#allocation3 + $0x3e8] sm:$0xff] 0.0
        %325 = vst [vmem:[#allocation3 + $0x3f0] sm:$0xff] 0.0
        %326 = vst [vmem:[#allocation3 + $0x3f8] sm:$0xff] 0.0
        %327 = vst [vmem:[#allocation3 + $0x400] sm:$0xff] 0.0
        %328 = vst [vmem:[#allocation3 + $0x408] sm:$0xff] 0.0
        %329 = vst [vmem:[#allocation3 + $0x410] sm:$0xff] 0.0
        %330 = vst [vmem:[#allocation3 + $0x418] sm:$0xff] 0.0
        %331 = vst [vmem:[#allocation3 + $0x420] sm:$0xff] 0.0
        %332 = vst [vmem:[#allocation3 + $0x428] sm:$0xff] 0.0
        %333 = vst [vmem:[#allocation3 + $0x430] sm:$0xff] 0.0
        %334 = vst [vmem:[#allocation3 + $0x438] sm:$0xff] 0.0
        %335 = vst [vmem:[#allocation3 + $0x440] sm:$0xff] 0.0
        %336 = vst [vmem:[#allocation3 + $0x448] sm:$0xff] 0.0
        %337 = vst [vmem:[#allocation3 + $0x450] sm:$0xff] 0.0
        %338 = vst [vmem:[#allocation3 + $0x458] sm:$0xff] 0.0
        %339 = vst [vmem:[#allocation3 + $0x460] sm:$0xff] 0.0
        %340 = vst [vmem:[#allocation3 + $0x468] sm:$0xff] 0.0
        %341 = vst [vmem:[#allocation3 + $0x470] sm:$0xff] 0.0
        %342 = vst [vmem:[#allocation3 + $0x478] sm:$0xff] 0.0
        %343 = vst [vmem:[#allocation3 + $0x480] sm:$0xff] 0.0
        %344 = vst [vmem:[#allocation3 + $0x488] sm:$0xff] 0.0
        %345 = vst [vmem:[#allocation3 + $0x490] sm:$0xff] 0.0
        %346 = vst [vmem:[#allocation3 + $0x498] sm:$0xff] 0.0
        %347 = vst [vmem:[#allocation3 + $0x4a0] sm:$0xff] 0.0
        %348 = vst [vmem:[#allocation3 + $0x4a8] sm:$0xff] 0.0
        %349 = vst [vmem:[#allocation3 + $0x4b0] sm:$0xff] 0.0
        %350 = vst [vmem:[#allocation3 + $0x4b8] sm:$0xff] 0.0
        %351 = vst [vmem:[#allocation3 + $0x4c0] sm:$0xff] 0.0
        %352 = vst [vmem:[#allocation3 + $0x4c8] sm:$0xff] 0.0
        %353 = vst [vmem:[#allocation3 + $0x4d0] sm:$0xff] 0.0
        %354 = vst [vmem:[#allocation3 + $0x4d8] sm:$0xff] 0.0
        %355 = vst [vmem:[#allocation3 + $0x4e0] sm:$0xff] 0.0
        %356 = vst [vmem:[#allocation3 + $0x4e8] sm:$0xff] 0.0
        %357 = vst [vmem:[#allocation3 + $0x4f0] sm:$0xff] 0.0
        %358 = vst [vmem:[#allocation3 + $0x4f8] sm:$0xff] 0.0
        %359 = vst [vmem:[#allocation3 + $0x500] sm:$0xff] 0.0
        %360 = vst [vmem:[#allocation3 + $0x508] sm:$0xff] 0.0
        %361 = vst [vmem:[#allocation3 + $0x510] sm:$0xff] 0.0
        %362 = vst [vmem:[#allocation3 + $0x518] sm:$0xff] 0.0
        %363 = vst [vmem:[#allocation3 + $0x520] sm:$0xff] 0.0
        %364 = vst [vmem:[#allocation3 + $0x528] sm:$0xff] 0.0
        %365 = vst [vmem:[#allocation3 + $0x530] sm:$0xff] 0.0
        %366 = vst [vmem:[#allocation3 + $0x538] sm:$0xff] 0.0
        %367 = vst [vmem:[#allocation3 + $0x540] sm:$0xff] 0.0
        %368 = vst [vmem:[#allocation3 + $0x548] sm:$0xff] 0.0
        %369 = vst [vmem:[#allocation3 + $0x550] sm:$0xff] 0.0
        %370 = vst [vmem:[#allocation3 + $0x558] sm:$0xff] 0.0
        %371 = vst [vmem:[#allocation3 + $0x560] sm:$0xff] 0.0
        %372 = vst [vmem:[#allocation3 + $0x568] sm:$0xff] 0.0
        %373 = vst [vmem:[#allocation3 + $0x570] sm:$0xff] 0.0
        %374 = vst [vmem:[#allocation3 + $0x578] sm:$0xff] 0.0
        %375 = vst [vmem:[#allocation3 + $0x580] sm:$0xff] 0.0
        %376 = vst [vmem:[#allocation3 + $0x588] sm:$0xff] 0.0
        %377 = vst [vmem:[#allocation3 + $0x590] sm:$0xff] 0.0
        %378 = vst [vmem:[#allocation3 + $0x598] sm:$0xff] 0.0
        %379 = vst [vmem:[#allocation3 + $0x5a0] sm:$0xff] 0.0
        %380 = vst [vmem:[#allocation3 + $0x5a8] sm:$0xff] 0.0
        %381 = vst [vmem:[#allocation3 + $0x5b0] sm:$0xff] 0.0
        %382 = vst [vmem:[#allocation3 + $0x5b8] sm:$0xff] 0.0
        %383 = vst [vmem:[#allocation3 + $0x5c0] sm:$0xff] 0.0
        %384 = vst [vmem:[#allocation3 + $0x5c8] sm:$0xff] 0.0
        %385 = vst [vmem:[#allocation3 + $0x5d0] sm:$0xff] 0.0
        %386 = vst [vmem:[#allocation3 + $0x5d8] sm:$0xff] 0.0
        %387 = vst [vmem:[#allocation3 + $0x5e0] sm:$0xff] 0.0
        %388 = vst [vmem:[#allocation3 + $0x5e8] sm:$0xff] 0.0
        %389 = vst [vmem:[#allocation3 + $0x5f0] sm:$0xff] 0.0
        %390 = vst [vmem:[#allocation3 + $0x5f8] sm:$0xff] 0.0
        %391 = vst [vmem:[#allocation3 + $0x600] sm:$0xff] 0.0
        %392 = vst [vmem:[#allocation3 + $0x608] sm:$0xff] 0.0
        %393 = vst [vmem:[#allocation3 + $0x610] sm:$0xff] 0.0
        %394 = vst [vmem:[#allocation3 + $0x618] sm:$0xff] 0.0
        %395 = vst [vmem:[#allocation3 + $0x620] sm:$0xff] 0.0
        %396 = vst [vmem:[#allocation3 + $0x628] sm:$0xff] 0.0
        %397 = vst [vmem:[#allocation3 + $0x630] sm:$0xff] 0.0
        %398 = vst [vmem:[#allocation3 + $0x638] sm:$0xff] 0.0
        %399 = vst [vmem:[#allocation3 + $0x640] sm:$0xff] 0.0
        %400 = vst [vmem:[#allocation3 + $0x648] sm:$0xff] 0.0
        %401 = vst [vmem:[#allocation3 + $0x650] sm:$0xff] 0.0
        %402 = vst [vmem:[#allocation3 + $0x658] sm:$0xff] 0.0
        %403 = vst [vmem:[#allocation3 + $0x660] sm:$0xff] 0.0
        %404 = vst [vmem:[#allocation3 + $0x668] sm:$0xff] 0.0
        %405 = vst [vmem:[#allocation3 + $0x670] sm:$0xff] 0.0
        %406 = vst [vmem:[#allocation3 + $0x678] sm:$0xff] 0.0
        %407 = vst [vmem:[#allocation3 + $0x680] sm:$0xff] 0.0
        %408 = vst [vmem:[#allocation3 + $0x688] sm:$0xff] 0.0
        %409 = vst [vmem:[#allocation3 + $0x690] sm:$0xff] 0.0
        %410 = vst [vmem:[#allocation3 + $0x698] sm:$0xff] 0.0
        %411 = vst [vmem:[#allocation3 + $0x6a0] sm:$0xff] 0.0
        %412 = vst [vmem:[#allocation3 + $0x6a8] sm:$0xff] 0.0
        %413 = vst [vmem:[#allocation3 + $0x6b0] sm:$0xff] 0.0
        %414 = vst [vmem:[#allocation3 + $0x6b8] sm:$0xff] 0.0
        %415 = vst [vmem:[#allocation3 + $0x6c0] sm:$0xff] 0.0
        %416 = vst [vmem:[#allocation3 + $0x6c8] sm:$0xff] 0.0
        %417 = vst [vmem:[#allocation3 + $0x6d0] sm:$0xff] 0.0
        %418 = vst [vmem:[#allocation3 + $0x6d8] sm:$0xff] 0.0
        %419 = vst [vmem:[#allocation3 + $0x6e0] sm:$0xff] 0.0
        %420 = vst [vmem:[#allocation3 + $0x6e8] sm:$0xff] 0.0
        %421 = vst [vmem:[#allocation3 + $0x6f0] sm:$0xff] 0.0
        %422 = vst [vmem:[#allocation3 + $0x6f8] sm:$0xff] 0.0
        %423 = vst [vmem:[#allocation3 + $0x700] sm:$0xff] 0.0
        %424 = vst [vmem:[#allocation3 + $0x708] sm:$0xff] 0.0
        %425 = vst [vmem:[#allocation3 + $0x710] sm:$0xff] 0.0
        %426 = vst [vmem:[#allocation3 + $0x718] sm:$0xff] 0.0
        %427 = vst [vmem:[#allocation3 + $0x720] sm:$0xff] 0.0
        %428 = vst [vmem:[#allocation3 + $0x728] sm:$0xff] 0.0
        %429 = vst [vmem:[#allocation3 + $0x730] sm:$0xff] 0.0
        %430 = vst [vmem:[#allocation3 + $0x738] sm:$0xff] 0.0
        %431 = vst [vmem:[#allocation3 + $0x740] sm:$0xff] 0.0
        %432 = vst [vmem:[#allocation3 + $0x748] sm:$0xff] 0.0
        %433 = vst [vmem:[#allocation3 + $0x750] sm:$0xff] 0.0
        %434 = vst [vmem:[#allocation3 + $0x758] sm:$0xff] 0.0
        %435 = vst [vmem:[#allocation3 + $0x760] sm:$0xff] 0.0
        %436 = vst [vmem:[#allocation3 + $0x768] sm:$0xff] 0.0
        %437 = vst [vmem:[#allocation3 + $0x770] sm:$0xff] 0.0
        %438 = vst [vmem:[#allocation3 + $0x778] sm:$0xff] 0.0
        %439 = vst [vmem:[#allocation3 + $0x780] sm:$0xff] 0.0
        %440 = vst [vmem:[#allocation3 + $0x788] sm:$0xff] 0.0
        %441 = vst [vmem:[#allocation3 + $0x790] sm:$0xff] 0.0
        %442 = vst [vmem:[#allocation3 + $0x798] sm:$0xff] 0.0
        %443 = vst [vmem:[#allocation3 + $0x7a0] sm:$0xff] 0.0
        %444 = vst [vmem:[#allocation3 + $0x7a8] sm:$0xff] 0.0
        %445 = vst [vmem:[#allocation3 + $0x7b0] sm:$0xff] 0.0
        %446 = vst [vmem:[#allocation3 + $0x7b8] sm:$0xff] 0.0
        %447 = vst [vmem:[#allocation3 + $0x7c0] sm:$0xff] 0.0
        %448 = vst [vmem:[#allocation3 + $0x7c8] sm:$0xff] 0.0
        %449 = vst [vmem:[#allocation3 + $0x7d0] sm:$0xff] 0.0
        %450 = vst [vmem:[#allocation3 + $0x7d8] sm:$0xff] 0.0
        %451 = vst [vmem:[#allocation3 + $0x7e0] sm:$0xff] 0.0
        %452 = vst [vmem:[#allocation3 + $0x7e8] sm:$0xff] 0.0
        %453 = vst [vmem:[#allocation3 + $0x7f0] sm:$0xff] 0.0
        %454 = vst [vmem:[#allocation3 + $0x7f8] sm:$0xff] 0.0
        %455 = vst [vmem:[#allocation3 + $0x800] sm:$0xff] 0.0
        %456 = vst [vmem:[#allocation3 + $0x808] sm:$0xff] 0.0
        %457 = vst [vmem:[#allocation3 + $0x810] sm:$0xff] 0.0
        %458 = vst [vmem:[#allocation3 + $0x818] sm:$0xff] 0.0
        %459 = vst [vmem:[#allocation3 + $0x820] sm:$0xff] 0.0
        %460 = vst [vmem:[#allocation3 + $0x828] sm:$0xff] 0.0
        %461 = vst [vmem:[#allocation3 + $0x830] sm:$0xff] 0.0
        %462 = vst [vmem:[#allocation3 + $0x838] sm:$0xff] 0.0
        %463 = vst [vmem:[#allocation3 + $0x840] sm:$0xff] 0.0
        %464 = vst [vmem:[#allocation3 + $0x848] sm:$0xff] 0.0
        %465 = vst [vmem:[#allocation3 + $0x850] sm:$0xff] 0.0
        %466 = vst [vmem:[#allocation3 + $0x858] sm:$0xff] 0.0
        %467 = vst [vmem:[#allocation3 + $0x860] sm:$0xff] 0.0
        %468 = vst [vmem:[#allocation3 + $0x868] sm:$0xff] 0.0
        %469 = vst [vmem:[#allocation3 + $0x870] sm:$0xff] 0.0
        %470 = vst [vmem:[#allocation3 + $0x878] sm:$0xff] 0.0
        %471 = vst [vmem:[#allocation3 + $0x880] sm:$0xff] 0.0
        %472 = vst [vmem:[#allocation3 + $0x888] sm:$0xff] 0.0
        %473 = vst [vmem:[#allocation3 + $0x890] sm:$0xff] 0.0
        %474 = vst [vmem:[#allocation3 + $0x898] sm:$0xff] 0.0
        %475 = vst [vmem:[#allocation3 + $0x8a0] sm:$0xff] 0.0
        %476 = vst [vmem:[#allocation3 + $0x8a8] sm:$0xff] 0.0
        %477 = vst [vmem:[#allocation3 + $0x8b0] sm:$0xff] 0.0
        %478 = vst [vmem:[#allocation3 + $0x8b8] sm:$0xff] 0.0
        %479 = vst [vmem:[#allocation3 + $0x8c0] sm:$0xff] 0.0
        %480 = vst [vmem:[#allocation3 + $0x8c8] sm:$0xff] 0.0
        %481 = vst [vmem:[#allocation3 + $0x8d0] sm:$0xff] 0.0
        %482 = vst [vmem:[#allocation3 + $0x8d8] sm:$0xff] 0.0
        %483 = vst [vmem:[#allocation3 + $0x8e0] sm:$0xff] 0.0
        %484 = vst [vmem:[#allocation3 + $0x8e8] sm:$0xff] 0.0
        %485 = vst [vmem:[#allocation3 + $0x8f0] sm:$0xff] 0.0
        %486 = vst [vmem:[#allocation3 + $0x8f8] sm:$0xff] 0.0
        %487 = vst [vmem:[#allocation3 + $0x900] sm:$0xff] 0.0
        %488 = vst [vmem:[#allocation3 + $0x908] sm:$0xff] 0.0
        %489 = vst [vmem:[#allocation3 + $0x910] sm:$0xff] 0.0
        %490 = vst [vmem:[#allocation3 + $0x918] sm:$0xff] 0.0
        %491 = vst [vmem:[#allocation3 + $0x920] sm:$0xff] 0.0
        %492 = vst [vmem:[#allocation3 + $0x928] sm:$0xff] 0.0
        %493 = vst [vmem:[#allocation3 + $0x930] sm:$0xff] 0.0
        %494 = vst [vmem:[#allocation3 + $0x938] sm:$0xff] 0.0
        %495 = vst [vmem:[#allocation3 + $0x940] sm:$0xff] 0.0
        %496 = vst [vmem:[#allocation3 + $0x948] sm:$0xff] 0.0
        %497 = vst [vmem:[#allocation3 + $0x950] sm:$0xff] 0.0
        %498 = vst [vmem:[#allocation3 + $0x958] sm:$0xff] 0.0
        %499 = vst [vmem:[#allocation3 + $0x960] sm:$0xff] 0.0
        %500 = vst [vmem:[#allocation3 + $0x968] sm:$0xff] 0.0
        %501 = vst [vmem:[#allocation3 + $0x970] sm:$0xff] 0.0
        %502 = vst [vmem:[#allocation3 + $0x978] sm:$0xff] 0.0
        %503 = vst [vmem:[#allocation3 + $0x980] sm:$0xff] 0.0
        %504 = vst [vmem:[#allocation3 + $0x988] sm:$0xff] 0.0
        %505 = vst [vmem:[#allocation3 + $0x990] sm:$0xff] 0.0
        %506 = vst [vmem:[#allocation3 + $0x998] sm:$0xff] 0.0
        %507 = vst [vmem:[#allocation3 + $0x9a0] sm:$0xff] 0.0
        %508 = vst [vmem:[#allocation3 + $0x9a8] sm:$0xff] 0.0
        %509 = vst [vmem:[#allocation3 + $0x9b0] sm:$0xff] 0.0
        %510 = vst [vmem:[#allocation3 + $0x9b8] sm:$0xff] 0.0
        %511 = vst [vmem:[#allocation3 + $0x9c0] sm:$0xff] 0.0
        %512 = vst [vmem:[#allocation3 + $0x9c8] sm:$0xff] 0.0
        %513 = vst [vmem:[#allocation3 + $0x9d0] sm:$0xff] 0.0
        %514 = vst [vmem:[#allocation3 + $0x9d8] sm:$0xff] 0.0
        %515 = vst [vmem:[#allocation3 + $0x9e0] sm:$0xff] 0.0
        %516 = vst [vmem:[#allocation3 + $0x9e8] sm:$0xff] 0.0
        %517 = vst [vmem:[#allocation3 + $0x9f0] sm:$0xff] 0.0
        %518 = vst [vmem:[#allocation3 + $0x9f8] sm:$0xff] 0.0
        %519 = vst [vmem:[#allocation3 + $0xa00] sm:$0xff] 0.0
        %520 = vst [vmem:[#allocation3 + $0xa08] sm:$0xff] 0.0
        %521 = vst [vmem:[#allocation3 + $0xa10] sm:$0xff] 0.0
        %522 = vst [vmem:[#allocation3 + $0xa18] sm:$0xff] 0.0
        %523 = vst [vmem:[#allocation3 + $0xa20] sm:$0xff] 0.0
        %524 = vst [vmem:[#allocation3 + $0xa28] sm:$0xff] 0.0
        %525 = vst [vmem:[#allocation3 + $0xa30] sm:$0xff] 0.0
        %526 = vst [vmem:[#allocation3 + $0xa38] sm:$0xff] 0.0
        %527 = vst [vmem:[#allocation3 + $0xa40] sm:$0xff] 0.0
        %528 = vst [vmem:[#allocation3 + $0xa48] sm:$0xff] 0.0
        %529 = vst [vmem:[#allocation3 + $0xa50] sm:$0xff] 0.0
        %530 = vst [vmem:[#allocation3 + $0xa58] sm:$0xff] 0.0
        %531 = vst [vmem:[#allocation3 + $0xa60] sm:$0xff] 0.0
        %532 = vst [vmem:[#allocation3 + $0xa68] sm:$0xff] 0.0
        %533 = vst [vmem:[#allocation3 + $0xa70] sm:$0xff] 0.0
        %534 = vst [vmem:[#allocation3 + $0xa78] sm:$0xff] 0.0
        %535 = vst [vmem:[#allocation3 + $0xa80] sm:$0xff] 0.0
        %536 = vst [vmem:[#allocation3 + $0xa88] sm:$0xff] 0.0
        %537 = vst [vmem:[#allocation3 + $0xa90] sm:$0xff] 0.0
        %538 = vst [vmem:[#allocation3 + $0xa98] sm:$0xff] 0.0
        %539 = vst [vmem:[#allocation3 + $0xaa0] sm:$0xff] 0.0
        %540 = vst [vmem:[#allocation3 + $0xaa8] sm:$0xff] 0.0
        %541 = vst [vmem:[#allocation3 + $0xab0] sm:$0xff] 0.0
        %542 = vst [vmem:[#allocation3 + $0xab8] sm:$0xff] 0.0
        %543 = vst [vmem:[#allocation3 + $0xac0] sm:$0xff] 0.0
        %544 = vst [vmem:[#allocation3 + $0xac8] sm:$0xff] 0.0
        %545 = vst [vmem:[#allocation3 + $0xad0] sm:$0xff] 0.0
        %546 = vst [vmem:[#allocation3 + $0xad8] sm:$0xff] 0.0
        %547 = vst [vmem:[#allocation3 + $0xae0] sm:$0xff] 0.0
        %548 = vst [vmem:[#allocation3 + $0xae8] sm:$0xff] 0.0
        %549 = vst [vmem:[#allocation3 + $0xaf0] sm:$0xff] 0.0
        %550 = vst [vmem:[#allocation3 + $0xaf8] sm:$0xff] 0.0
        %551 = vst [vmem:[#allocation3 + $0xb00] sm:$0xff] 0.0
        %552 = vst [vmem:[#allocation3 + $0xb08] sm:$0xff] 0.0
        %553 = vst [vmem:[#allocation3 + $0xb10] sm:$0xff] 0.0
        %554 = vst [vmem:[#allocation3 + $0xb18] sm:$0xff] 0.0
        %555 = vst [vmem:[#allocation3 + $0xb20] sm:$0xff] 0.0
        %556 = vst [vmem:[#allocation3 + $0xb28] sm:$0xff] 0.0
        %557 = vst [vmem:[#allocation3 + $0xb30] sm:$0xff] 0.0
        %558 = vst [vmem:[#allocation3 + $0xb38] sm:$0xff] 0.0
        %559 = vst [vmem:[#allocation3 + $0xb40] sm:$0xff] 0.0
        %560 = vst [vmem:[#allocation3 + $0xb48] sm:$0xff] 0.0
        %561 = vst [vmem:[#allocation3 + $0xb50] sm:$0xff] 0.0
        %562 = vst [vmem:[#allocation3 + $0xb58] sm:$0xff] 0.0
        %563 = vst [vmem:[#allocation3 + $0xb60] sm:$0xff] 0.0
        %564 = vst [vmem:[#allocation3 + $0xb68] sm:$0xff] 0.0
        %565 = vst [vmem:[#allocation3 + $0xb70] sm:$0xff] 0.0
        %566 = vst [vmem:[#allocation3 + $0xb78] sm:$0xff] 0.0
        %567 = vst [vmem:[#allocation3 + $0xb80] sm:$0xff] 0.0
        %568 = vst [vmem:[#allocation3 + $0xb88] sm:$0xff] 0.0
        %569 = vst [vmem:[#allocation3 + $0xb90] sm:$0xff] 0.0
        %570 = vst [vmem:[#allocation3 + $0xb98] sm:$0xff] 0.0
        %571 = vst [vmem:[#allocation3 + $0xba0] sm:$0xff] 0.0
        %572 = vst [vmem:[#allocation3 + $0xba8] sm:$0xff] 0.0
        %573 = vst [vmem:[#allocation3 + $0xbb0] sm:$0xff] 0.0
        %574 = vst [vmem:[#allocation3 + $0xbb8] sm:$0xff] 0.0
        %575 = vst [vmem:[#allocation3 + $0xbc0] sm:$0xff] 0.0
        %576 = vst [vmem:[#allocation3 + $0xbc8] sm:$0xff] 0.0
        %577 = vst [vmem:[#allocation3 + $0xbd0] sm:$0xff] 0.0
        %578 = vst [vmem:[#allocation3 + $0xbd8] sm:$0xff] 0.0
        %579 = vst [vmem:[#allocation3 + $0xbe0] sm:$0xff] 0.0
        %580 = vst [vmem:[#allocation3 + $0xbe8] sm:$0xff] 0.0
        %581 = vst [vmem:[#allocation3 + $0xbf0] sm:$0xff] 0.0
        %582 = vst [vmem:[#allocation3 + $0xbf8] sm:$0xff] 0.0
        %583 = vst [vmem:[#allocation3 + $0xc00] sm:$0xff] 0.0
        %584 = vst [vmem:[#allocation3 + $0xc08] sm:$0xff] 0.0
        %585 = vst [vmem:[#allocation3 + $0xc10] sm:$0xff] 0.0
        %586 = vst [vmem:[#allocation3 + $0xc18] sm:$0xff] 0.0
        %587 = vst [vmem:[#allocation3 + $0xc20] sm:$0xff] 0.0
        %588 = vst [vmem:[#allocation3 + $0xc28] sm:$0xff] 0.0
        %589 = vst [vmem:[#allocation3 + $0xc30] sm:$0xff] 0.0
        %590 = vst [vmem:[#allocation3 + $0xc38] sm:$0xff] 0.0
        %591 = vst [vmem:[#allocation3 + $0xc40] sm:$0xff] 0.0
        %592 = vst [vmem:[#allocation3 + $0xc48] sm:$0xff] 0.0
        %593 = vst [vmem:[#allocation3 + $0xc50] sm:$0xff] 0.0
        %594 = vst [vmem:[#allocation3 + $0xc58] sm:$0xff] 0.0
        %595 = vst [vmem:[#allocation3 + $0xc60] sm:$0xff] 0.0
        %596 = vst [vmem:[#allocation3 + $0xc68] sm:$0xff] 0.0
        %597 = vst [vmem:[#allocation3 + $0xc70] sm:$0xff] 0.0
        %598 = vst [vmem:[#allocation3 + $0xc78] sm:$0xff] 0.0
        %599 = vst [vmem:[#allocation3 + $0xc80] sm:$0xff] 0.0
        %600 = vst [vmem:[#allocation3 + $0xc88] sm:$0xff] 0.0
        %601 = vst [vmem:[#allocation3 + $0xc90] sm:$0xff] 0.0
        %602 = vst [vmem:[#allocation3 + $0xc98] sm:$0xff] 0.0
        %603 = vst [vmem:[#allocation3 + $0xca0] sm:$0xff] 0.0
        %604 = vst [vmem:[#allocation3 + $0xca8] sm:$0xff] 0.0
        %605 = vst [vmem:[#allocation3 + $0xcb0] sm:$0xff] 0.0
        %606 = vst [vmem:[#allocation3 + $0xcb8] sm:$0xff] 0.0
        %607 = vst [vmem:[#allocation3 + $0xcc0] sm:$0xff] 0.0
        %608 = vst [vmem:[#allocation3 + $0xcc8] sm:$0xff] 0.0
        %609 = vst [vmem:[#allocation3 + $0xcd0] sm:$0xff] 0.0
        %610 = vst [vmem:[#allocation3 + $0xcd8] sm:$0xff] 0.0
        %611 = vst [vmem:[#allocation3 + $0xce0] sm:$0xff] 0.0
        %612 = vst [vmem:[#allocation3 + $0xce8] sm:$0xff] 0.0
        %613 = vst [vmem:[#allocation3 + $0xcf0] sm:$0xff] 0.0
        %614 = vst [vmem:[#allocation3 + $0xcf8] sm:$0xff] 0.0
        %615 = vst [vmem:[#allocation3 + $0xd00] sm:$0xff] 0.0
        %616 = vst [vmem:[#allocation3 + $0xd08] sm:$0xff] 0.0
        %617 = vst [vmem:[#allocation3 + $0xd10] sm:$0xff] 0.0
        %618 = vst [vmem:[#allocation3 + $0xd18] sm:$0xff] 0.0
        %619 = vst [vmem:[#allocation3 + $0xd20] sm:$0xff] 0.0
        %620 = vst [vmem:[#allocation3 + $0xd28] sm:$0xff] 0.0
        %621 = vst [vmem:[#allocation3 + $0xd30] sm:$0xff] 0.0
        %622 = vst [vmem:[#allocation3 + $0xd38] sm:$0xff] 0.0
        %623 = vst [vmem:[#allocation3 + $0xd40] sm:$0xff] 0.0
        %624 = vst [vmem:[#allocation3 + $0xd48] sm:$0xff] 0.0
        %625 = vst [vmem:[#allocation3 + $0xd50] sm:$0xff] 0.0
        %626 = vst [vmem:[#allocation3 + $0xd58] sm:$0xff] 0.0
        %627 = vst [vmem:[#allocation3 + $0xd60] sm:$0xff] 0.0
        %628 = vst [vmem:[#allocation3 + $0xd68] sm:$0xff] 0.0
        %629 = vst [vmem:[#allocation3 + $0xd70] sm:$0xff] 0.0
        %630 = vst [vmem:[#allocation3 + $0xd78] sm:$0xff] 0.0
        %631 = vst [vmem:[#allocation3 + $0xd80] sm:$0xff] 0.0
        %632 = vst [vmem:[#allocation3 + $0xd88] sm:$0xff] 0.0
        %633 = vst [vmem:[#allocation3 + $0xd90] sm:$0xff] 0.0
        %634 = vst [vmem:[#allocation3 + $0xd98] sm:$0xff] 0.0
        %635 = vst [vmem:[#allocation3 + $0xda0] sm:$0xff] 0.0
        %636 = vst [vmem:[#allocation3 + $0xda8] sm:$0xff] 0.0
        %637 = vst [vmem:[#allocation3 + $0xdb0] sm:$0xff] 0.0
        %638 = vst [vmem:[#allocation3 + $0xdb8] sm:$0xff] 0.0
        %639 = vst [vmem:[#allocation3 + $0xdc0] sm:$0xff] 0.0
        %640 = vst [vmem:[#allocation3 + $0xdc8] sm:$0xff] 0.0
        %641 = vst [vmem:[#allocation3 + $0xdd0] sm:$0xff] 0.0
        %642 = vst [vmem:[#allocation3 + $0xdd8] sm:$0xff] 0.0
        %643 = vst [vmem:[#allocation3 + $0xde0] sm:$0xff] 0.0
        %644 = vst [vmem:[#allocation3 + $0xde8] sm:$0xff] 0.0
        %645 = vst [vmem:[#allocation3 + $0xdf0] sm:$0xff] 0.0
        %646 = vst [vmem:[#allocation3 + $0xdf8] sm:$0xff] 0.0
      $region40: #{recurrent_block_forward.1} parent=35 // pred_fallthru
        _
      %v647 = vld [vmem:[#allocation2] sm:$0xff]
      %v648 = vld [vmem:[#allocation2 + $0x8] sm:$0xff]
      %v649 = vld [vmem:[#allocation2 + $0x10] sm:$0xff]
      %v650 = vld [vmem:[#allocation2 + $0x18] sm:$0xff]
      %v651 = vld [vmem:[#allocation2 + $0x20] sm:$0xff]
      %v652 = vld [vmem:[#allocation2 + $0x28] sm:$0xff]
      %v653 = vld [vmem:[#allocation2 + $0x30] sm:$0xff]
      %v654 = vld [vmem:[#allocation2 + $0x38] sm:$0xff]
      %v655 = vld [vmem:[#allocation2 + $0x40] sm:$0xff]
      %v656 = vld [vmem:[#allocation2 + $0x48] sm:$0xff]
      %v657 = vld [vmem:[#allocation2 + $0x50] sm:$0xff]
      %v658 = vld [vmem:[#allocation2 + $0x58] sm:$0xff]
      %v659 = vld [vmem:[#allocation2 + $0x60] sm:$0xff]
      %v660 = vld [vmem:[#allocation2 + $0x68] sm:$0xff]
      %v661 = vld [vmem:[#allocation2 + $0x70] sm:$0xff]
      %677 = vrot.lane.b32.xlu0 %v647, 111
      %v678 = vpop.permute.xlu0 %677
      %679 = vrot.lane.b32.xlu0 %v648, 111
      %v680 = vpop.permute.xlu0 %679
      %681 = vrot.lane.b32.xlu0 %v649, 111
      %v682 = vpop.permute.xlu0 %681
      %683 = vrot.lane.b32.xlu0 %v650, 111
      %v684 = vpop.permute.xlu0 %683
      %685 = vrot.lane.b32.xlu0 %v651, 111
      %v686 = vpop.permute.xlu0 %685
      %687 = vrot.lane.b32.xlu0 %v652, 111
      %v688 = vpop.permute.xlu0 %687
      %689 = vrot.lane.b32.xlu0 %v653, 111
      %v690 = vpop.permute.xlu0 %689
      %691 = vrot.lane.b32.xlu0 %v654, 111
      %v692 = vpop.permute.xlu0 %691
      %693 = vrot.lane.b32.xlu0 %v655, 111
      %v694 = vpop.permute.xlu0 %693
      %695 = vrot.lane.b32.xlu0 %v656, 111
      %v696 = vpop.permute.xlu0 %695
      %697 = vrot.lane.b32.xlu0 %v657, 111
      %v698 = vpop.permute.xlu0 %697
      %699 = vrot.lane.b32.xlu0 %v658, 111
      %v700 = vpop.permute.xlu0 %699
      %701 = vrot.lane.b32.xlu0 %v659, 111
      %v702 = vpop.permute.xlu0 %701
      %703 = vrot.lane.b32.xlu0 %v660, 111
      %v704 = vpop.permute.xlu0 %703
      %705 = vrot.lane.b32.xlu0 %v661, 111
      %v706 = vpop.permute.xlu0 %705
      %vm707 = vcmask 908288
      %v708 = vsel %vm707, %v678, %v680
      %v709 = vsel %vm707, %v680, %v682
      %v710 = vsel %vm707, %v682, %v684
      %v711 = vsel %vm707, %v684, %v686
      %v712 = vsel %vm707, %v686, %v688
      %v713 = vsel %vm707, %v688, %v690
      %v714 = vsel %vm707, %v690, %v692
      %v715 = vsel %vm707, %v692, %v694
      %v716 = vsel %vm707, %v694, %v696
      %v717 = vsel %vm707, %v696, %v698
      %v718 = vsel %vm707, %v698, %v700
      %v719 = vsel %vm707, %v700, %v702
      %v720 = vsel %vm707, %v702, %v704
      %v721 = vsel %vm707, %v704, %v706
      %736 = vst [vmem:[#allocation3] sm:$0xff] %v708
      %737 = vst [vmem:[#allocation3 + $0x8] sm:$0xff] %v709
      %738 = vst [vmem:[#allocation3 + $0x10] sm:$0xff] %v710
      %739 = vst [vmem:[#allocation3 + $0x18] sm:$0xff] %v711
      %740 = vst [vmem:[#allocation3 + $0x20] sm:$0xff] %v712
      %741 = vst [vmem:[#allocation3 + $0x28] sm:$0xff] %v713
      %742 = vst [vmem:[#allocation3 + $0x30] sm:$0xff] %v714
      %743 = vst [vmem:[#allocation3 + $0x38] sm:$0xff] %v715
      %744 = vst [vmem:[#allocation3 + $0x40] sm:$0xff] %v716
      %745 = vst [vmem:[#allocation3 + $0x48] sm:$0xff] %v717
      %746 = vst [vmem:[#allocation3 + $0x50] sm:$0xff] %v718
      %747 = vst [vmem:[#allocation3 + $0x58] sm:$0xff] %v719
      %748 = vst [vmem:[#allocation3 + $0x60] sm:$0xff] %v720
      %749 = vst [vmem:[#allocation3 + $0x68] sm:$0xff] %v721
      %v750 = vld [vmem:[#allocation2] sm:$0xff]
      %v751 = vld [vmem:[#allocation2 + $0x8] sm:$0xff]
      %v752 = vld [vmem:[#allocation2 + $0x10] sm:$0xff]
      %v753 = vld [vmem:[#allocation2 + $0x18] sm:$0xff]
      %v754 = vld [vmem:[#allocation2 + $0x20] sm:$0xff]
      %v755 = vld [vmem:[#allocation2 + $0x28] sm:$0xff]
      %v756 = vld [vmem:[#allocation2 + $0x30] sm:$0xff]
      %v757 = vld [vmem:[#allocation2 + $0x38] sm:$0xff]
      %v758 = vld [vmem:[#allocation2 + $0x40] sm:$0xff]
      %v759 = vld [vmem:[#allocation2 + $0x48] sm:$0xff]
      %v760 = vld [vmem:[#allocation2 + $0x50] sm:$0xff]
      %v761 = vld [vmem:[#allocation2 + $0x58] sm:$0xff]
      %v762 = vld [vmem:[#allocation2 + $0x60] sm:$0xff]
      %v763 = vld [vmem:[#allocation2 + $0x68] sm:$0xff]
      %v764 = vld [vmem:[#allocation2 + $0x70] sm:$0xff]
      %780 = vrot.lane.b32.xlu0 %v750, 110
      %v781 = vpop.permute.xlu0 %780
      %782 = vrot.lane.b32.xlu0 %v751, 110
      %v783 = vpop.permute.xlu0 %782
      %784 = vrot.lane.b32.xlu0 %v752, 110
      %v785 = vpop.permute.xlu0 %784
      %786 = vrot.lane.b32.xlu0 %v753, 110
      %v787 = vpop.permute.xlu0 %786
      %788 = vrot.lane.b32.xlu0 %v754, 110
      %v789 = vpop.permute.xlu0 %788
      %790 = vrot.lane.b32.xlu0 %v755, 110
      %v791 = vpop.permute.xlu0 %790
      %792 = vrot.lane.b32.xlu0 %v756, 110
      %v793 = vpop.permute.xlu0 %792
      %794 = vrot.lane.b32.xlu0 %v757, 110
      %v795 = vpop.permute.xlu0 %794
      %796 = vrot.lane.b32.xlu0 %v758, 110
      %v797 = vpop.permute.xlu0 %796
      %798 = vrot.lane.b32.xlu0 %v759, 110
      %v799 = vpop.permute.xlu0 %798
      %800 = vrot.lane.b32.xlu0 %v760, 110
      %v801 = vpop.permute.xlu0 %800
      %802 = vrot.lane.b32.xlu0 %v761, 110
      %v803 = vpop.permute.xlu0 %802
      %804 = vrot.lane.b32.xlu0 %v762, 110
      %v805 = vpop.permute.xlu0 %804
      %806 = vrot.lane.b32.xlu0 %v763, 110
      %v807 = vpop.permute.xlu0 %806
      %808 = vrot.lane.b32.xlu0 %v764, 110
      %v809 = vpop.permute.xlu0 %808
      %vm810 = vcmask 900096
      %v811 = vsel %vm810, %v781, %v783
      %v812 = vsel %vm810, %v783, %v785
      %v813 = vsel %vm810, %v785, %v787
      %v814 = vsel %vm810, %v787, %v789
      %v815 = vsel %vm810, %v789, %v791
      %v816 = vsel %vm810, %v791, %v793
      %v817 = vsel %vm810, %v793, %v795
      %v818 = vsel %vm810, %v795, %v797
      %v819 = vsel %vm810, %v797, %v799
      %v820 = vsel %vm810, %v799, %v801
      %v821 = vsel %vm810, %v801, %v803
      %v822 = vsel %vm810, %v803, %v805
      %v823 = vsel %vm810, %v805, %v807
      %v824 = vsel %vm810, %v807, %v809
      %839 = vst [vmem:[#allocation3 + $0x70] sm:$0xff] %v811
      %840 = vst [vmem:[#allocation3 + $0x78] sm:$0xff] %v812
      %841 = vst [vmem:[#allocation3 + $0x80] sm:$0xff] %v813
      %842 = vst [vmem:[#allocation3 + $0x88] sm:$0xff] %v814
      %843 = vst [vmem:[#allocation3 + $0x90] sm:$0xff] %v815
      %844 = vst [vmem:[#allocation3 + $0x98] sm:$0xff] %v816
      %845 = vst [vmem:[#allocation3 + $0xa0] sm:$0xff] %v817
      %846 = vst [vmem:[#allocation3 + $0xa8] sm:$0xff] %v818
      %847 = vst [vmem:[#allocation3 + $0xb0] sm:$0xff] %v819
      %848 = vst [vmem:[#allocation3 + $0xb8] sm:$0xff] %v820
      %849 = vst [vmem:[#allocation3 + $0xc0] sm:$0xff] %v821
      %850 = vst [vmem:[#allocation3 + $0xc8] sm:$0xff] %v822
      %851 = vst [vmem:[#allocation3 + $0xd0] sm:$0xff] %v823
      %852 = vst [vmem:[#allocation3 + $0xd8] sm:$0xff] %v824
      %v853 = vld [vmem:[#allocation2] sm:$0xff]
      %v854 = vld [vmem:[#allocation2 + $0x8] sm:$0xff]
      %v855 = vld [vmem:[#allocation2 + $0x10] sm:$0xff]
      %v856 = vld [vmem:[#allocation2 + $0x18] sm:$0xff]
      %v857 = vld [vmem:[#allocation2 + $0x20] sm:$0xff]
      %v858 = vld [vmem:[#allocation2 + $0x28] sm:$0xff]
      %v859 = vld [vmem:[#allocation2 + $0x30] sm:$0xff]
      %v860 = vld [vmem:[#allocation2 + $0x38] sm:$0xff]
      %v861 = vld [vmem:[#allocation2 + $0x40] sm:$0xff]
      %v862 = vld [vmem:[#allocation2 + $0x48] sm:$0xff]
      %v863 = vld [vmem:[#allocation2 + $0x50] sm:$0xff]
      %v864 = vld [vmem:[#allocation2 + $0x58] sm:$0xff]
      %v865 = vld [vmem:[#allocation2 + $0x60] sm:$0xff]
      %v866 = vld [vmem:[#allocation2 + $0x68] sm:$0xff]
      %v867 = vld [vmem:[#allocation2 + $0x70] sm:$0xff]
      %883 = vrot.lane.b32.xlu0 %v853, 109
      %v884 = vpop.permute.xlu0 %883
      %885 = vrot.lane.b32.xlu0 %v854, 109
      %v886 = vpop.permute.xlu0 %885
      %887 = vrot.lane.b32.xlu0 %v855, 109
      %v888 = vpop.permute.xlu0 %887
      %889 = vrot.lane.b32.xlu0 %v856, 109
      %v890 = vpop.permute.xlu0 %889
      %891 = vrot.lane.b32.xlu0 %v857, 109
      %v892 = vpop.permute.xlu0 %891
      %893 = vrot.lane.b32.xlu0 %v858, 109
      %v894 = vpop.permute.xlu0 %893
      %895 = vrot.lane.b32.xlu0 %v859, 109
      %v896 = vpop.permute.xlu0 %895
      %897 = vrot.lane.b32.xlu0 %v860, 109
      %v898 = vpop.permute.xlu0 %897
      %899 = vrot.lane.b32.xlu0 %v861, 109
      %v900 = vpop.permute.xlu0 %899
      %901 = vrot.lane.b32.xlu0 %v862, 109
      %v902 = vpop.permute.xlu0 %901
      %903 = vrot.lane.b32.xlu0 %v863, 109
      %v904 = vpop.permute.xlu0 %903
      %905 = vrot.lane.b32.xlu0 %v864, 109
      %v906 = vpop.permute.xlu0 %905
      %907 = vrot.lane.b32.xlu0 %v865, 109
      %v908 = vpop.permute.xlu0 %907
      %909 = vrot.lane.b32.xlu0 %v866, 109
      %v910 = vpop.permute.xlu0 %909
      %911 = vrot.lane.b32.xlu0 %v867, 109
      %v912 = vpop.permute.xlu0 %911
      %vm913 = vcmask 891904
      %v914 = vsel %vm913, %v884, %v886
      %v915 = vsel %vm913, %v886, %v888
      %v916 = vsel %vm913, %v888, %v890
      %v917 = vsel %vm913, %v890, %v892
      %v918 = vsel %vm913, %v892, %v894
      %v919 = vsel %vm913, %v894, %v896
      %v920 = vsel %vm913, %v896, %v898
      %v921 = vsel %vm913, %v898, %v900
      %v922 = vsel %vm913, %v900, %v902
      %v923 = vsel %vm913, %v902, %v904
      %v924 = vsel %vm913, %v904, %v906
      %v925 = vsel %vm913, %v906, %v908
      %v926 = vsel %vm913, %v908, %v910
      %v927 = vsel %vm913, %v910, %v912
      %942 = vst [vmem:[#allocation3 + $0xe0] sm:$0xff] %v914
      %943 = vst [vmem:[#allocation3 + $0xe8] sm:$0xff] %v915
      %944 = vst [vmem:[#allocation3 + $0xf0] sm:$0xff] %v916
      %945 = vst [vmem:[#allocation3 + $0xf8] sm:$0xff] %v917
      %946 = vst [vmem:[#allocation3 + $0x100] sm:$0xff] %v918
      %947 = vst [vmem:[#allocation3 + $0x108] sm:$0xff] %v919
      %948 = vst [vmem:[#allocation3 + $0x110] sm:$0xff] %v920
      %949 = vst [vmem:[#allocation3 + $0x118] sm:$0xff] %v921
      %950 = vst [vmem:[#allocation3 + $0x120] sm:$0xff] %v922
      %951 = vst [vmem:[#allocation3 + $0x128] sm:$0xff] %v923
      %952 = vst [vmem:[#allocation3 + $0x130] sm:$0xff] %v924
      %953 = vst [vmem:[#allocation3 + $0x138] sm:$0xff] %v925
      %954 = vst [vmem:[#allocation3 + $0x140] sm:$0xff] %v926
      %955 = vst [vmem:[#allocation3 + $0x148] sm:$0xff] %v927
      %v956 = vld [vmem:[#allocation2] sm:$0xff]
      %v957 = vld [vmem:[#allocation2 + $0x8] sm:$0xff]
      %v958 = vld [vmem:[#allocation2 + $0x10] sm:$0xff]
      %v959 = vld [vmem:[#allocation2 + $0x18] sm:$0xff]
      %v960 = vld [vmem:[#allocation2 + $0x20] sm:$0xff]
      %v961 = vld [vmem:[#allocation2 + $0x28] sm:$0xff]
      %v962 = vld [vmem:[#allocation2 + $0x30] sm:$0xff]
      %v963 = vld [vmem:[#allocation2 + $0x38] sm:$0xff]
      %v964 = vld [vmem:[#allocation2 + $0x40] sm:$0xff]
      %v965 = vld [vmem:[#allocation2 + $0x48] sm:$0xff]
      %v966 = vld [vmem:[#allocation2 + $0x50] sm:$0xff]
      %v967 = vld [vmem:[#allocation2 + $0x58] sm:$0xff]
      %v968 = vld [vmem:[#allocation2 + $0x60] sm:$0xff]
      %v969 = vld [vmem:[#allocation2 + $0x68] sm:$0xff]
      %v970 = vld [vmem:[#allocation2 + $0x70] sm:$0xff]
      %986 = vrot.lane.b32.xlu0 %v956, 101
      %v987 = vpop.permute.xlu0 %986
      %988 = vrot.lane.b32.xlu0 %v957, 101
      %v989 = vpop.permute.xlu0 %988
      %990 = vrot.lane.b32.xlu0 %v958, 101
      %v991 = vpop.permute.xlu0 %990
      %992 = vrot.lane.b32.xlu0 %v959, 101
      %v993 = vpop.permute.xlu0 %992
      %994 = vrot.lane.b32.xlu0 %v960, 101
      %v995 = vpop.permute.xlu0 %994
      %996 = vrot.lane.b32.xlu0 %v961, 101
      %v997 = vpop.permute.xlu0 %996
      %998 = vrot.lane.b32.xlu0 %v962, 101
      %v999 = vpop.permute.xlu0 %998
      %1000 = vrot.lane.b32.xlu0 %v963, 101
      %v1001 = vpop.permute.xlu0 %1000
      %1002 = vrot.lane.b32.xlu0 %v964, 101
      %v1003 = vpop.permute.xlu0 %1002
      %1004 = vrot.lane.b32.xlu0 %v965, 101
      %v1005 = vpop.permute.xlu0 %1004
      %1006 = vrot.lane.b32.xlu0 %v966, 101
      %v1007 = vpop.permute.xlu0 %1006
      %1008 = vrot.lane.b32.xlu0 %v967, 101
      %v1009 = vpop.permute.xlu0 %1008
      %1010 = vrot.lane.b32.xlu0 %v968, 101
      %v1011 = vpop.permute.xlu0 %1010
      %1012 = vrot.lane.b32.xlu0 %v969, 101
      %v1013 = vpop.permute.xlu0 %1012
      %1014 = vrot.lane.b32.xlu0 %v970, 101
      %v1015 = vpop.permute.xlu0 %1014
      %vm1016 = vcmask 826368
      %v1017 = vsel %vm1016, %v987, %v989
      %v1018 = vsel %vm1016, %v989, %v991
      %v1019 = vsel %vm1016, %v991, %v993
      %v1020 = vsel %vm1016, %v993, %v995
      %v1021 = vsel %vm1016, %v995, %v997
      %v1022 = vsel %vm1016, %v997, %v999
      %v1023 = vsel %vm1016, %v999, %v1001
      %v1024 = vsel %vm1016, %v1001, %v1003
      %v1025 = vsel %vm1016, %v1003, %v1005
      %v1026 = vsel %vm1016, %v1005, %v1007
      %v1027 = vsel %vm1016, %v1007, %v1009
      %v1028 = vsel %vm1016, %v1009, %v1011
      %v1029 = vsel %vm1016, %v1011, %v1013
      %v1030 = vsel %vm1016, %v1013, %v1015
      %1045 = vst [vmem:[#allocation3 + $0x150] sm:$0xff] %v1017
      %1046 = vst [vmem:[#allocation3 + $0x158] sm:$0xff] %v1018
      %1047 = vst [vmem:[#allocation3 + $0x160] sm:$0xff] %v1019
      %1048 = vst [vmem:[#allocation3 + $0x168] sm:$0xff] %v1020
      %1049 = vst [vmem:[#allocation3 + $0x170] sm:$0xff] %v1021
      %1050 = vst [vmem:[#allocation3 + $0x178] sm:$0xff] %v1022
      %1051 = vst [vmem:[#allocation3 + $0x180] sm:$0xff] %v1023
      %1052 = vst [vmem:[#allocation3 + $0x188] sm:$0xff] %v1024
      %1053 = vst [vmem:[#allocation3 + $0x190] sm:$0xff] %v1025
      %1054 = vst [vmem:[#allocation3 + $0x198] sm:$0xff] %v1026
      %1055 = vst [vmem:[#allocation3 + $0x1a0] sm:$0xff] %v1027
      %1056 = vst [vmem:[#allocation3 + $0x1a8] sm:$0xff] %v1028
      %1057 = vst [vmem:[#allocation3 + $0x1b0] sm:$0xff] %v1029
      %1058 = vst [vmem:[#allocation3 + $0x1b8] sm:$0xff] %v1030
      %v1059 = vld [vmem:[#allocation2] sm:$0xff]
      %v1060 = vld [vmem:[#allocation2 + $0x8] sm:$0xff]
      %v1061 = vld [vmem:[#allocation2 + $0x10] sm:$0xff]
      %v1062 = vld [vmem:[#allocation2 + $0x18] sm:$0xff]
      %v1063 = vld [vmem:[#allocation2 + $0x20] sm:$0xff]
      %v1064 = vld [vmem:[#allocation2 + $0x28] sm:$0xff]
      %v1065 = vld [vmem:[#allocation2 + $0x30] sm:$0xff]
      %v1066 = vld [vmem:[#allocation2 + $0x38] sm:$0xff]
      %v1067 = vld [vmem:[#allocation2 + $0x40] sm:$0xff]
      %v1068 = vld [vmem:[#allocation2 + $0x48] sm:$0xff]
      %v1069 = vld [vmem:[#allocation2 + $0x50] sm:$0xff]
      %v1070 = vld [vmem:[#allocation2 + $0x58] sm:$0xff]
      %v1071 = vld [vmem:[#allocation2 + $0x60] sm:$0xff]
      %v1072 = vld [vmem:[#allocation2 + $0x68] sm:$0xff]
      %v1073 = vld [vmem:[#allocation2 + $0x70] sm:$0xff]
      %1089 = vrot.lane.b32.xlu0 %v1059, 100
      %v1090 = vpop.permute.xlu0 %1089
      %1091 = vrot.lane.b32.xlu0 %v1060, 100
      %v1092 = vpop.permute.xlu0 %1091
      %1093 = vrot.lane.b32.xlu0 %v1061, 100
      %v1094 = vpop.permute.xlu0 %1093
      %1095 = vrot.lane.b32.xlu0 %v1062, 100
      %v1096 = vpop.permute.xlu0 %1095
      %1097 = vrot.lane.b32.xlu0 %v1063, 100
      %v1098 = vpop.permute.xlu0 %1097
      %1099 = vrot.lane.b32.xlu0 %v1064, 100
      %v1100 = vpop.permute.xlu0 %1099
      %1101 = vrot.lane.b32.xlu0 %v1065, 100
      %v1102 = vpop.permute.xlu0 %1101
      %1103 = vrot.lane.b32.xlu0 %v1066, 100
      %v1104 = vpop.permute.xlu0 %1103
      %1105 = vrot.lane.b32.xlu0 %v1067, 100
      %v1106 = vpop.permute.xlu0 %1105
      %1107 = vrot.lane.b32.xlu0 %v1068, 100
      %v1108 = vpop.permute.xlu0 %1107
      %1109 = vrot.lane.b32.xlu0 %v1069, 100
      %v1110 = vpop.permute.xlu0 %1109
      %1111 = vrot.lane.b32.xlu0 %v1070, 100
      %v1112 = vpop.permute.xlu0 %1111
      %1113 = vrot.lane.b32.xlu0 %v1071, 100
      %v1114 = vpop.permute.xlu0 %1113
      %1115 = vrot.lane.b32.xlu0 %v1072, 100
      %v1116 = vpop.permute.xlu0 %1115
      %1117 = vrot.lane.b32.xlu0 %v1073, 100
      %v1118 = vpop.permute.xlu0 %1117
      %vm1119 = vcmask 818176
      %v1120 = vsel %vm1119, %v1090, %v1092
      %v1121 = vsel %vm1119, %v1092, %v1094
      %v1122 = vsel %vm1119, %v1094, %v1096
      %v1123 = vsel %vm1119, %v1096, %v1098
      %v1124 = vsel %vm1119, %v1098, %v1100
      %v1125 = vsel %vm1119, %v1100, %v1102
      %v1126 = vsel %vm1119, %v1102, %v1104
      %v1127 = vsel %vm1119, %v1104, %v1106
      %v1128 = vsel %vm1119, %v1106, %v1108
      %v1129 = vsel %vm1119, %v1108, %v1110
      %v1130 = vsel %vm1119, %v1110, %v1112
      %v1131 = vsel %vm1119, %v1112, %v1114
      %v1132 = vsel %vm1119, %v1114, %v1116
      %v1133 = vsel %vm1119, %v1116, %v1118
      %1148 = vst [vmem:[#allocation3 + $0x1c0] sm:$0xff] %v1120
      %1149 = vst [vmem:[#allocation3 + $0x1c8] sm:$0xff] %v1121
      %1150 = vst [vmem:[#allocation3 + $0x1d0] sm:$0xff] %v1122
      %1151 = vst [vmem:[#allocation3 + $0x1d8] sm:$0xff] %v1123
      %1152 = vst [vmem:[#allocation3 + $0x1e0] sm:$0xff] %v1124
      %1153 = vst [vmem:[#allocation3 + $0x1e8] sm:$0xff] %v1125
      %1154 = vst [vmem:[#allocation3 + $0x1f0] sm:$0xff] %v1126
      %1155 = vst [vmem:[#allocation3 + $0x1f8] sm:$0xff] %v1127
      %1156 = vst [vmem:[#allocation3 + $0x200] sm:$0xff] %v1128
      %1157 = vst [vmem:[#allocation3 + $0x208] sm:$0xff] %v1129
      %1158 = vst [vmem:[#allocation3 + $0x210] sm:$0xff] %v1130
      %1159 = vst [vmem:[#allocation3 + $0x218] sm:$0xff] %v1131
      %1160 = vst [vmem:[#allocation3 + $0x220] sm:$0xff] %v1132
      %1161 = vst [vmem:[#allocation3 + $0x228] sm:$0xff] %v1133
      %v1162 = vld [vmem:[#allocation2] sm:$0xff]
      %v1163 = vld [vmem:[#allocation2 + $0x8] sm:$0xff]
      %v1164 = vld [vmem:[#allocation2 + $0x10] sm:$0xff]
      %v1165 = vld [vmem:[#allocation2 + $0x18] sm:$0xff]
      %v1166 = vld [vmem:[#allocation2 + $0x20] sm:$0xff]
      %v1167 = vld [vmem:[#allocation2 + $0x28] sm:$0xff]
      %v1168 = vld [vmem:[#allocation2 + $0x30] sm:$0xff]
      %v1169 = vld [vmem:[#allocation2 + $0x38] sm:$0xff]
      %v1170 = vld [vmem:[#allocation2 + $0x40] sm:$0xff]
      %v1171 = vld [vmem:[#allocation2 + $0x48] sm:$0xff]
      %v1172 = vld [vmem:[#allocation2 + $0x50] sm:$0xff]
      %v1173 = vld [vmem:[#allocation2 + $0x58] sm:$0xff]
      %v1174 = vld [vmem:[#allocation2 + $0x60] sm:$0xff]
      %v1175 = vld [vmem:[#allocation2 + $0x68] sm:$0xff]
      %v1176 = vld [vmem:[#allocation2 + $0x70] sm:$0xff]
      %1192 = vrot.lane.b32.xlu0 %v1162, 99
      %v1193 = vpop.permute.xlu0 %1192
      %1194 = vrot.lane.b32.xlu0 %v1163, 99
      %v1195 = vpop.permute.xlu0 %1194
      %1196 = vrot.lane.b32.xlu0 %v1164, 99
      %v1197 = vpop.permute.xlu0 %1196
      %1198 = vrot.lane.b32.xlu0 %v1165, 99
      %v1199 = vpop.permute.xlu0 %1198
      %1200 = vrot.lane.b32.xlu0 %v1166, 99
      %v1201 = vpop.permute.xlu0 %1200
      %1202 = vrot.lane.b32.xlu0 %v1167, 99
      %v1203 = vpop.permute.xlu0 %1202
      %1204 = vrot.lane.b32.xlu0 %v1168, 99
      %v1205 = vpop.permute.xlu0 %1204
      %1206 = vrot.lane.b32.xlu0 %v1169, 99
      %v1207 = vpop.permute.xlu0 %1206
      %1208 = vrot.lane.b32.xlu0 %v1170, 99
      %v1209 = vpop.permute.xlu0 %1208
      %1210 = vrot.lane.b32.xlu0 %v1171, 99
      %v1211 = vpop.permute.xlu0 %1210
      %1212 = vrot.lane.b32.xlu0 %v1172, 99
      %v1213 = vpop.permute.xlu0 %1212
      %1214 = vrot.lane.b32.xlu0 %v1173, 99
      %v1215 = vpop.permute.xlu0 %1214
      %1216 = vrot.lane.b32.xlu0 %v1174, 99
      %v1217 = vpop.permute.xlu0 %1216
      %1218 = vrot.lane.b32.xlu0 %v1175, 99
      %v1219 = vpop.permute.xlu0 %1218
      %1220 = vrot.lane.b32.xlu0 %v1176, 99
      %v1221 = vpop.permute.xlu0 %1220
      %vm1222 = vcmask 809984
      %v1223 = vsel %vm1222, %v1193, %v1195
      %v1224 = vsel %vm1222, %v1195, %v1197
      %v1225 = vsel %vm1222, %v1197, %v1199
      %v1226 = vsel %vm1222, %v1199, %v1201
      %v1227 = vsel %vm1222, %v1201, %v1203
      %v1228 = vsel %vm1222, %v1203, %v1205
      %v1229 = vsel %vm1222, %v1205, %v1207
      %v1230 = vsel %vm1222, %v1207, %v1209
      %v1231 = vsel %vm1222, %v1209, %v1211
      %v1232 = vsel %vm1222, %v1211, %v1213
      %v1233 = vsel %vm1222, %v1213, %v1215
      %v1234 = vsel %vm1222, %v1215, %v1217
      %v1235 = vsel %vm1222, %v1217, %v1219
      %v1236 = vsel %vm1222, %v1219, %v1221
      %1251 = vst [vmem:[#allocation3 + $0x230] sm:$0xff] %v1223
      %1252 = vst [vmem:[#allocation3 + $0x238] sm:$0xff] %v1224
      %1253 = vst [vmem:[#allocation3 + $0x240] sm:$0xff] %v1225
      %1254 = vst [vmem:[#allocation3 + $0x248] sm:$0xff] %v1226
      %1255 = vst [vmem:[#allocation3 + $0x250] sm:$0xff] %v1227
      %1256 = vst [vmem:[#allocation3 + $0x258] sm:$0xff] %v1228
      %1257 = vst [vmem:[#allocation3 + $0x260] sm:$0xff] %v1229
      %1258 = vst [vmem:[#allocation3 + $0x268] sm:$0xff] %v1230
      %1259 = vst [vmem:[#allocation3 + $0x270] sm:$0xff] %v1231
      %1260 = vst [vmem:[#allocation3 + $0x278] sm:$0xff] %v1232
      %1261 = vst [vmem:[#allocation3 + $0x280] sm:$0xff] %v1233
      %1262 = vst [vmem:[#allocation3 + $0x288] sm:$0xff] %v1234
      %1263 = vst [vmem:[#allocation3 + $0x290] sm:$0xff] %v1235
      %1264 = vst [vmem:[#allocation3 + $0x298] sm:$0xff] %v1236
      %v1265 = vld [vmem:[#allocation2] sm:$0xff]
      %v1266 = vld [vmem:[#allocation2 + $0x8] sm:$0xff]
      %v1267 = vld [vmem:[#allocation2 + $0x10] sm:$0xff]
      %v1268 = vld [vmem:[#allocation2 + $0x18] sm:$0xff]
      %v1269 = vld [vmem:[#allocation2 + $0x20] sm:$0xff]
      %v1270 = vld [vmem:[#allocation2 + $0x28] sm:$0xff]
      %v1271 = vld [vmem:[#allocation2 + $0x30] sm:$0xff]
      %v1272 = vld [vmem:[#allocation2 + $0x38] sm:$0xff]
      %v1273 = vld [vmem:[#allocation2 + $0x40] sm:$0xff]
      %v1274 = vld [vmem:[#allocation2 + $0x48] sm:$0xff]
      %v1275 = vld [vmem:[#allocation2 + $0x50] sm:$0xff]
      %v1276 = vld [vmem:[#allocation2 + $0x58] sm:$0xff]
      %v1277 = vld [vmem:[#allocation2 + $0x60] sm:$0xff]
      %v1278 = vld [vmem:[#allocation2 + $0x68] sm:$0xff]
      %v1279 = vld [vmem:[#allocation2 + $0x70] sm:$0xff]
      %1295 = vrot.lane.b32.xlu0 %v1265, 91
      %v1296 = vpop.permute.xlu0 %1295
      %1297 = vrot.lane.b32.xlu0 %v1266, 91
      %v1298 = vpop.permute.xlu0 %1297
      %1299 = vrot.lane.b32.xlu0 %v1267, 91
      %v1300 = vpop.permute.xlu0 %1299
      %1301 = vrot.lane.b32.xlu0 %v1268, 91
      %v1302 = vpop.permute.xlu0 %1301
      %1303 = vrot.lane.b32.xlu0 %v1269, 91
      %v1304 = vpop.permute.xlu0 %1303
      %1305 = vrot.lane.b32.xlu0 %v1270, 91
      %v1306 = vpop.permute.xlu0 %1305
      %1307 = vrot.lane.b32.xlu0 %v1271, 91
      %v1308 = vpop.permute.xlu0 %1307
      %1309 = vrot.lane.b32.xlu0 %v1272, 91
      %v1310 = vpop.permute.xlu0 %1309
      %1311 = vrot.lane.b32.xlu0 %v1273, 91
      %v1312 = vpop.permute.xlu0 %1311
      %1313 = vrot.lane.b32.xlu0 %v1274, 91
      %v1314 = vpop.permute.xlu0 %1313
      %1315 = vrot.lane.b32.xlu0 %v1275, 91
      %v1316 = vpop.permute.xlu0 %1315
      %1317 = vrot.lane.b32.xlu0 %v1276, 91
      %v1318 = vpop.permute.xlu0 %1317
      %1319 = vrot.lane.b32.xlu0 %v1277, 91
      %v1320 = vpop.permute.xlu0 %1319
      %1321 = vrot.lane.b32.xlu0 %v1278, 91
      %v1322 = vpop.permute.xlu0 %1321
      %1323 = vrot.lane.b32.xlu0 %v1279, 91
      %v1324 = vpop.permute.xlu0 %1323
      %vm1325 = vcmask 744448
      %v1326 = vsel %vm1325, %v1296, %v1298
      %v1327 = vsel %vm1325, %v1298, %v1300
      %v1328 = vsel %vm1325, %v1300, %v1302
      %v1329 = vsel %vm1325, %v1302, %v1304
      %v1330 = vsel %vm1325, %v1304, %v1306
      %v1331 = vsel %vm1325, %v1306, %v1308
      %v1332 = vsel %vm1325, %v1308, %v1310
      %v1333 = vsel %vm1325, %v1310, %v1312
      %v1334 = vsel %vm1325, %v1312, %v1314
      %v1335 = vsel %vm1325, %v1314, %v1316
      %v1336 = vsel %vm1325, %v1316, %v1318
      %v1337 = vsel %vm1325, %v1318, %v1320
      %v1338 = vsel %vm1325, %v1320, %v1322
      %v1339 = vsel %vm1325, %v1322, %v1324
      %1354 = vst [vmem:[#allocation3 + $0x2a0] sm:$0xff] %v1326
      %1355 = vst [vmem:[#allocation3 + $0x2a8] sm:$0xff] %v1327
      %1356 = vst [vmem:[#allocation3 + $0x2b0] sm:$0xff] %v1328
      %1357 = vst [vmem:[#allocation3 + $0x2b8] sm:$0xff] %v1329
      %1358 = vst [vmem:[#allocation3 + $0x2c0] sm:$0xff] %v1330
      %1359 = vst [vmem:[#allocation3 + $0x2c8] sm:$0xff] %v1331
      %1360 = vst [vmem:[#allocation3 + $0x2d0] sm:$0xff] %v1332
      %1361 = vst [vmem:[#allocation3 + $0x2d8] sm:$0xff] %v1333
      %1362 = vst [vmem:[#allocation3 + $0x2e0] sm:$0xff] %v1334
      %1363 = vst [vmem:[#allocation3 + $0x2e8] sm:$0xff] %v1335
      %1364 = vst [vmem:[#allocation3 + $0x2f0] sm:$0xff] %v1336
      %1365 = vst [vmem:[#allocation3 + $0x2f8] sm:$0xff] %v1337
      %1366 = vst [vmem:[#allocation3 + $0x300] sm:$0xff] %v1338
      %1367 = vst [vmem:[#allocation3 + $0x308] sm:$0xff] %v1339
      %v1368 = vld [vmem:[#allocation2] sm:$0xff]
      %v1369 = vld [vmem:[#allocation2 + $0x8] sm:$0xff]
      %v1370 = vld [vmem:[#allocation2 + $0x10] sm:$0xff]
      %v1371 = vld [vmem:[#allocation2 + $0x18] sm:$0xff]
      %v1372 = vld [vmem:[#allocation2 + $0x20] sm:$0xff]
      %v1373 = vld [vmem:[#allocation2 + $0x28] sm:$0xff]
      %v1374 = vld [vmem:[#allocation2 + $0x30] sm:$0xff]
      %v1375 = vld [vmem:[#allocation2 + $0x38] sm:$0xff]
      %v1376 = vld [vmem:[#allocation2 + $0x40] sm:$0xff]
      %v1377 = vld [vmem:[#allocation2 + $0x48] sm:$0xff]
      %v1378 = vld [vmem:[#allocation2 + $0x50] sm:$0xff]
      %v1379 = vld [vmem:[#allocation2 + $0x58] sm:$0xff]
      %v1380 = vld [vmem:[#allocation2 + $0x60] sm:$0xff]
      %v1381 = vld [vmem:[#allocation2 + $0x68] sm:$0xff]
      %v1382 = vld [vmem:[#allocation2 + $0x70] sm:$0xff]
      %1398 = vrot.lane.b32.xlu0 %v1368, 90
      %v1399 = vpop.permute.xlu0 %1398
      %1400 = vrot.lane.b32.xlu0 %v1369, 90
      %v1401 = vpop.permute.xlu0 %1400
      %1402 = vrot.lane.b32.xlu0 %v1370, 90
      %v1403 = vpop.permute.xlu0 %1402
      %1404 = vrot.lane.b32.xlu0 %v1371, 90
      %v1405 = vpop.permute.xlu0 %1404
      %1406 = vrot.lane.b32.xlu0 %v1372, 90
      %v1407 = vpop.permute.xlu0 %1406
      %1408 = vrot.lane.b32.xlu0 %v1373, 90
      %v1409 = vpop.permute.xlu0 %1408
      %1410 = vrot.lane.b32.xlu0 %v1374, 90
      %v1411 = vpop.permute.xlu0 %1410
      %1412 = vrot.lane.b32.xlu0 %v1375, 90
      %v1413 = vpop.permute.xlu0 %1412
      %1414 = vrot.lane.b32.xlu0 %v1376, 90
      %v1415 = vpop.permute.xlu0 %1414
      %1416 = vrot.lane.b32.xlu0 %v1377, 90
      %v1417 = vpop.permute.xlu0 %1416
      %1418 = vrot.lane.b32.xlu0 %v1378, 90
      %v1419 = vpop.permute.xlu0 %1418
      %1420 = vrot.lane.b32.xlu0 %v1379, 90
      %v1421 = vpop.permute.xlu0 %1420
      %1422 = vrot.lane.b32.xlu0 %v1380, 90
      %v1423 = vpop.permute.xlu0 %1422
      %1424 = vrot.lane.b32.xlu0 %v1381, 90
      %v1425 = vpop.permute.xlu0 %1424
      %1426 = vrot.lane.b32.xlu0 %v1382, 90
      %v1427 = vpop.permute.xlu0 %1426
      %vm1428 = vcmask 736256
      %v1429 = vsel %vm1428, %v1399, %v1401
      %v1430 = vsel %vm1428, %v1401, %v1403
      %v1431 = vsel %vm1428, %v1403, %v1405
      %v1432 = vsel %vm1428, %v1405, %v1407
      %v1433 = vsel %vm1428, %v1407, %v1409
      %v1434 = vsel %vm1428, %v1409, %v1411
      %v1435 = vsel %vm1428, %v1411, %v1413
      %v1436 = vsel %vm1428, %v1413, %v1415
      %v1437 = vsel %vm1428, %v1415, %v1417
      %v1438 = vsel %vm1428, %v1417, %v1419
      %v1439 = vsel %vm1428, %v1419, %v1421
      %v1440 = vsel %vm1428, %v1421, %v1423
      %v1441 = vsel %vm1428, %v1423, %v1425
      %v1442 = vsel %vm1428, %v1425, %v1427
      %1457 = vst [vmem:[#allocation3 + $0x310] sm:$0xff] %v1429
      %1458 = vst [vmem:[#allocation3 + $0x318] sm:$0xff] %v1430
      %1459 = vst [vmem:[#allocation3 + $0x320] sm:$0xff] %v1431
      %1460 = vst [vmem:[#allocation3 + $0x328] sm:$0xff] %v1432
      %1461 = vst [vmem:[#allocation3 + $0x330] sm:$0xff] %v1433
      %1462 = vst [vmem:[#allocation3 + $0x338] sm:$0xff] %v1434
      %1463 = vst [vmem:[#allocation3 + $0x340] sm:$0xff] %v1435
      %1464 = vst [vmem:[#allocation3 + $0x348] sm:$0xff] %v1436
      %1465 = vst [vmem:[#allocation3 + $0x350] sm:$0xff] %v1437
      %1466 = vst [vmem:[#allocation3 + $0x358] sm:$0xff] %v1438
      %1467 = vst [vmem:[#allocation3 + $0x360] sm:$0xff] %v1439
      %1468 = vst [vmem:[#allocation3 + $0x368] sm:$0xff] %v1440
      %1469 = vst [vmem:[#allocation3 + $0x370] sm:$0xff] %v1441
      %1470 = vst [vmem:[#allocation3 + $0x378] sm:$0xff] %v1442
      %v1471 = vld [vmem:[#allocation2] sm:$0xff]
      %v1472 = vld [vmem:[#allocation2 + $0x8] sm:$0xff]
      %v1473 = vld [vmem:[#allocation2 + $0x10] sm:$0xff]
      %v1474 = vld [vmem:[#allocation2 + $0x18] sm:$0xff]
      %v1475 = vld [vmem:[#allocation2 + $0x20] sm:$0xff]
      %v1476 = vld [vmem:[#allocation2 + $0x28] sm:$0xff]
      %v1477 = vld [vmem:[#allocation2 + $0x30] sm:$0xff]
      %v1478 = vld [vmem:[#allocation2 + $0x38] sm:$0xff]
      %v1479 = vld [vmem:[#allocation2 + $0x40] sm:$0xff]
      %v1480 = vld [vmem:[#allocation2 + $0x48] sm:$0xff]
      %v1481 = vld [vmem:[#allocation2 + $0x50] sm:$0xff]
      %v1482 = vld [vmem:[#allocation2 + $0x58] sm:$0xff]
      %v1483 = vld [vmem:[#allocation2 + $0x60] sm:$0xff]
      %v1484 = vld [vmem:[#allocation2 + $0x68] sm:$0xff]
      %v1485 = vld [vmem:[#allocation2 + $0x70] sm:$0xff]
      %1501 = vrot.lane.b32.xlu0 %v1471, 89
      %v1502 = vpop.permute.xlu0 %1501
      %1503 = vrot.lane.b32.xlu0 %v1472, 89
      %v1504 = vpop.permute.xlu0 %1503
      %1505 = vrot.lane.b32.xlu0 %v1473, 89
      %v1506 = vpop.permute.xlu0 %1505
      %1507 = vrot.lane.b32.xlu0 %v1474, 89
      %v1508 = vpop.permute.xlu0 %1507
      %1509 = vrot.lane.b32.xlu0 %v1475, 89
      %v1510 = vpop.permute.xlu0 %1509
      %1511 = vrot.lane.b32.xlu0 %v1476, 89
      %v1512 = vpop.permute.xlu0 %1511
      %1513 = vrot.lane.b32.xlu0 %v1477, 89
      %v1514 = vpop.permute.xlu0 %1513
      %1515 = vrot.lane.b32.xlu0 %v1478, 89
      %v1516 = vpop.permute.xlu0 %1515
      %1517 = vrot.lane.b32.xlu0 %v1479, 89
      %v1518 = vpop.permute.xlu0 %1517
      %1519 = vrot.lane.b32.xlu0 %v1480, 89
      %v1520 = vpop.permute.xlu0 %1519
      %1521 = vrot.lane.b32.xlu0 %v1481, 89
      %v1522 = vpop.permute.xlu0 %1521
      %1523 = vrot.lane.b32.xlu0 %v1482, 89
      %v1524 = vpop.permute.xlu0 %1523
      %1525 = vrot.lane.b32.xlu0 %v1483, 89
      %v1526 = vpop.permute.xlu0 %1525
      %1527 = vrot.lane.b32.xlu0 %v1484, 89
      %v1528 = vpop.permute.xlu0 %1527
      %1529 = vrot.lane.b32.xlu0 %v1485, 89
      %v1530 = vpop.permute.xlu0 %1529
      %vm1531 = vcmask 728064
      %v1532 = vsel %vm1531, %v1502, %v1504
      %v1533 = vsel %vm1531, %v1504, %v1506
      %v1534 = vsel %vm1531, %v1506, %v1508
      %v1535 = vsel %vm1531, %v1508, %v1510
      %v1536 = vsel %vm1531, %v1510, %v1512
      %v1537 = vsel %vm1531, %v1512, %v1514
      %v1538 = vsel %vm1531, %v1514, %v1516
      %v1539 = vsel %vm1531, %v1516, %v1518
      %v1540 = vsel %vm1531, %v1518, %v1520
      %v1541 = vsel %vm1531, %v1520, %v1522
      %v1542 = vsel %vm1531, %v1522, %v1524
      %v1543 = vsel %vm1531, %v1524, %v1526
      %v1544 = vsel %vm1531, %v1526, %v1528
      %v1545 = vsel %vm1531, %v1528, %v1530
      %1560 = vst [vmem:[#allocation3 + $0x380] sm:$0xff] %v1532
      %1561 = vst [vmem:[#allocation3 + $0x388] sm:$0xff] %v1533
      %1562 = vst [vmem:[#allocation3 + $0x390] sm:$0xff] %v1534
      %1563 = vst [vmem:[#allocation3 + $0x398] sm:$0xff] %v1535
      %1564 = vst [vmem:[#allocation3 + $0x3a0] sm:$0xff] %v1536
      %1565 = vst [vmem:[#allocation3 + $0x3a8] sm:$0xff] %v1537
      %1566 = vst [vmem:[#allocation3 + $0x3b0] sm:$0xff] %v1538
      %1567 = vst [vmem:[#allocation3 + $0x3b8] sm:$0xff] %v1539
      %1568 = vst [vmem:[#allocation3 + $0x3c0] sm:$0xff] %v1540
      %1569 = vst [vmem:[#allocation3 + $0x3c8] sm:$0xff] %v1541
      %1570 = vst [vmem:[#allocation3 + $0x3d0] sm:$0xff] %v1542
      %1571 = vst [vmem:[#allocation3 + $0x3d8] sm:$0xff] %v1543
      %1572 = vst [vmem:[#allocation3 + $0x3e0] sm:$0xff] %v1544
      %1573 = vst [vmem:[#allocation3 + $0x3e8] sm:$0xff] %v1545
      %v1574 = vld [vmem:[#allocation2] sm:$0xff]
      %v1575 = vld [vmem:[#allocation2 + $0x8] sm:$0xff]
      %v1576 = vld [vmem:[#allocation2 + $0x10] sm:$0xff]
      %v1577 = vld [vmem:[#allocation2 + $0x18] sm:$0xff]
      %v1578 = vld [vmem:[#allocation2 + $0x20] sm:$0xff]
      %v1579 = vld [vmem:[#allocation2 + $0x28] sm:$0xff]
      %v1580 = vld [vmem:[#allocation2 + $0x30] sm:$0xff]
      %v1581 = vld [vmem:[#allocation2 + $0x38] sm:$0xff]
      %v1582 = vld [vmem:[#allocation2 + $0x40] sm:$0xff]
      %v1583 = vld [vmem:[#allocation2 + $0x48] sm:$0xff]
      %v1584 = vld [vmem:[#allocation2 + $0x50] sm:$0xff]
      %v1585 = vld [vmem:[#allocation2 + $0x58] sm:$0xff]
      %v1586 = vld [vmem:[#allocation2 + $0x60] sm:$0xff]
      %v1587 = vld [vmem:[#allocation2 + $0x68] sm:$0xff]
      %v1588 = vld [vmem:[#allocation2 + $0x70] sm:$0xff]
      %1604 = vrot.lane.b32.xlu0 %v1574, 11
      %v1605 = vpop.permute.xlu0 %1604
      %1606 = vrot.lane.b32.xlu0 %v1575, 11
      %v1607 = vpop.permute.xlu0 %1606
      %1608 = vrot.lane.b32.xlu0 %v1576, 11
      %v1609 = vpop.permute.xlu0 %1608
      %1610 = vrot.lane.b32.xlu0 %v1577, 11
      %v1611 = vpop.permute.xlu0 %1610
      %1612 = vrot.lane.b32.xlu0 %v1578, 11
      %v1613 = vpop.permute.xlu0 %1612
      %1614 = vrot.lane.b32.xlu0 %v1579, 11
      %v1615 = vpop.permute.xlu0 %1614
      %1616 = vrot.lane.b32.xlu0 %v1580, 11
      %v1617 = vpop.permute.xlu0 %1616
      %1618 = vrot.lane.b32.xlu0 %v1581, 11
      %v1619 = vpop.permute.xlu0 %1618
      %1620 = vrot.lane.b32.xlu0 %v1582, 11
      %v1621 = vpop.permute.xlu0 %1620
      %1622 = vrot.lane.b32.xlu0 %v1583, 11
      %v1623 = vpop.permute.xlu0 %1622
      %1624 = vrot.lane.b32.xlu0 %v1584, 11
      %v1625 = vpop.permute.xlu0 %1624
      %1626 = vrot.lane.b32.xlu0 %v1585, 11
      %v1627 = vpop.permute.xlu0 %1626
      %1628 = vrot.lane.b32.xlu0 %v1586, 11
      %v1629 = vpop.permute.xlu0 %1628
      %1630 = vrot.lane.b32.xlu0 %v1587, 11
      %v1631 = vpop.permute.xlu0 %1630
      %1632 = vrot.lane.b32.xlu0 %v1588, 11
      %v1633 = vpop.permute.xlu0 %1632
      %vm1634 = vcmask 89088
      %v1635 = vsel %vm1634, %v1605, %v1607
      %v1636 = vsel %vm1634, %v1607, %v1609
      %v1637 = vsel %vm1634, %v1609, %v1611
      %v1638 = vsel %vm1634, %v1611, %v1613
      %v1639 = vsel %vm1634, %v1613, %v1615
      %v1640 = vsel %vm1634, %v1615, %v1617
      %v1641 = vsel %vm1634, %v1617, %v1619
      %v1642 = vsel %vm1634, %v1619, %v1621
      %v1643 = vsel %vm1634, %v1621, %v1623
      %v1644 = vsel %vm1634, %v1623, %v1625
      %v1645 = vsel %vm1634, %v1625, %v1627
      %v1646 = vsel %vm1634, %v1627, %v1629
      %v1647 = vsel %vm1634, %v1629, %v1631
      %v1648 = vsel %vm1634, %v1631, %v1633
      %1663 = vst [vmem:[#allocation3 + $0x3f0] sm:$0xff] %v1635
      %1664 = vst [vmem:[#allocation3 + $0x3f8] sm:$0xff] %v1636
      %1665 = vst [vmem:[#allocation3 + $0x400] sm:$0xff] %v1637
      %1666 = vst [vmem:[#allocation3 + $0x408] sm:$0xff] %v1638
      %1667 = vst [vmem:[#allocation3 + $0x410] sm:$0xff] %v1639
      %1668 = vst [vmem:[#allocation3 + $0x418] sm:$0xff] %v1640
      %1669 = vst [vmem:[#allocation3 + $0x420] sm:$0xff] %v1641
      %1670 = vst [vmem:[#allocation3 + $0x428] sm:$0xff] %v1642
      %1671 = vst [vmem:[#allocation3 + $0x430] sm:$0xff] %v1643
      %1672 = vst [vmem:[#allocation3 + $0x438] sm:$0xff] %v1644
      %1673 = vst [vmem:[#allocation3 + $0x440] sm:$0xff] %v1645
      %1674 = vst [vmem:[#allocation3 + $0x448] sm:$0xff] %v1646
      %1675 = vst [vmem:[#allocation3 + $0x450] sm:$0xff] %v1647
      %1676 = vst [vmem:[#allocation3 + $0x458] sm:$0xff] %v1648
      %v1677 = vld [vmem:[#allocation2] sm:$0xff]
      %v1678 = vld [vmem:[#allocation2 + $0x8] sm:$0xff]
      %v1679 = vld [vmem:[#allocation2 + $0x10] sm:$0xff]
      %v1680 = vld [vmem:[#allocation2 + $0x18] sm:$0xff]
      %v1681 = vld [vmem:[#allocation2 + $0x20] sm:$0xff]
      %v1682 = vld [vmem:[#allocation2 + $0x28] sm:$0xff]
      %v1683 = vld [vmem:[#allocation2 + $0x30] sm:$0xff]
      %v1684 = vld [vmem:[#allocation2 + $0x38] sm:$0xff]
      %v1685 = vld [vmem:[#allocation2 + $0x40] sm:$0xff]
      %v1686 = vld [vmem:[#allocation2 + $0x48] sm:$0xff]
      %v1687 = vld [vmem:[#allocation2 + $0x50] sm:$0xff]
      %v1688 = vld [vmem:[#allocation2 + $0x58] sm:$0xff]
      %v1689 = vld [vmem:[#allocation2 + $0x60] sm:$0xff]
      %v1690 = vld [vmem:[#allocation2 + $0x68] sm:$0xff]
      %v1691 = vld [vmem:[#allocation2 + $0x70] sm:$0xff]
      %1707 = vrot.lane.b32.xlu0 %v1677, 10
      %v1708 = vpop.permute.xlu0 %1707
      %1709 = vrot.lane.b32.xlu0 %v1678, 10
      %v1710 = vpop.permute.xlu0 %1709
      %1711 = vrot.lane.b32.xlu0 %v1679, 10
      %v1712 = vpop.permute.xlu0 %1711
      %1713 = vrot.lane.b32.xlu0 %v1680, 10
      %v1714 = vpop.permute.xlu0 %1713
      %1715 = vrot.lane.b32.xlu0 %v1681, 10
      %v1716 = vpop.permute.xlu0 %1715
      %1717 = vrot.lane.b32.xlu0 %v1682, 10
      %v1718 = vpop.permute.xlu0 %1717
      %1719 = vrot.lane.b32.xlu0 %v1683, 10
      %v1720 = vpop.permute.xlu0 %1719
      %1721 = vrot.lane.b32.xlu0 %v1684, 10
      %v1722 = vpop.permute.xlu0 %1721
      %1723 = vrot.lane.b32.xlu0 %v1685, 10
      %v1724 = vpop.permute.xlu0 %1723
      %1725 = vrot.lane.b32.xlu0 %v1686, 10
      %v1726 = vpop.permute.xlu0 %1725
      %1727 = vrot.lane.b32.xlu0 %v1687, 10
      %v1728 = vpop.permute.xlu0 %1727
      %1729 = vrot.lane.b32.xlu0 %v1688, 10
      %v1730 = vpop.permute.xlu0 %1729
      %1731 = vrot.lane.b32.xlu0 %v1689, 10
      %v1732 = vpop.permute.xlu0 %1731
      %1733 = vrot.lane.b32.xlu0 %v1690, 10
      %v1734 = vpop.permute.xlu0 %1733
      %1735 = vrot.lane.b32.xlu0 %v1691, 10
      %v1736 = vpop.permute.xlu0 %1735
      %vm1737 = vcmask 80896
      %v1738 = vsel %vm1737, %v1708, %v1710
      %v1739 = vsel %vm1737, %v1710, %v1712
      %v1740 = vsel %vm1737, %v1712, %v1714
      %v1741 = vsel %vm1737, %v1714, %v1716
      %v1742 = vsel %vm1737, %v1716, %v1718
      %v1743 = vsel %vm1737, %v1718, %v1720
      %v1744 = vsel %vm1737, %v1720, %v1722
      %v1745 = vsel %vm1737, %v1722, %v1724
      %v1746 = vsel %vm1737, %v1724, %v1726
      %v1747 = vsel %vm1737, %v1726, %v1728
      %v1748 = vsel %vm1737, %v1728, %v1730
      %v1749 = vsel %vm1737, %v1730, %v1732
      %v1750 = vsel %vm1737, %v1732, %v1734
      %v1751 = vsel %vm1737, %v1734, %v1736
      %1766 = vst [vmem:[#allocation3 + $0x460] sm:$0xff] %v1738
      %1767 = vst [vmem:[#allocation3 + $0x468] sm:$0xff] %v1739
      %1768 = vst [vmem:[#allocation3 + $0x470] sm:$0xff] %v1740
      %1769 = vst [vmem:[#allocation3 + $0x478] sm:$0xff] %v1741
      %1770 = vst [vmem:[#allocation3 + $0x480] sm:$0xff] %v1742
      %1771 = vst [vmem:[#allocation3 + $0x488] sm:$0xff] %v1743
      %1772 = vst [vmem:[#allocation3 + $0x490] sm:$0xff] %v1744
      %1773 = vst [vmem:[#allocation3 + $0x498] sm:$0xff] %v1745
      %1774 = vst [vmem:[#allocation3 + $0x4a0] sm:$0xff] %v1746
      %1775 = vst [vmem:[#allocation3 + $0x4a8] sm:$0xff] %v1747
      %1776 = vst [vmem:[#allocation3 + $0x4b0] sm:$0xff] %v1748
      %1777 = vst [vmem:[#allocation3 + $0x4b8] sm:$0xff] %v1749
      %1778 = vst [vmem:[#allocation3 + $0x4c0] sm:$0xff] %v1750
      %1779 = vst [vmem:[#allocation3 + $0x4c8] sm:$0xff] %v1751
      %v1780 = vld [vmem:[#allocation2] sm:$0xff]
      %v1781 = vld [vmem:[#allocation2 + $0x8] sm:$0xff]
      %v1782 = vld [vmem:[#allocation2 + $0x10] sm:$0xff]
      %v1783 = vld [vmem:[#allocation2 + $0x18] sm:$0xff]
      %v1784 = vld [vmem:[#allocation2 + $0x20] sm:$0xff]
      %v1785 = vld [vmem:[#allocation2 + $0x28] sm:$0xff]
      %v1786 = vld [vmem:[#allocation2 + $0x30] sm:$0xff]
      %v1787 = vld [vmem:[#allocation2 + $0x38] sm:$0xff]
      %v1788 = vld [vmem:[#allocation2 + $0x40] sm:$0xff]
      %v1789 = vld [vmem:[#allocation2 + $0x48] sm:$0xff]
      %v1790 = vld [vmem:[#allocation2 + $0x50] sm:$0xff]
      %v1791 = vld [vmem:[#allocation2 + $0x58] sm:$0xff]
      %v1792 = vld [vmem:[#allocation2 + $0x60] sm:$0xff]
      %v1793 = vld [vmem:[#allocation2 + $0x68] sm:$0xff]
      %v1794 = vld [vmem:[#allocation2 + $0x70] sm:$0xff]
      %1810 = vrot.lane.b32.xlu0 %v1780, 9
      %v1811 = vpop.permute.xlu0 %1810
      %1812 = vrot.lane.b32.xlu0 %v1781, 9
      %v1813 = vpop.permute.xlu0 %1812
      %1814 = vrot.lane.b32.xlu0 %v1782, 9
      %v1815 = vpop.permute.xlu0 %1814
      %1816 = vrot.lane.b32.xlu0 %v1783, 9
      %v1817 = vpop.permute.xlu0 %1816
      %1818 = vrot.lane.b32.xlu0 %v1784, 9
      %v1819 = vpop.permute.xlu0 %1818
      %1820 = vrot.lane.b32.xlu0 %v1785, 9
      %v1821 = vpop.permute.xlu0 %1820
      %1822 = vrot.lane.b32.xlu0 %v1786, 9
      %v1823 = vpop.permute.xlu0 %1822
      %1824 = vrot.lane.b32.xlu0 %v1787, 9
      %v1825 = vpop.permute.xlu0 %1824
      %1826 = vrot.lane.b32.xlu0 %v1788, 9
      %v1827 = vpop.permute.xlu0 %1826
      %1828 = vrot.lane.b32.xlu0 %v1789, 9
      %v1829 = vpop.permute.xlu0 %1828
      %1830 = vrot.lane.b32.xlu0 %v1790, 9
      %v1831 = vpop.permute.xlu0 %1830
      %1832 = vrot.lane.b32.xlu0 %v1791, 9
      %v1833 = vpop.permute.xlu0 %1832
      %1834 = vrot.lane.b32.xlu0 %v1792, 9
      %v1835 = vpop.permute.xlu0 %1834
      %1836 = vrot.lane.b32.xlu0 %v1793, 9
      %v1837 = vpop.permute.xlu0 %1836
      %1838 = vrot.lane.b32.xlu0 %v1794, 9
      %v1839 = vpop.permute.xlu0 %1838
      %vm1840 = vcmask 72704
      %v1841 = vsel %vm1840, %v1811, %v1813
      %v1842 = vsel %vm1840, %v1813, %v1815
      %v1843 = vsel %vm1840, %v1815, %v1817
      %v1844 = vsel %vm1840, %v1817, %v1819
      %v1845 = vsel %vm1840, %v1819, %v1821
      %v1846 = vsel %vm1840, %v1821, %v1823
      %v1847 = vsel %vm1840, %v1823, %v1825
      %v1848 = vsel %vm1840, %v1825, %v1827
      %v1849 = vsel %vm1840, %v1827, %v1829
      %v1850 = vsel %vm1840, %v1829, %v1831
      %v1851 = vsel %vm1840, %v1831, %v1833
      %v1852 = vsel %vm1840, %v1833, %v1835
      %v1853 = vsel %vm1840, %v1835, %v1837
      %v1854 = vsel %vm1840, %v1837, %v1839
      %1869 = vst [vmem:[#allocation3 + $0x4d0] sm:$0xff] %v1841
      %1870 = vst [vmem:[#allocation3 + $0x4d8] sm:$0xff] %v1842
      %1871 = vst [vmem:[#allocation3 + $0x4e0] sm:$0xff] %v1843
      %1872 = vst [vmem:[#allocation3 + $0x4e8] sm:$0xff] %v1844
      %1873 = vst [vmem:[#allocation3 + $0x4f0] sm:$0xff] %v1845
      %1874 = vst [vmem:[#allocation3 + $0x4f8] sm:$0xff] %v1846
      %1875 = vst [vmem:[#allocation3 + $0x500] sm:$0xff] %v1847
      %1876 = vst [vmem:[#allocation3 + $0x508] sm:$0xff] %v1848
      %1877 = vst [vmem:[#allocation3 + $0x510] sm:$0xff] %v1849
      %1878 = vst [vmem:[#allocation3 + $0x518] sm:$0xff] %v1850
      %1879 = vst [vmem:[#allocation3 + $0x520] sm:$0xff] %v1851
      %1880 = vst [vmem:[#allocation3 + $0x528] sm:$0xff] %v1852
      %1881 = vst [vmem:[#allocation3 + $0x530] sm:$0xff] %v1853
      %1882 = vst [vmem:[#allocation3 + $0x538] sm:$0xff] %v1854
      %v1883 = vld [vmem:[#allocation2] sm:$0xff]
      %v1884 = vld [vmem:[#allocation2 + $0x8] sm:$0xff]
      %v1885 = vld [vmem:[#allocation2 + $0x10] sm:$0xff]
      %v1886 = vld [vmem:[#allocation2 + $0x18] sm:$0xff]
      %v1887 = vld [vmem:[#allocation2 + $0x20] sm:$0xff]
      %v1888 = vld [vmem:[#allocation2 + $0x28] sm:$0xff]
      %v1889 = vld [vmem:[#allocation2 + $0x30] sm:$0xff]
      %v1890 = vld [vmem:[#allocation2 + $0x38] sm:$0xff]
      %v1891 = vld [vmem:[#allocation2 + $0x40] sm:$0xff]
      %v1892 = vld [vmem:[#allocation2 + $0x48] sm:$0xff]
      %v1893 = vld [vmem:[#allocation2 + $0x50] sm:$0xff]
      %v1894 = vld [vmem:[#allocation2 + $0x58] sm:$0xff]
      %v1895 = vld [vmem:[#allocation2 + $0x60] sm:$0xff]
      %v1896 = vld [vmem:[#allocation2 + $0x68] sm:$0xff]
      %v1897 = vld [vmem:[#allocation2 + $0x70] sm:$0xff]
      %1913 = vrot.lane.b32.xlu0 %v1883, 1
      %v1914 = vpop.permute.xlu0 %1913
      %1915 = vrot.lane.b32.xlu0 %v1884, 1
      %v1916 = vpop.permute.xlu0 %1915
      %1917 = vrot.lane.b32.xlu0 %v1885, 1
      %v1918 = vpop.permute.xlu0 %1917
      %1919 = vrot.lane.b32.xlu0 %v1886, 1
      %v1920 = vpop.permute.xlu0 %1919
      %1921 = vrot.lane.b32.xlu0 %v1887, 1
      %v1922 = vpop.permute.xlu0 %1921
      %1923 = vrot.lane.b32.xlu0 %v1888, 1
      %v1924 = vpop.permute.xlu0 %1923
      %1925 = vrot.lane.b32.xlu0 %v1889, 1
      %v1926 = vpop.permute.xlu0 %1925
      %1927 = vrot.lane.b32.xlu0 %v1890, 1
      %v1928 = vpop.permute.xlu0 %1927
      %1929 = vrot.lane.b32.xlu0 %v1891, 1
      %v1930 = vpop.permute.xlu0 %1929
      %1931 = vrot.lane.b32.xlu0 %v1892, 1
      %v1932 = vpop.permute.xlu0 %1931
      %1933 = vrot.lane.b32.xlu0 %v1893, 1
      %v1934 = vpop.permute.xlu0 %1933
      %1935 = vrot.lane.b32.xlu0 %v1894, 1
      %v1936 = vpop.permute.xlu0 %1935
      %1937 = vrot.lane.b32.xlu0 %v1895, 1
      %v1938 = vpop.permute.xlu0 %1937
      %1939 = vrot.lane.b32.xlu0 %v1896, 1
      %v1940 = vpop.permute.xlu0 %1939
      %1941 = vrot.lane.b32.xlu0 %v1897, 1
      %v1942 = vpop.permute.xlu0 %1941
      %vm1943 = vcmask 7168
      %v1944 = vsel %vm1943, %v1914, %v1916
      %v1945 = vsel %vm1943, %v1916, %v1918
      %v1946 = vsel %vm1943, %v1918, %v1920
      %v1947 = vsel %vm1943, %v1920, %v1922
      %v1948 = vsel %vm1943, %v1922, %v1924
      %v1949 = vsel %vm1943, %v1924, %v1926
      %v1950 = vsel %vm1943, %v1926, %v1928
      %v1951 = vsel %vm1943, %v1928, %v1930
      %v1952 = vsel %vm1943, %v1930, %v1932
      %v1953 = vsel %vm1943, %v1932, %v1934
      %v1954 = vsel %vm1943, %v1934, %v1936
      %v1955 = vsel %vm1943, %v1936, %v1938
      %v1956 = vsel %vm1943, %v1938, %v1940
      %v1957 = vsel %vm1943, %v1940, %v1942
      %1972 = vst [vmem:[#allocation3 + $0x540] sm:$0xff] %v1944
      %1973 = vst [vmem:[#allocation3 + $0x548] sm:$0xff] %v1945
      %1974 = vst [vmem:[#allocation3 + $0x550] sm:$0xff] %v1946
      %1975 = vst [vmem:[#allocation3 + $0x558] sm:$0xff] %v1947
      %1976 = vst [vmem:[#allocation3 + $0x560] sm:$0xff] %v1948
      %1977 = vst [vmem:[#allocation3 + $0x568] sm:$0xff] %v1949
      %1978 = vst [vmem:[#allocation3 + $0x570] sm:$0xff] %v1950
      %1979 = vst [vmem:[#allocation3 + $0x578] sm:$0xff] %v1951
      %1980 = vst [vmem:[#allocation3 + $0x580] sm:$0xff] %v1952
      %1981 = vst [vmem:[#allocation3 + $0x588] sm:$0xff] %v1953
      %1982 = vst [vmem:[#allocation3 + $0x590] sm:$0xff] %v1954
      %1983 = vst [vmem:[#allocation3 + $0x598] sm:$0xff] %v1955
      %1984 = vst [vmem:[#allocation3 + $0x5a0] sm:$0xff] %v1956
      %1985 = vst [vmem:[#allocation3 + $0x5a8] sm:$0xff] %v1957
      %v1986 = vld [vmem:[#allocation2 + $0x8] sm:$0xff]
      %v1987 = vld [vmem:[#allocation2 + $0x10] sm:$0xff]
      %v1988 = vld [vmem:[#allocation2 + $0x18] sm:$0xff]
      %v1989 = vld [vmem:[#allocation2 + $0x20] sm:$0xff]
      %v1990 = vld [vmem:[#allocation2 + $0x28] sm:$0xff]
      %v1991 = vld [vmem:[#allocation2 + $0x30] sm:$0xff]
      %v1992 = vld [vmem:[#allocation2 + $0x38] sm:$0xff]
      %v1993 = vld [vmem:[#allocation2 + $0x40] sm:$0xff]
      %v1994 = vld [vmem:[#allocation2 + $0x48] sm:$0xff]
      %v1995 = vld [vmem:[#allocation2 + $0x50] sm:$0xff]
      %v1996 = vld [vmem:[#allocation2 + $0x58] sm:$0xff]
      %v1997 = vld [vmem:[#allocation2 + $0x60] sm:$0xff]
      %v1998 = vld [vmem:[#allocation2 + $0x68] sm:$0xff]
      %v1999 = vld [vmem:[#allocation2 + $0x70] sm:$0xff]
      %2000 = vst [vmem:[#allocation3 + $0x5b0] sm:$0xff] %v1986
      %2001 = vst [vmem:[#allocation3 + $0x5b8] sm:$0xff] %v1987
      %2002 = vst [vmem:[#allocation3 + $0x5c0] sm:$0xff] %v1988
      %2003 = vst [vmem:[#allocation3 + $0x5c8] sm:$0xff] %v1989
      %2004 = vst [vmem:[#allocation3 + $0x5d0] sm:$0xff] %v1990
      %2005 = vst [vmem:[#allocation3 + $0x5d8] sm:$0xff] %v1991
      %2006 = vst [vmem:[#allocation3 + $0x5e0] sm:$0xff] %v1992
      %2007 = vst [vmem:[#allocation3 + $0x5e8] sm:$0xff] %v1993
      %2008 = vst [vmem:[#allocation3 + $0x5f0] sm:$0xff] %v1994
      %2009 = vst [vmem:[#allocation3 + $0x5f8] sm:$0xff] %v1995
      %2010 = vst [vmem:[#allocation3 + $0x600] sm:$0xff] %v1996
      %2011 = vst [vmem:[#allocation3 + $0x608] sm:$0xff] %v1997
      %2012 = vst [vmem:[#allocation3 + $0x610] sm:$0xff] %v1998
      %2013 = vst [vmem:[#allocation3 + $0x618] sm:$0xff] %v1999
      %v2014 = vld [vmem:[#allocation2 + $0x8] sm:$0xff]
      %v2015 = vld [vmem:[#allocation2 + $0x10] sm:$0xff]
      %v2016 = vld [vmem:[#allocation2 + $0x18] sm:$0xff]
      %v2017 = vld [vmem:[#allocation2 + $0x20] sm:$0xff]
      %v2018 = vld [vmem:[#allocation2 + $0x28] sm:$0xff]
      %v2019 = vld [vmem:[#allocation2 + $0x30] sm:$0xff]
      %v2020 = vld [vmem:[#allocation2 + $0x38] sm:$0xff]
      %v2021 = vld [vmem:[#allocation2 + $0x40] sm:$0xff]
      %v2022 = vld [vmem:[#allocation2 + $0x48] sm:$0xff]
      %v2023 = vld [vmem:[#allocation2 + $0x50] sm:$0xff]
      %v2024 = vld [vmem:[#allocation2 + $0x58] sm:$0xff]
      %v2025 = vld [vmem:[#allocation2 + $0x60] sm:$0xff]
      %v2026 = vld [vmem:[#allocation2 + $0x68] sm:$0xff]
      %v2027 = vld [vmem:[#allocation2 + $0x70] sm:$0xff]
      %v2028 = vld [vmem:[#allocation2 + $0x78] sm:$0xff]
      %2044 = vrot.lane.b32.xlu0 %v2014, 127
      %v2045 = vpop.permute.xlu0 %2044
      %2046 = vrot.lane.b32.xlu0 %v2015, 127
      %v2047 = vpop.permute.xlu0 %2046
      %2048 = vrot.lane.b32.xlu0 %v2016, 127
      %v2049 = vpop.permute.xlu0 %2048
      %2050 = vrot.lane.b32.xlu0 %v2017, 127
      %v2051 = vpop.permute.xlu0 %2050
      %2052 = vrot.lane.b32.xlu0 %v2018, 127
      %v2053 = vpop.permute.xlu0 %2052
      %2054 = vrot.lane.b32.xlu0 %v2019, 127
      %v2055 = vpop.permute.xlu0 %2054
      %2056 = vrot.lane.b32.xlu0 %v2020, 127
      %v2057 = vpop.permute.xlu0 %2056
      %2058 = vrot.lane.b32.xlu0 %v2021, 127
      %v2059 = vpop.permute.xlu0 %2058
      %2060 = vrot.lane.b32.xlu0 %v2022, 127
      %v2061 = vpop.permute.xlu0 %2060
      %2062 = vrot.lane.b32.xlu0 %v2023, 127
      %v2063 = vpop.permute.xlu0 %2062
      %2064 = vrot.lane.b32.xlu0 %v2024, 127
      %v2065 = vpop.permute.xlu0 %2064
      %2066 = vrot.lane.b32.xlu0 %v2025, 127
      %v2067 = vpop.permute.xlu0 %2066
      %2068 = vrot.lane.b32.xlu0 %v2026, 127
      %v2069 = vpop.permute.xlu0 %2068
      %2070 = vrot.lane.b32.xlu0 %v2027, 127
      %v2071 = vpop.permute.xlu0 %2070
      %2072 = vrot.lane.b32.xlu0 %v2028, 127
      %v2073 = vpop.permute.xlu0 %2072
      %vm2074 = vcmask 1039360
      %v2075 = vsel %vm2074, %v2045, %v2047
      %v2076 = vsel %vm2074, %v2047, %v2049
      %v2077 = vsel %vm2074, %v2049, %v2051
      %v2078 = vsel %vm2074, %v2051, %v2053
      %v2079 = vsel %vm2074, %v2053, %v2055
      %v2080 = vsel %vm2074, %v2055, %v2057
      %v2081 = vsel %vm2074, %v2057, %v2059
      %v2082 = vsel %vm2074, %v2059, %v2061
      %v2083 = vsel %vm2074, %v2061, %v2063
      %v2084 = vsel %vm2074, %v2063, %v2065
      %v2085 = vsel %vm2074, %v2065, %v2067
      %v2086 = vsel %vm2074, %v2067, %v2069
      %v2087 = vsel %vm2074, %v2069, %v2071
      %v2088 = vsel %vm2074, %v2071, %v2073
      %2103 = vst [vmem:[#allocation3 + $0x620] sm:$0xff] %v2075
      %2104 = vst [vmem:[#allocation3 + $0x628] sm:$0xff] %v2076
      %2105 = vst [vmem:[#allocation3 + $0x630] sm:$0xff] %v2077
      %2106 = vst [vmem:[#allocation3 + $0x638] sm:$0xff] %v2078
      %2107 = vst [vmem:[#allocation3 + $0x640] sm:$0xff] %v2079
      %2108 = vst [vmem:[#allocation3 + $0x648] sm:$0xff] %v2080
      %2109 = vst [vmem:[#allocation3 + $0x650] sm:$0xff] %v2081
      %2110 = vst [vmem:[#allocation3 + $0x658] sm:$0xff] %v2082
      %2111 = vst [vmem:[#allocation3 + $0x660] sm:$0xff] %v2083
      %2112 = vst [vmem:[#allocation3 + $0x668] sm:$0xff] %v2084
      %2113 = vst [vmem:[#allocation3 + $0x670] sm:$0xff] %v2085
      %2114 = vst [vmem:[#allocation3 + $0x678] sm:$0xff] %v2086
      %2115 = vst [vmem:[#allocation3 + $0x680] sm:$0xff] %v2087
      %2116 = vst [vmem:[#allocation3 + $0x688] sm:$0xff] %v2088
      %v2117 = vld [vmem:[#allocation2 + $0x8] sm:$0xff]
      %v2118 = vld [vmem:[#allocation2 + $0x10] sm:$0xff]
      %v2119 = vld [vmem:[#allocation2 + $0x18] sm:$0xff]
      %v2120 = vld [vmem:[#allocation2 + $0x20] sm:$0xff]
      %v2121 = vld [vmem:[#allocation2 + $0x28] sm:$0xff]
      %v2122 = vld [vmem:[#allocation2 + $0x30] sm:$0xff]
      %v2123 = vld [vmem:[#allocation2 + $0x38] sm:$0xff]
      %v2124 = vld [vmem:[#allocation2 + $0x40] sm:$0xff]
      %v2125 = vld [vmem:[#allocation2 + $0x48] sm:$0xff]
      %v2126 = vld [vmem:[#allocation2 + $0x50] sm:$0xff]
      %v2127 = vld [vmem:[#allocation2 + $0x58] sm:$0xff]
      %v2128 = vld [vmem:[#allocation2 + $0x60] sm:$0xff]
      %v2129 = vld [vmem:[#allocation2 + $0x68] sm:$0xff]
      %v2130 = vld [vmem:[#allocation2 + $0x70] sm:$0xff]
      %v2131 = vld [vmem:[#allocation2 + $0x78] sm:$0xff]
      %2147 = vrot.lane.b32.xlu0 %v2117, 119
      %v2148 = vpop.permute.xlu0 %2147
      %2149 = vrot.lane.b32.xlu0 %v2118, 119
      %v2150 = vpop.permute.xlu0 %2149
      %2151 = vrot.lane.b32.xlu0 %v2119, 119
      %v2152 = vpop.permute.xlu0 %2151
      %2153 = vrot.lane.b32.xlu0 %v2120, 119
      %v2154 = vpop.permute.xlu0 %2153
      %2155 = vrot.lane.b32.xlu0 %v2121, 119
      %v2156 = vpop.permute.xlu0 %2155
      %2157 = vrot.lane.b32.xlu0 %v2122, 119
      %v2158 = vpop.permute.xlu0 %2157
      %2159 = vrot.lane.b32.xlu0 %v2123, 119
      %v2160 = vpop.permute.xlu0 %2159
      %2161 = vrot.lane.b32.xlu0 %v2124, 119
      %v2162 = vpop.permute.xlu0 %2161
      %2163 = vrot.lane.b32.xlu0 %v2125, 119
      %v2164 = vpop.permute.xlu0 %2163
      %2165 = vrot.lane.b32.xlu0 %v2126, 119
      %v2166 = vpop.permute.xlu0 %2165
      %2167 = vrot.lane.b32.xlu0 %v2127, 119
      %v2168 = vpop.permute.xlu0 %2167
      %2169 = vrot.lane.b32.xlu0 %v2128, 119
      %v2170 = vpop.permute.xlu0 %2169
      %2171 = vrot.lane.b32.xlu0 %v2129, 119
      %v2172 = vpop.permute.xlu0 %2171
      %2173 = vrot.lane.b32.xlu0 %v2130, 119
      %v2174 = vpop.permute.xlu0 %2173
      %2175 = vrot.lane.b32.xlu0 %v2131, 119
      %v2176 = vpop.permute.xlu0 %2175
      %vm2177 = vcmask 973824
      %v2178 = vsel %vm2177, %v2148, %v2150
      %v2179 = vsel %vm2177, %v2150, %v2152
      %v2180 = vsel %vm2177, %v2152, %v2154
      %v2181 = vsel %vm2177, %v2154, %v2156
      %v2182 = vsel %vm2177, %v2156, %v2158
      %v2183 = vsel %vm2177, %v2158, %v2160
      %v2184 = vsel %vm2177, %v2160, %v2162
      %v2185 = vsel %vm2177, %v2162, %v2164
      %v2186 = vsel %vm2177, %v2164, %v2166
      %v2187 = vsel %vm2177, %v2166, %v2168
      %v2188 = vsel %vm2177, %v2168, %v2170
      %v2189 = vsel %vm2177, %v2170, %v2172
      %v2190 = vsel %vm2177, %v2172, %v2174
      %v2191 = vsel %vm2177, %v2174, %v2176
      %2206 = vst [vmem:[#allocation3 + $0x690] sm:$0xff] %v2178
      %2207 = vst [vmem:[#allocation3 + $0x698] sm:$0xff] %v2179
      %2208 = vst [vmem:[#allocation3 + $0x6a0] sm:$0xff] %v2180
      %2209 = vst [vmem:[#allocation3 + $0x6a8] sm:$0xff] %v2181
      %2210 = vst [vmem:[#allocation3 + $0x6b0] sm:$0xff] %v2182
      %2211 = vst [vmem:[#allocation3 + $0x6b8] sm:$0xff] %v2183
      %2212 = vst [vmem:[#allocation3 + $0x6c0] sm:$0xff] %v2184
      %2213 = vst [vmem:[#allocation3 + $0x6c8] sm:$0xff] %v2185
      %2214 = vst [vmem:[#allocation3 + $0x6d0] sm:$0xff] %v2186
      %2215 = vst [vmem:[#allocation3 + $0x6d8] sm:$0xff] %v2187
      %2216 = vst [vmem:[#allocation3 + $0x6e0] sm:$0xff] %v2188
      %2217 = vst [vmem:[#allocation3 + $0x6e8] sm:$0xff] %v2189
      %2218 = vst [vmem:[#allocation3 + $0x6f0] sm:$0xff] %v2190
      %2219 = vst [vmem:[#allocation3 + $0x6f8] sm:$0xff] %v2191
      %v2220 = vld [vmem:[#allocation2 + $0x8] sm:$0xff]
      %v2221 = vld [vmem:[#allocation2 + $0x10] sm:$0xff]
      %v2222 = vld [vmem:[#allocation2 + $0x18] sm:$0xff]
      %v2223 = vld [vmem:[#allocation2 + $0x20] sm:$0xff]
      %v2224 = vld [vmem:[#allocation2 + $0x28] sm:$0xff]
      %v2225 = vld [vmem:[#allocation2 + $0x30] sm:$0xff]
      %v2226 = vld [vmem:[#allocation2 + $0x38] sm:$0xff]
      %v2227 = vld [vmem:[#allocation2 + $0x40] sm:$0xff]
      %v2228 = vld [vmem:[#allocation2 + $0x48] sm:$0xff]
      %v2229 = vld [vmem:[#allocation2 + $0x50] sm:$0xff]
      %v2230 = vld [vmem:[#allocation2 + $0x58] sm:$0xff]
      %v2231 = vld [vmem:[#allocation2 + $0x60] sm:$0xff]
      %v2232 = vld [vmem:[#allocation2 + $0x68] sm:$0xff]
      %v2233 = vld [vmem:[#allocation2 + $0x70] sm:$0xff]
      %v2234 = vld [vmem:[#allocation2 + $0x78] sm:$0xff]
      %2250 = vrot.lane.b32.xlu0 %v2220, 118
      %v2251 = vpop.permute.xlu0 %2250
      %2252 = vrot.lane.b32.xlu0 %v2221, 118
      %v2253 = vpop.permute.xlu0 %2252
      %2254 = vrot.lane.b32.xlu0 %v2222, 118
      %v2255 = vpop.permute.xlu0 %2254
      %2256 = vrot.lane.b32.xlu0 %v2223, 118
      %v2257 = vpop.permute.xlu0 %2256
      %2258 = vrot.lane.b32.xlu0 %v2224, 118
      %v2259 = vpop.permute.xlu0 %2258
      %2260 = vrot.lane.b32.xlu0 %v2225, 118
      %v2261 = vpop.permute.xlu0 %2260
      %2262 = vrot.lane.b32.xlu0 %v2226, 118
      %v2263 = vpop.permute.xlu0 %2262
      %2264 = vrot.lane.b32.xlu0 %v2227, 118
      %v2265 = vpop.permute.xlu0 %2264
      %2266 = vrot.lane.b32.xlu0 %v2228, 118
      %v2267 = vpop.permute.xlu0 %2266
      %2268 = vrot.lane.b32.xlu0 %v2229, 118
      %v2269 = vpop.permute.xlu0 %2268
      %2270 = vrot.lane.b32.xlu0 %v2230, 118
      %v2271 = vpop.permute.xlu0 %2270
      %2272 = vrot.lane.b32.xlu0 %v2231, 118
      %v2273 = vpop.permute.xlu0 %2272
      %2274 = vrot.lane.b32.xlu0 %v2232, 118
      %v2275 = vpop.permute.xlu0 %2274
      %2276 = vrot.lane.b32.xlu0 %v2233, 118
      %v2277 = vpop.permute.xlu0 %2276
      %2278 = vrot.lane.b32.xlu0 %v2234, 118
      %v2279 = vpop.permute.xlu0 %2278
      %vm2280 = vcmask 965632
      %v2281 = vsel %vm2280, %v2251, %v2253
      %v2282 = vsel %vm2280, %v2253, %v2255
      %v2283 = vsel %vm2280, %v2255, %v2257
      %v2284 = vsel %vm2280, %v2257, %v2259
      %v2285 = vsel %vm2280, %v2259, %v2261
      %v2286 = vsel %vm2280, %v2261, %v2263
      %v2287 = vsel %vm2280, %v2263, %v2265
      %v2288 = vsel %vm2280, %v2265, %v2267
      %v2289 = vsel %vm2280, %v2267, %v2269
      %v2290 = vsel %vm2280, %v2269, %v2271
      %v2291 = vsel %vm2280, %v2271, %v2273
      %v2292 = vsel %vm2280, %v2273, %v2275
      %v2293 = vsel %vm2280, %v2275, %v2277
      %v2294 = vsel %vm2280, %v2277, %v2279
      %2309 = vst [vmem:[#allocation3 + $0x700] sm:$0xff] %v2281
      %2310 = vst [vmem:[#allocation3 + $0x708] sm:$0xff] %v2282
      %2311 = vst [vmem:[#allocation3 + $0x710] sm:$0xff] %v2283
      %2312 = vst [vmem:[#allocation3 + $0x718] sm:$0xff] %v2284
      %2313 = vst [vmem:[#allocation3 + $0x720] sm:$0xff] %v2285
      %2314 = vst [vmem:[#allocation3 + $0x728] sm:$0xff] %v2286
      %2315 = vst [vmem:[#allocation3 + $0x730] sm:$0xff] %v2287
      %2316 = vst [vmem:[#allocation3 + $0x738] sm:$0xff] %v2288
      %2317 = vst [vmem:[#allocation3 + $0x740] sm:$0xff] %v2289
      %2318 = vst [vmem:[#allocation3 + $0x748] sm:$0xff] %v2290
      %2319 = vst [vmem:[#allocation3 + $0x750] sm:$0xff] %v2291
      %2320 = vst [vmem:[#allocation3 + $0x758] sm:$0xff] %v2292
      %2321 = vst [vmem:[#allocation3 + $0x760] sm:$0xff] %v2293
      %2322 = vst [vmem:[#allocation3 + $0x768] sm:$0xff] %v2294
      %v2323 = vld [vmem:[#allocation2 + $0x8] sm:$0xff]
      %v2324 = vld [vmem:[#allocation2 + $0x10] sm:$0xff]
      %v2325 = vld [vmem:[#allocation2 + $0x18] sm:$0xff]
      %v2326 = vld [vmem:[#allocation2 + $0x20] sm:$0xff]
      %v2327 = vld [vmem:[#allocation2 + $0x28] sm:$0xff]
      %v2328 = vld [vmem:[#allocation2 + $0x30] sm:$0xff]
      %v2329 = vld [vmem:[#allocation2 + $0x38] sm:$0xff]
      %v2330 = vld [vmem:[#allocation2 + $0x40] sm:$0xff]
      %v2331 = vld [vmem:[#allocation2 + $0x48] sm:$0xff]
      %v2332 = vld [vmem:[#allocation2 + $0x50] sm:$0xff]
      %v2333 = vld [vmem:[#allocation2 + $0x58] sm:$0xff]
      %v2334 = vld [vmem:[#allocation2 + $0x60] sm:$0xff]
      %v2335 = vld [vmem:[#allocation2 + $0x68] sm:$0xff]
      %v2336 = vld [vmem:[#allocation2 + $0x70] sm:$0xff]
      %v2337 = vld [vmem:[#allocation2 + $0x78] sm:$0xff]
      %2353 = vrot.lane.b32.xlu0 %v2323, 117
      %v2354 = vpop.permute.xlu0 %2353
      %2355 = vrot.lane.b32.xlu0 %v2324, 117
      %v2356 = vpop.permute.xlu0 %2355
      %2357 = vrot.lane.b32.xlu0 %v2325, 117
      %v2358 = vpop.permute.xlu0 %2357
      %2359 = vrot.lane.b32.xlu0 %v2326, 117
      %v2360 = vpop.permute.xlu0 %2359
      %2361 = vrot.lane.b32.xlu0 %v2327, 117
      %v2362 = vpop.permute.xlu0 %2361
      %2363 = vrot.lane.b32.xlu0 %v2328, 117
      %v2364 = vpop.permute.xlu0 %2363
      %2365 = vrot.lane.b32.xlu0 %v2329, 117
      %v2366 = vpop.permute.xlu0 %2365
      %2367 = vrot.lane.b32.xlu0 %v2330, 117
      %v2368 = vpop.permute.xlu0 %2367
      %2369 = vrot.lane.b32.xlu0 %v2331, 117
      %v2370 = vpop.permute.xlu0 %2369
      %2371 = vrot.lane.b32.xlu0 %v2332, 117
      %v2372 = vpop.permute.xlu0 %2371
      %2373 = vrot.lane.b32.xlu0 %v2333, 117
      %v2374 = vpop.permute.xlu0 %2373
      %2375 = vrot.lane.b32.xlu0 %v2334, 117
      %v2376 = vpop.permute.xlu0 %2375
      %2377 = vrot.lane.b32.xlu0 %v2335, 117
      %v2378 = vpop.permute.xlu0 %2377
      %2379 = vrot.lane.b32.xlu0 %v2336, 117
      %v2380 = vpop.permute.xlu0 %2379
      %2381 = vrot.lane.b32.xlu0 %v2337, 117
      %v2382 = vpop.permute.xlu0 %2381
      %vm2383 = vcmask 957440
      %v2384 = vsel %vm2383, %v2354, %v2356
      %v2385 = vsel %vm2383, %v2356, %v2358
      %v2386 = vsel %vm2383, %v2358, %v2360
      %v2387 = vsel %vm2383, %v2360, %v2362
      %v2388 = vsel %vm2383, %v2362, %v2364
      %v2389 = vsel %vm2383, %v2364, %v2366
      %v2390 = vsel %vm2383, %v2366, %v2368
      %v2391 = vsel %vm2383, %v2368, %v2370
      %v2392 = vsel %vm2383, %v2370, %v2372
      %v2393 = vsel %vm2383, %v2372, %v2374
      %v2394 = vsel %vm2383, %v2374, %v2376
      %v2395 = vsel %vm2383, %v2376, %v2378
      %v2396 = vsel %vm2383, %v2378, %v2380
      %v2397 = vsel %vm2383, %v2380, %v2382
      %2412 = vst [vmem:[#allocation3 + $0x770] sm:$0xff] %v2384
      %2413 = vst [vmem:[#allocation3 + $0x778] sm:$0xff] %v2385
      %2414 = vst [vmem:[#allocation3 + $0x780] sm:$0xff] %v2386
      %2415 = vst [vmem:[#allocation3 + $0x788] sm:$0xff] %v2387
      %2416 = vst [vmem:[#allocation3 + $0x790] sm:$0xff] %v2388
      %2417 = vst [vmem:[#allocation3 + $0x798] sm:$0xff] %v2389
      %2418 = vst [vmem:[#allocation3 + $0x7a0] sm:$0xff] %v2390
      %2419 = vst [vmem:[#allocation3 + $0x7a8] sm:$0xff] %v2391
      %2420 = vst [vmem:[#allocation3 + $0x7b0] sm:$0xff] %v2392
      %2421 = vst [vmem:[#allocation3 + $0x7b8] sm:$0xff] %v2393
      %2422 = vst [vmem:[#allocation3 + $0x7c0] sm:$0xff] %v2394
      %2423 = vst [vmem:[#allocation3 + $0x7c8] sm:$0xff] %v2395
      %2424 = vst [vmem:[#allocation3 + $0x7d0] sm:$0xff] %v2396
      %2425 = vst [vmem:[#allocation3 + $0x7d8] sm:$0xff] %v2397
      %v2426 = vld [vmem:[#allocation2 + $0x8] sm:$0xff]
      %v2427 = vld [vmem:[#allocation2 + $0x10] sm:$0xff]
      %v2428 = vld [vmem:[#allocation2 + $0x18] sm:$0xff]
      %v2429 = vld [vmem:[#allocation2 + $0x20] sm:$0xff]
      %v2430 = vld [vmem:[#allocation2 + $0x28] sm:$0xff]
      %v2431 = vld [vmem:[#allocation2 + $0x30] sm:$0xff]
      %v2432 = vld [vmem:[#allocation2 + $0x38] sm:$0xff]
      %v2433 = vld [vmem:[#allocation2 + $0x40] sm:$0xff]
      %v2434 = vld [vmem:[#allocation2 + $0x48] sm:$0xff]
      %v2435 = vld [vmem:[#allocation2 + $0x50] sm:$0xff]
      %v2436 = vld [vmem:[#allocation2 + $0x58] sm:$0xff]
      %v2437 = vld [vmem:[#allocation2 + $0x60] sm:$0xff]
      %v2438 = vld [vmem:[#allocation2 + $0x68] sm:$0xff]
      %v2439 = vld [vmem:[#allocation2 + $0x70] sm:$0xff]
      %v2440 = vld [vmem:[#allocation2 + $0x78] sm:$0xff]
      %2456 = vrot.lane.b32.xlu0 %v2426, 39
      %v2457 = vpop.permute.xlu0 %2456
      %2458 = vrot.lane.b32.xlu0 %v2427, 39
      %v2459 = vpop.permute.xlu0 %2458
      %2460 = vrot.lane.b32.xlu0 %v2428, 39
      %v2461 = vpop.permute.xlu0 %2460
      %2462 = vrot.lane.b32.xlu0 %v2429, 39
      %v2463 = vpop.permute.xlu0 %2462
      %2464 = vrot.lane.b32.xlu0 %v2430, 39
      %v2465 = vpop.permute.xlu0 %2464
      %2466 = vrot.lane.b32.xlu0 %v2431, 39
      %v2467 = vpop.permute.xlu0 %2466
      %2468 = vrot.lane.b32.xlu0 %v2432, 39
      %v2469 = vpop.permute.xlu0 %2468
      %2470 = vrot.lane.b32.xlu0 %v2433, 39
      %v2471 = vpop.permute.xlu0 %2470
      %2472 = vrot.lane.b32.xlu0 %v2434, 39
      %v2473 = vpop.permute.xlu0 %2472
      %2474 = vrot.lane.b32.xlu0 %v2435, 39
      %v2475 = vpop.permute.xlu0 %2474
      %2476 = vrot.lane.b32.xlu0 %v2436, 39
      %v2477 = vpop.permute.xlu0 %2476
      %2478 = vrot.lane.b32.xlu0 %v2437, 39
      %v2479 = vpop.permute.xlu0 %2478
      %2480 = vrot.lane.b32.xlu0 %v2438, 39
      %v2481 = vpop.permute.xlu0 %2480
      %2482 = vrot.lane.b32.xlu0 %v2439, 39
      %v2483 = vpop.permute.xlu0 %2482
      %2484 = vrot.lane.b32.xlu0 %v2440, 39
      %v2485 = vpop.permute.xlu0 %2484
      %vm2486 = vcmask 318464
      %v2487 = vsel %vm2486, %v2457, %v2459
      %v2488 = vsel %vm2486, %v2459, %v2461
      %v2489 = vsel %vm2486, %v2461, %v2463
      %v2490 = vsel %vm2486, %v2463, %v2465
      %v2491 = vsel %vm2486, %v2465, %v2467
      %v2492 = vsel %vm2486, %v2467, %v2469
      %v2493 = vsel %vm2486, %v2469, %v2471
      %v2494 = vsel %vm2486, %v2471, %v2473
      %v2495 = vsel %vm2486, %v2473, %v2475
      %v2496 = vsel %vm2486, %v2475, %v2477
      %v2497 = vsel %vm2486, %v2477, %v2479
      %v2498 = vsel %vm2486, %v2479, %v2481
      %v2499 = vsel %vm2486, %v2481, %v2483
      %v2500 = vsel %vm2486, %v2483, %v2485
      %2515 = vst [vmem:[#allocation3 + $0x7e0] sm:$0xff] %v2487
      %2516 = vst [vmem:[#allocation3 + $0x7e8] sm:$0xff] %v2488
      %2517 = vst [vmem:[#allocation3 + $0x7f0] sm:$0xff] %v2489
      %2518 = vst [vmem:[#allocation3 + $0x7f8] sm:$0xff] %v2490
      %2519 = vst [vmem:[#allocation3 + $0x800] sm:$0xff] %v2491
      %2520 = vst [vmem:[#allocation3 + $0x808] sm:$0xff] %v2492
      %2521 = vst [vmem:[#allocation3 + $0x810] sm:$0xff] %v2493
      %2522 = vst [vmem:[#allocation3 + $0x818] sm:$0xff] %v2494
      %2523 = vst [vmem:[#allocation3 + $0x820] sm:$0xff] %v2495
      %2524 = vst [vmem:[#allocation3 + $0x828] sm:$0xff] %v2496
      %2525 = vst [vmem:[#allocation3 + $0x830] sm:$0xff] %v2497
      %2526 = vst [vmem:[#allocation3 + $0x838] sm:$0xff] %v2498
      %2527 = vst [vmem:[#allocation3 + $0x840] sm:$0xff] %v2499
      %2528 = vst [vmem:[#allocation3 + $0x848] sm:$0xff] %v2500
      %v2529 = vld [vmem:[#allocation2 + $0x8] sm:$0xff]
      %v2530 = vld [vmem:[#allocation2 + $0x10] sm:$0xff]
      %v2531 = vld [vmem:[#allocation2 + $0x18] sm:$0xff]
      %v2532 = vld [vmem:[#allocation2 + $0x20] sm:$0xff]
      %v2533 = vld [vmem:[#allocation2 + $0x28] sm:$0xff]
      %v2534 = vld [vmem:[#allocation2 + $0x30] sm:$0xff]
      %v2535 = vld [vmem:[#allocation2 + $0x38] sm:$0xff]
      %v2536 = vld [vmem:[#allocation2 + $0x40] sm:$0xff]
      %v2537 = vld [vmem:[#allocation2 + $0x48] sm:$0xff]
      %v2538 = vld [vmem:[#allocation2 + $0x50] sm:$0xff]
      %v2539 = vld [vmem:[#allocation2 + $0x58] sm:$0xff]
      %v2540 = vld [vmem:[#allocation2 + $0x60] sm:$0xff]
      %v2541 = vld [vmem:[#allocation2 + $0x68] sm:$0xff]
      %v2542 = vld [vmem:[#allocation2 + $0x70] sm:$0xff]
      %v2543 = vld [vmem:[#allocation2 + $0x78] sm:$0xff]
      %2559 = vrot.lane.b32.xlu0 %v2529, 38
      %v2560 = vpop.permute.xlu0 %2559
      %2561 = vrot.lane.b32.xlu0 %v2530, 38
      %v2562 = vpop.permute.xlu0 %2561
      %2563 = vrot.lane.b32.xlu0 %v2531, 38
      %v2564 = vpop.permute.xlu0 %2563
      %2565 = vrot.lane.b32.xlu0 %v2532, 38
      %v2566 = vpop.permute.xlu0 %2565
      %2567 = vrot.lane.b32.xlu0 %v2533, 38
      %v2568 = vpop.permute.xlu0 %2567
      %2569 = vrot.lane.b32.xlu0 %v2534, 38
      %v2570 = vpop.permute.xlu0 %2569
      %2571 = vrot.lane.b32.xlu0 %v2535, 38
      %v2572 = vpop.permute.xlu0 %2571
      %2573 = vrot.lane.b32.xlu0 %v2536, 38
      %v2574 = vpop.permute.xlu0 %2573
      %2575 = vrot.lane.b32.xlu0 %v2537, 38
      %v2576 = vpop.permute.xlu0 %2575
      %2577 = vrot.lane.b32.xlu0 %v2538, 38
      %v2578 = vpop.permute.xlu0 %2577
      %2579 = vrot.lane.b32.xlu0 %v2539, 38
      %v2580 = vpop.permute.xlu0 %2579
      %2581 = vrot.lane.b32.xlu0 %v2540, 38
      %v2582 = vpop.permute.xlu0 %2581
      %2583 = vrot.lane.b32.xlu0 %v2541, 38
      %v2584 = vpop.permute.xlu0 %2583
      %2585 = vrot.lane.b32.xlu0 %v2542, 38
      %v2586 = vpop.permute.xlu0 %2585
      %2587 = vrot.lane.b32.xlu0 %v2543, 38
      %v2588 = vpop.permute.xlu0 %2587
      %vm2589 = vcmask 310272
      %v2590 = vsel %vm2589, %v2560, %v2562
      %v2591 = vsel %vm2589, %v2562, %v2564
      %v2592 = vsel %vm2589, %v2564, %v2566
      %v2593 = vsel %vm2589, %v2566, %v2568
      %v2594 = vsel %vm2589, %v2568, %v2570
      %v2595 = vsel %vm2589, %v2570, %v2572
      %v2596 = vsel %vm2589, %v2572, %v2574
      %v2597 = vsel %vm2589, %v2574, %v2576
      %v2598 = vsel %vm2589, %v2576, %v2578
      %v2599 = vsel %vm2589, %v2578, %v2580
      %v2600 = vsel %vm2589, %v2580, %v2582
      %v2601 = vsel %vm2589, %v2582, %v2584
      %v2602 = vsel %vm2589, %v2584, %v2586
      %v2603 = vsel %vm2589, %v2586, %v2588
      %2618 = vst [vmem:[#allocation3 + $0x850] sm:$0xff] %v2590
      %2619 = vst [vmem:[#allocation3 + $0x858] sm:$0xff] %v2591
      %2620 = vst [vmem:[#allocation3 + $0x860] sm:$0xff] %v2592
      %2621 = vst [vmem:[#allocation3 + $0x868] sm:$0xff] %v2593
      %2622 = vst [vmem:[#allocation3 + $0x870] sm:$0xff] %v2594
      %2623 = vst [vmem:[#allocation3 + $0x878] sm:$0xff] %v2595
      %2624 = vst [vmem:[#allocation3 + $0x880] sm:$0xff] %v2596
      %2625 = vst [vmem:[#allocation3 + $0x888] sm:$0xff] %v2597
      %2626 = vst [vmem:[#allocation3 + $0x890] sm:$0xff] %v2598
      %2627 = vst [vmem:[#allocation3 + $0x898] sm:$0xff] %v2599
      %2628 = vst [vmem:[#allocation3 + $0x8a0] sm:$0xff] %v2600
      %2629 = vst [vmem:[#allocation3 + $0x8a8] sm:$0xff] %v2601
      %2630 = vst [vmem:[#allocation3 + $0x8b0] sm:$0xff] %v2602
      %2631 = vst [vmem:[#allocation3 + $0x8b8] sm:$0xff] %v2603
      %v2632 = vld [vmem:[#allocation2 + $0x8] sm:$0xff]
      %v2633 = vld [vmem:[#allocation2 + $0x10] sm:$0xff]
      %v2634 = vld [vmem:[#allocation2 + $0x18] sm:$0xff]
      %v2635 = vld [vmem:[#allocation2 + $0x20] sm:$0xff]
      %v2636 = vld [vmem:[#allocation2 + $0x28] sm:$0xff]
      %v2637 = vld [vmem:[#allocation2 + $0x30] sm:$0xff]
      %v2638 = vld [vmem:[#allocation2 + $0x38] sm:$0xff]
      %v2639 = vld [vmem:[#allocation2 + $0x40] sm:$0xff]
      %v2640 = vld [vmem:[#allocation2 + $0x48] sm:$0xff]
      %v2641 = vld [vmem:[#allocation2 + $0x50] sm:$0xff]
      %v2642 = vld [vmem:[#allocation2 + $0x58] sm:$0xff]
      %v2643 = vld [vmem:[#allocation2 + $0x60] sm:$0xff]
      %v2644 = vld [vmem:[#allocation2 + $0x68] sm:$0xff]
      %v2645 = vld [vmem:[#allocation2 + $0x70] sm:$0xff]
      %v2646 = vld [vmem:[#allocation2 + $0x78] sm:$0xff]
      %2662 = vrot.lane.b32.xlu0 %v2632, 37
      %v2663 = vpop.permute.xlu0 %2662
      %2664 = vrot.lane.b32.xlu0 %v2633, 37
      %v2665 = vpop.permute.xlu0 %2664
      %2666 = vrot.lane.b32.xlu0 %v2634, 37
      %v2667 = vpop.permute.xlu0 %2666
      %2668 = vrot.lane.b32.xlu0 %v2635, 37
      %v2669 = vpop.permute.xlu0 %2668
      %2670 = vrot.lane.b32.xlu0 %v2636, 37
      %v2671 = vpop.permute.xlu0 %2670
      %2672 = vrot.lane.b32.xlu0 %v2637, 37
      %v2673 = vpop.permute.xlu0 %2672
      %2674 = vrot.lane.b32.xlu0 %v2638, 37
      %v2675 = vpop.permute.xlu0 %2674
      %2676 = vrot.lane.b32.xlu0 %v2639, 37
      %v2677 = vpop.permute.xlu0 %2676
      %2678 = vrot.lane.b32.xlu0 %v2640, 37
      %v2679 = vpop.permute.xlu0 %2678
      %2680 = vrot.lane.b32.xlu0 %v2641, 37
      %v2681 = vpop.permute.xlu0 %2680
      %2682 = vrot.lane.b32.xlu0 %v2642, 37
      %v2683 = vpop.permute.xlu0 %2682
      %2684 = vrot.lane.b32.xlu0 %v2643, 37
      %v2685 = vpop.permute.xlu0 %2684
      %2686 = vrot.lane.b32.xlu0 %v2644, 37
      %v2687 = vpop.permute.xlu0 %2686
      %2688 = vrot.lane.b32.xlu0 %v2645, 37
      %v2689 = vpop.permute.xlu0 %2688
      %2690 = vrot.lane.b32.xlu0 %v2646, 37
      %v2691 = vpop.permute.xlu0 %2690
      %vm2692 = vcmask 302080
      %v2693 = vsel %vm2692, %v2663, %v2665
      %v2694 = vsel %vm2692, %v2665, %v2667
      %v2695 = vsel %vm2692, %v2667, %v2669
      %v2696 = vsel %vm2692, %v2669, %v2671
      %v2697 = vsel %vm2692, %v2671, %v2673
      %v2698 = vsel %vm2692, %v2673, %v2675
      %v2699 = vsel %vm2692, %v2675, %v2677
      %v2700 = vsel %vm2692, %v2677, %v2679
      %v2701 = vsel %vm2692, %v2679, %v2681
      %v2702 = vsel %vm2692, %v2681, %v2683
      %v2703 = vsel %vm2692, %v2683, %v2685
      %v2704 = vsel %vm2692, %v2685, %v2687
      %v2705 = vsel %vm2692, %v2687, %v2689
      %v2706 = vsel %vm2692, %v2689, %v2691
      %2721 = vst [vmem:[#allocation3 + $0x8c0] sm:$0xff] %v2693
      %2722 = vst [vmem:[#allocation3 + $0x8c8] sm:$0xff] %v2694
      %2723 = vst [vmem:[#allocation3 + $0x8d0] sm:$0xff] %v2695
      %2724 = vst [vmem:[#allocation3 + $0x8d8] sm:$0xff] %v2696
      %2725 = vst [vmem:[#allocation3 + $0x8e0] sm:$0xff] %v2697
      %2726 = vst [vmem:[#allocation3 + $0x8e8] sm:$0xff] %v2698
      %2727 = vst [vmem:[#allocation3 + $0x8f0] sm:$0xff] %v2699
      %2728 = vst [vmem:[#allocation3 + $0x8f8] sm:$0xff] %v2700
      %2729 = vst [vmem:[#allocation3 + $0x900] sm:$0xff] %v2701
      %2730 = vst [vmem:[#allocation3 + $0x908] sm:$0xff] %v2702
      %2731 = vst [vmem:[#allocation3 + $0x910] sm:$0xff] %v2703
      %2732 = vst [vmem:[#allocation3 + $0x918] sm:$0xff] %v2704
      %2733 = vst [vmem:[#allocation3 + $0x920] sm:$0xff] %v2705
      %2734 = vst [vmem:[#allocation3 + $0x928] sm:$0xff] %v2706
      %v2735 = vld [vmem:[#allocation2 + $0x8] sm:$0xff]
      %v2736 = vld [vmem:[#allocation2 + $0x10] sm:$0xff]
      %v2737 = vld [vmem:[#allocation2 + $0x18] sm:$0xff]
      %v2738 = vld [vmem:[#allocation2 + $0x20] sm:$0xff]
      %v2739 = vld [vmem:[#allocation2 + $0x28] sm:$0xff]
      %v2740 = vld [vmem:[#allocation2 + $0x30] sm:$0xff]
      %v2741 = vld [vmem:[#allocation2 + $0x38] sm:$0xff]
      %v2742 = vld [vmem:[#allocation2 + $0x40] sm:$0xff]
      %v2743 = vld [vmem:[#allocation2 + $0x48] sm:$0xff]
      %v2744 = vld [vmem:[#allocation2 + $0x50] sm:$0xff]
      %v2745 = vld [vmem:[#allocation2 + $0x58] sm:$0xff]
      %v2746 = vld [vmem:[#allocation2 + $0x60] sm:$0xff]
      %v2747 = vld [vmem:[#allocation2 + $0x68] sm:$0xff]
      %v2748 = vld [vmem:[#allocation2 + $0x70] sm:$0xff]
      %v2749 = vld [vmem:[#allocation2 + $0x78] sm:$0xff]
      %2765 = vrot.lane.b32.xlu0 %v2735, 29
      %v2766 = vpop.permute.xlu0 %2765
      %2767 = vrot.lane.b32.xlu0 %v2736, 29
      %v2768 = vpop.permute.xlu0 %2767
      %2769 = vrot.lane.b32.xlu0 %v2737, 29
      %v2770 = vpop.permute.xlu0 %2769
      %2771 = vrot.lane.b32.xlu0 %v2738, 29
      %v2772 = vpop.permute.xlu0 %2771
      %2773 = vrot.lane.b32.xlu0 %v2739, 29
      %v2774 = vpop.permute.xlu0 %2773
      %2775 = vrot.lane.b32.xlu0 %v2740, 29
      %v2776 = vpop.permute.xlu0 %2775
      %2777 = vrot.lane.b32.xlu0 %v2741, 29
      %v2778 = vpop.permute.xlu0 %2777
      %2779 = vrot.lane.b32.xlu0 %v2742, 29
      %v2780 = vpop.permute.xlu0 %2779
      %2781 = vrot.lane.b32.xlu0 %v2743, 29
      %v2782 = vpop.permute.xlu0 %2781
      %2783 = vrot.lane.b32.xlu0 %v2744, 29
      %v2784 = vpop.permute.xlu0 %2783
      %2785 = vrot.lane.b32.xlu0 %v2745, 29
      %v2786 = vpop.permute.xlu0 %2785
      %2787 = vrot.lane.b32.xlu0 %v2746, 29
      %v2788 = vpop.permute.xlu0 %2787
      %2789 = vrot.lane.b32.xlu0 %v2747, 29
      %v2790 = vpop.permute.xlu0 %2789
      %2791 = vrot.lane.b32.xlu0 %v2748, 29
      %v2792 = vpop.permute.xlu0 %2791
      %2793 = vrot.lane.b32.xlu0 %v2749, 29
      %v2794 = vpop.permute.xlu0 %2793
      %vm2795 = vcmask 236544
      %v2796 = vsel %vm2795, %v2766, %v2768
      %v2797 = vsel %vm2795, %v2768, %v2770
      %v2798 = vsel %vm2795, %v2770, %v2772
      %v2799 = vsel %vm2795, %v2772, %v2774
      %v2800 = vsel %vm2795, %v2774, %v2776
      %v2801 = vsel %vm2795, %v2776, %v2778
      %v2802 = vsel %vm2795, %v2778, %v2780
      %v2803 = vsel %vm2795, %v2780, %v2782
      %v2804 = vsel %vm2795, %v2782, %v2784
      %v2805 = vsel %vm2795, %v2784, %v2786
      %v2806 = vsel %vm2795, %v2786, %v2788
      %v2807 = vsel %vm2795, %v2788, %v2790
      %v2808 = vsel %vm2795, %v2790, %v2792
      %v2809 = vsel %vm2795, %v2792, %v2794
      %2824 = vst [vmem:[#allocation3 + $0x930] sm:$0xff] %v2796
      %2825 = vst [vmem:[#allocation3 + $0x938] sm:$0xff] %v2797
      %2826 = vst [vmem:[#allocation3 + $0x940] sm:$0xff] %v2798
      %2827 = vst [vmem:[#allocation3 + $0x948] sm:$0xff] %v2799
      %2828 = vst [vmem:[#allocation3 + $0x950] sm:$0xff] %v2800
      %2829 = vst [vmem:[#allocation3 + $0x958] sm:$0xff] %v2801
      %2830 = vst [vmem:[#allocation3 + $0x960] sm:$0xff] %v2802
      %2831 = vst [vmem:[#allocation3 + $0x968] sm:$0xff] %v2803
      %2832 = vst [vmem:[#allocation3 + $0x970] sm:$0xff] %v2804
      %2833 = vst [vmem:[#allocation3 + $0x978] sm:$0xff] %v2805
      %2834 = vst [vmem:[#allocation3 + $0x980] sm:$0xff] %v2806
      %2835 = vst [vmem:[#allocation3 + $0x988] sm:$0xff] %v2807
      %2836 = vst [vmem:[#allocation3 + $0x990] sm:$0xff] %v2808
      %2837 = vst [vmem:[#allocation3 + $0x998] sm:$0xff] %v2809
      %v2838 = vld [vmem:[#allocation2 + $0x8] sm:$0xff]
      %v2839 = vld [vmem:[#allocation2 + $0x10] sm:$0xff]
      %v2840 = vld [vmem:[#allocation2 + $0x18] sm:$0xff]
      %v2841 = vld [vmem:[#allocation2 + $0x20] sm:$0xff]
      %v2842 = vld [vmem:[#allocation2 + $0x28] sm:$0xff]
      %v2843 = vld [vmem:[#allocation2 + $0x30] sm:$0xff]
      %v2844 = vld [vmem:[#allocation2 + $0x38] sm:$0xff]
      %v2845 = vld [vmem:[#allocation2 + $0x40] sm:$0xff]
      %v2846 = vld [vmem:[#allocation2 + $0x48] sm:$0xff]
      %v2847 = vld [vmem:[#allocation2 + $0x50] sm:$0xff]
      %v2848 = vld [vmem:[#allocation2 + $0x58] sm:$0xff]
      %v2849 = vld [vmem:[#allocation2 + $0x60] sm:$0xff]
      %v2850 = vld [vmem:[#allocation2 + $0x68] sm:$0xff]
      %v2851 = vld [vmem:[#allocation2 + $0x70] sm:$0xff]
      %v2852 = vld [vmem:[#allocation2 + $0x78] sm:$0xff]
      %2868 = vrot.lane.b32.xlu0 %v2838, 28
      %v2869 = vpop.permute.xlu0 %2868
      %2870 = vrot.lane.b32.xlu0 %v2839, 28
      %v2871 = vpop.permute.xlu0 %2870
      %2872 = vrot.lane.b32.xlu0 %v2840, 28
      %v2873 = vpop.permute.xlu0 %2872
      %2874 = vrot.lane.b32.xlu0 %v2841, 28
      %v2875 = vpop.permute.xlu0 %2874
      %2876 = vrot.lane.b32.xlu0 %v2842, 28
      %v2877 = vpop.permute.xlu0 %2876
      %2878 = vrot.lane.b32.xlu0 %v2843, 28
      %v2879 = vpop.permute.xlu0 %2878
      %2880 = vrot.lane.b32.xlu0 %v2844, 28
      %v2881 = vpop.permute.xlu0 %2880
      %2882 = vrot.lane.b32.xlu0 %v2845, 28
      %v2883 = vpop.permute.xlu0 %2882
      %2884 = vrot.lane.b32.xlu0 %v2846, 28
      %v2885 = vpop.permute.xlu0 %2884
      %2886 = vrot.lane.b32.xlu0 %v2847, 28
      %v2887 = vpop.permute.xlu0 %2886
      %2888 = vrot.lane.b32.xlu0 %v2848, 28
      %v2889 = vpop.permute.xlu0 %2888
      %2890 = vrot.lane.b32.xlu0 %v2849, 28
      %v2891 = vpop.permute.xlu0 %2890
      %2892 = vrot.lane.b32.xlu0 %v2850, 28
      %v2893 = vpop.permute.xlu0 %2892
      %2894 = vrot.lane.b32.xlu0 %v2851, 28
      %v2895 = vpop.permute.xlu0 %2894
      %2896 = vrot.lane.b32.xlu0 %v2852, 28
      %v2897 = vpop.permute.xlu0 %2896
      %vm2898 = vcmask 228352
      %v2899 = vsel %vm2898, %v2869, %v2871
      %v2900 = vsel %vm2898, %v2871, %v2873
      %v2901 = vsel %vm2898, %v2873, %v2875
      %v2902 = vsel %vm2898, %v2875, %v2877
      %v2903 = vsel %vm2898, %v2877, %v2879
      %v2904 = vsel %vm2898, %v2879, %v2881
      %v2905 = vsel %vm2898, %v2881, %v2883
      %v2906 = vsel %vm2898, %v2883, %v2885
      %v2907 = vsel %vm2898, %v2885, %v2887
      %v2908 = vsel %vm2898, %v2887, %v2889
      %v2909 = vsel %vm2898, %v2889, %v2891
      %v2910 = vsel %vm2898, %v2891, %v2893
      %v2911 = vsel %vm2898, %v2893, %v2895
      %v2912 = vsel %vm2898, %v2895, %v2897
      %2927 = vst [vmem:[#allocation3 + $0x9a0] sm:$0xff] %v2899
      %2928 = vst [vmem:[#allocation3 + $0x9a8] sm:$0xff] %v2900
      %2929 = vst [vmem:[#allocation3 + $0x9b0] sm:$0xff] %v2901
      %2930 = vst [vmem:[#allocation3 + $0x9b8] sm:$0xff] %v2902
      %2931 = vst [vmem:[#allocation3 + $0x9c0] sm:$0xff] %v2903
      %2932 = vst [vmem:[#allocation3 + $0x9c8] sm:$0xff] %v2904
      %2933 = vst [vmem:[#allocation3 + $0x9d0] sm:$0xff] %v2905
      %2934 = vst [vmem:[#allocation3 + $0x9d8] sm:$0xff] %v2906
      %2935 = vst [vmem:[#allocation3 + $0x9e0] sm:$0xff] %v2907
      %2936 = vst [vmem:[#allocation3 + $0x9e8] sm:$0xff] %v2908
      %2937 = vst [vmem:[#allocation3 + $0x9f0] sm:$0xff] %v2909
      %2938 = vst [vmem:[#allocation3 + $0x9f8] sm:$0xff] %v2910
      %2939 = vst [vmem:[#allocation3 + $0xa00] sm:$0xff] %v2911
      %2940 = vst [vmem:[#allocation3 + $0xa08] sm:$0xff] %v2912
      %v2941 = vld [vmem:[#allocation2 + $0x8] sm:$0xff]
      %v2942 = vld [vmem:[#allocation2 + $0x10] sm:$0xff]
      %v2943 = vld [vmem:[#allocation2 + $0x18] sm:$0xff]
      %v2944 = vld [vmem:[#allocation2 + $0x20] sm:$0xff]
      %v2945 = vld [vmem:[#allocation2 + $0x28] sm:$0xff]
      %v2946 = vld [vmem:[#allocation2 + $0x30] sm:$0xff]
      %v2947 = vld [vmem:[#allocation2 + $0x38] sm:$0xff]
      %v2948 = vld [vmem:[#allocation2 + $0x40] sm:$0xff]
      %v2949 = vld [vmem:[#allocation2 + $0x48] sm:$0xff]
      %v2950 = vld [vmem:[#allocation2 + $0x50] sm:$0xff]
      %v2951 = vld [vmem:[#allocation2 + $0x58] sm:$0xff]
      %v2952 = vld [vmem:[#allocation2 + $0x60] sm:$0xff]
      %v2953 = vld [vmem:[#allocation2 + $0x68] sm:$0xff]
      %v2954 = vld [vmem:[#allocation2 + $0x70] sm:$0xff]
      %v2955 = vld [vmem:[#allocation2 + $0x78] sm:$0xff]
      %2971 = vrot.lane.b32.xlu0 %v2941, 27
      %v2972 = vpop.permute.xlu0 %2971
      %2973 = vrot.lane.b32.xlu0 %v2942, 27
      %v2974 = vpop.permute.xlu0 %2973
      %2975 = vrot.lane.b32.xlu0 %v2943, 27
      %v2976 = vpop.permute.xlu0 %2975
      %2977 = vrot.lane.b32.xlu0 %v2944, 27
      %v2978 = vpop.permute.xlu0 %2977
      %2979 = vrot.lane.b32.xlu0 %v2945, 27
      %v2980 = vpop.permute.xlu0 %2979
      %2981 = vrot.lane.b32.xlu0 %v2946, 27
      %v2982 = vpop.permute.xlu0 %2981
      %2983 = vrot.lane.b32.xlu0 %v2947, 27
      %v2984 = vpop.permute.xlu0 %2983
      %2985 = vrot.lane.b32.xlu0 %v2948, 27
      %v2986 = vpop.permute.xlu0 %2985
      %2987 = vrot.lane.b32.xlu0 %v2949, 27
      %v2988 = vpop.permute.xlu0 %2987
      %2989 = vrot.lane.b32.xlu0 %v2950, 27
      %v2990 = vpop.permute.xlu0 %2989
      %2991 = vrot.lane.b32.xlu0 %v2951, 27
      %v2992 = vpop.permute.xlu0 %2991
      %2993 = vrot.lane.b32.xlu0 %v2952, 27
      %v2994 = vpop.permute.xlu0 %2993
      %2995 = vrot.lane.b32.xlu0 %v2953, 27
      %v2996 = vpop.permute.xlu0 %2995
      %2997 = vrot.lane.b32.xlu0 %v2954, 27
      %v2998 = vpop.permute.xlu0 %2997
      %2999 = vrot.lane.b32.xlu0 %v2955, 27
      %v3000 = vpop.permute.xlu0 %2999
      %vm3001 = vcmask 220160
      %v3002 = vsel %vm3001, %v2972, %v2974
      %v3003 = vsel %vm3001, %v2974, %v2976
      %v3004 = vsel %vm3001, %v2976, %v2978
      %v3005 = vsel %vm3001, %v2978, %v2980
      %v3006 = vsel %vm3001, %v2980, %v2982
      %v3007 = vsel %vm3001, %v2982, %v2984
      %v3008 = vsel %vm3001, %v2984, %v2986
      %v3009 = vsel %vm3001, %v2986, %v2988
      %v3010 = vsel %vm3001, %v2988, %v2990
      %v3011 = vsel %vm3001, %v2990, %v2992
      %v3012 = vsel %vm3001, %v2992, %v2994
      %v3013 = vsel %vm3001, %v2994, %v2996
      %v3014 = vsel %vm3001, %v2996, %v2998
      %v3015 = vsel %vm3001, %v2998, %v3000
      %3030 = vst [vmem:[#allocation3 + $0xa10] sm:$0xff] %v3002
      %3031 = vst [vmem:[#allocation3 + $0xa18] sm:$0xff] %v3003
      %3032 = vst [vmem:[#allocation3 + $0xa20] sm:$0xff] %v3004
      %3033 = vst [vmem:[#allocation3 + $0xa28] sm:$0xff] %v3005
      %3034 = vst [vmem:[#allocation3 + $0xa30] sm:$0xff] %v3006
      %3035 = vst [vmem:[#allocation3 + $0xa38] sm:$0xff] %v3007
      %3036 = vst [vmem:[#allocation3 + $0xa40] sm:$0xff] %v3008
      %3037 = vst [vmem:[#allocation3 + $0xa48] sm:$0xff] %v3009
      %3038 = vst [vmem:[#allocation3 + $0xa50] sm:$0xff] %v3010
      %3039 = vst [vmem:[#allocation3 + $0xa58] sm:$0xff] %v3011
      %3040 = vst [vmem:[#allocation3 + $0xa60] sm:$0xff] %v3012
      %3041 = vst [vmem:[#allocation3 + $0xa68] sm:$0xff] %v3013
      %3042 = vst [vmem:[#allocation3 + $0xa70] sm:$0xff] %v3014
      %3043 = vst [vmem:[#allocation3 + $0xa78] sm:$0xff] %v3015
      %v3044 = vld [vmem:[#allocation2 + $0x8] sm:$0xff]
      %v3045 = vld [vmem:[#allocation2 + $0x10] sm:$0xff]
      %v3046 = vld [vmem:[#allocation2 + $0x18] sm:$0xff]
      %v3047 = vld [vmem:[#allocation2 + $0x20] sm:$0xff]
      %v3048 = vld [vmem:[#allocation2 + $0x28] sm:$0xff]
      %v3049 = vld [vmem:[#allocation2 + $0x30] sm:$0xff]
      %v3050 = vld [vmem:[#allocation2 + $0x38] sm:$0xff]
      %v3051 = vld [vmem:[#allocation2 + $0x40] sm:$0xff]
      %v3052 = vld [vmem:[#allocation2 + $0x48] sm:$0xff]
      %v3053 = vld [vmem:[#allocation2 + $0x50] sm:$0xff]
      %v3054 = vld [vmem:[#allocation2 + $0x58] sm:$0xff]
      %v3055 = vld [vmem:[#allocation2 + $0x60] sm:$0xff]
      %v3056 = vld [vmem:[#allocation2 + $0x68] sm:$0xff]
      %v3057 = vld [vmem:[#allocation2 + $0x70] sm:$0xff]
      %v3058 = vld [vmem:[#allocation2 + $0x78] sm:$0xff]
      %3074 = vrot.lane.b32.xlu0 %v3044, 19
      %v3075 = vpop.permute.xlu0 %3074
      %3076 = vrot.lane.b32.xlu0 %v3045, 19
      %v3077 = vpop.permute.xlu0 %3076
      %3078 = vrot.lane.b32.xlu0 %v3046, 19
      %v3079 = vpop.permute.xlu0 %3078
      %3080 = vrot.lane.b32.xlu0 %v3047, 19
      %v3081 = vpop.permute.xlu0 %3080
      %3082 = vrot.lane.b32.xlu0 %v3048, 19
      %v3083 = vpop.permute.xlu0 %3082
      %3084 = vrot.lane.b32.xlu0 %v3049, 19
      %v3085 = vpop.permute.xlu0 %3084
      %3086 = vrot.lane.b32.xlu0 %v3050, 19
      %v3087 = vpop.permute.xlu0 %3086
      %3088 = vrot.lane.b32.xlu0 %v3051, 19
      %v3089 = vpop.permute.xlu0 %3088
      %3090 = vrot.lane.b32.xlu0 %v3052, 19
      %v3091 = vpop.permute.xlu0 %3090
      %3092 = vrot.lane.b32.xlu0 %v3053, 19
      %v3093 = vpop.permute.xlu0 %3092
      %3094 = vrot.lane.b32.xlu0 %v3054, 19
      %v3095 = vpop.permute.xlu0 %3094
      %3096 = vrot.lane.b32.xlu0 %v3055, 19
      %v3097 = vpop.permute.xlu0 %3096
      %3098 = vrot.lane.b32.xlu0 %v3056, 19
      %v3099 = vpop.permute.xlu0 %3098
      %3100 = vrot.lane.b32.xlu0 %v3057, 19
      %v3101 = vpop.permute.xlu0 %3100
      %3102 = vrot.lane.b32.xlu0 %v3058, 19
      %v3103 = vpop.permute.xlu0 %3102
      %vm3104 = vcmask 154624
      %v3105 = vsel %vm3104, %v3075, %v3077
      %v3106 = vsel %vm3104, %v3077, %v3079
      %v3107 = vsel %vm3104, %v3079, %v3081
      %v3108 = vsel %vm3104, %v3081, %v3083
      %v3109 = vsel %vm3104, %v3083, %v3085
      %v3110 = vsel %vm3104, %v3085, %v3087
      %v3111 = vsel %vm3104, %v3087, %v3089
      %v3112 = vsel %vm3104, %v3089, %v3091
      %v3113 = vsel %vm3104, %v3091, %v3093
      %v3114 = vsel %vm3104, %v3093, %v3095
      %v3115 = vsel %vm3104, %v3095, %v3097
      %v3116 = vsel %vm3104, %v3097, %v3099
      %v3117 = vsel %vm3104, %v3099, %v3101
      %v3118 = vsel %vm3104, %v3101, %v3103
      %3133 = vst [vmem:[#allocation3 + $0xa80] sm:$0xff] %v3105
      %3134 = vst [vmem:[#allocation3 + $0xa88] sm:$0xff] %v3106
      %3135 = vst [vmem:[#allocation3 + $0xa90] sm:$0xff] %v3107
      %3136 = vst [vmem:[#allocation3 + $0xa98] sm:$0xff] %v3108
      %3137 = vst [vmem:[#allocation3 + $0xaa0] sm:$0xff] %v3109
      %3138 = vst [vmem:[#allocation3 + $0xaa8] sm:$0xff] %v3110
      %3139 = vst [vmem:[#allocation3 + $0xab0] sm:$0xff] %v3111
      %3140 = vst [vmem:[#allocation3 + $0xab8] sm:$0xff] %v3112
      %3141 = vst [vmem:[#allocation3 + $0xac0] sm:$0xff] %v3113
      %3142 = vst [vmem:[#allocation3 + $0xac8] sm:$0xff] %v3114
      %3143 = vst [vmem:[#allocation3 + $0xad0] sm:$0xff] %v3115
      %3144 = vst [vmem:[#allocation3 + $0xad8] sm:$0xff] %v3116
      %3145 = vst [vmem:[#allocation3 + $0xae0] sm:$0xff] %v3117
      %3146 = vst [vmem:[#allocation3 + $0xae8] sm:$0xff] %v3118
      %v3147 = vld [vmem:[#allocation2 + $0x8] sm:$0xff]
      %v3148 = vld [vmem:[#allocation2 + $0x10] sm:$0xff]
      %v3149 = vld [vmem:[#allocation2 + $0x18] sm:$0xff]
      %v3150 = vld [vmem:[#allocation2 + $0x20] sm:$0xff]
      %v3151 = vld [vmem:[#allocation2 + $0x28] sm:$0xff]
      %v3152 = vld [vmem:[#allocation2 + $0x30] sm:$0xff]
      %v3153 = vld [vmem:[#allocation2 + $0x38] sm:$0xff]
      %v3154 = vld [vmem:[#allocation2 + $0x40] sm:$0xff]
      %v3155 = vld [vmem:[#allocation2 + $0x48] sm:$0xff]
      %v3156 = vld [vmem:[#allocation2 + $0x50] sm:$0xff]
      %v3157 = vld [vmem:[#allocation2 + $0x58] sm:$0xff]
      %v3158 = vld [vmem:[#allocation2 + $0x60] sm:$0xff]
      %v3159 = vld [vmem:[#allocation2 + $0x68] sm:$0xff]
      %v3160 = vld [vmem:[#allocation2 + $0x70] sm:$0xff]
      %v3161 = vld [vmem:[#allocation2 + $0x78] sm:$0xff]
      %3177 = vrot.lane.b32.xlu0 %v3147, 18
      %v3178 = vpop.permute.xlu0 %3177
      %3179 = vrot.lane.b32.xlu0 %v3148, 18
      %v3180 = vpop.permute.xlu0 %3179
      %3181 = vrot.lane.b32.xlu0 %v3149, 18
      %v3182 = vpop.permute.xlu0 %3181
      %3183 = vrot.lane.b32.xlu0 %v3150, 18
      %v3184 = vpop.permute.xlu0 %3183
      %3185 = vrot.lane.b32.xlu0 %v3151, 18
      %v3186 = vpop.permute.xlu0 %3185
      %3187 = vrot.lane.b32.xlu0 %v3152, 18
      %v3188 = vpop.permute.xlu0 %3187
      %3189 = vrot.lane.b32.xlu0 %v3153, 18
      %v3190 = vpop.permute.xlu0 %3189
      %3191 = vrot.lane.b32.xlu0 %v3154, 18
      %v3192 = vpop.permute.xlu0 %3191
      %3193 = vrot.lane.b32.xlu0 %v3155, 18
      %v3194 = vpop.permute.xlu0 %3193
      %3195 = vrot.lane.b32.xlu0 %v3156, 18
      %v3196 = vpop.permute.xlu0 %3195
      %3197 = vrot.lane.b32.xlu0 %v3157, 18
      %v3198 = vpop.permute.xlu0 %3197
      %3199 = vrot.lane.b32.xlu0 %v3158, 18
      %v3200 = vpop.permute.xlu0 %3199
      %3201 = vrot.lane.b32.xlu0 %v3159, 18
      %v3202 = vpop.permute.xlu0 %3201
      %3203 = vrot.lane.b32.xlu0 %v3160, 18
      %v3204 = vpop.permute.xlu0 %3203
      %3205 = vrot.lane.b32.xlu0 %v3161, 18
      %v3206 = vpop.permute.xlu0 %3205
      %vm3207 = vcmask 146432
      %v3208 = vsel %vm3207, %v3178, %v3180
      %v3209 = vsel %vm3207, %v3180, %v3182
      %v3210 = vsel %vm3207, %v3182, %v3184
      %v3211 = vsel %vm3207, %v3184, %v3186
      %v3212 = vsel %vm3207, %v3186, %v3188
      %v3213 = vsel %vm3207, %v3188, %v3190
      %v3214 = vsel %vm3207, %v3190, %v3192
      %v3215 = vsel %vm3207, %v3192, %v3194
      %v3216 = vsel %vm3207, %v3194, %v3196
      %v3217 = vsel %vm3207, %v3196, %v3198
      %v3218 = vsel %vm3207, %v3198, %v3200
      %v3219 = vsel %vm3207, %v3200, %v3202
      %v3220 = vsel %vm3207, %v3202, %v3204
      %v3221 = vsel %vm3207, %v3204, %v3206
      %3236 = vst [vmem:[#allocation3 + $0xaf0] sm:$0xff] %v3208
      %3237 = vst [vmem:[#allocation3 + $0xaf8] sm:$0xff] %v3209
      %3238 = vst [vmem:[#allocation3 + $0xb00] sm:$0xff] %v3210
      %3239 = vst [vmem:[#allocation3 + $0xb08] sm:$0xff] %v3211
      %3240 = vst [vmem:[#allocation3 + $0xb10] sm:$0xff] %v3212
      %3241 = vst [vmem:[#allocation3 + $0xb18] sm:$0xff] %v3213
      %3242 = vst [vmem:[#allocation3 + $0xb20] sm:$0xff] %v3214
      %3243 = vst [vmem:[#allocation3 + $0xb28] sm:$0xff] %v3215
      %3244 = vst [vmem:[#allocation3 + $0xb30] sm:$0xff] %v3216
      %3245 = vst [vmem:[#allocation3 + $0xb38] sm:$0xff] %v3217
      %3246 = vst [vmem:[#allocation3 + $0xb40] sm:$0xff] %v3218
      %3247 = vst [vmem:[#allocation3 + $0xb48] sm:$0xff] %v3219
      %3248 = vst [vmem:[#allocation3 + $0xb50] sm:$0xff] %v3220
      %3249 = vst [vmem:[#allocation3 + $0xb58] sm:$0xff] %v3221
      %v3250 = vld [vmem:[#allocation2 + $0x8] sm:$0xff]
      %v3251 = vld [vmem:[#allocation2 + $0x10] sm:$0xff]
      %v3252 = vld [vmem:[#allocation2 + $0x18] sm:$0xff]
      %v3253 = vld [vmem:[#allocation2 + $0x20] sm:$0xff]
      %v3254 = vld [vmem:[#allocation2 + $0x28] sm:$0xff]
      %v3255 = vld [vmem:[#allocation2 + $0x30] sm:$0xff]
      %v3256 = vld [vmem:[#allocation2 + $0x38] sm:$0xff]
      %v3257 = vld [vmem:[#allocation2 + $0x40] sm:$0xff]
      %v3258 = vld [vmem:[#allocation2 + $0x48] sm:$0xff]
      %v3259 = vld [vmem:[#allocation2 + $0x50] sm:$0xff]
      %v3260 = vld [vmem:[#allocation2 + $0x58] sm:$0xff]
      %v3261 = vld [vmem:[#allocation2 + $0x60] sm:$0xff]
      %v3262 = vld [vmem:[#allocation2 + $0x68] sm:$0xff]
      %v3263 = vld [vmem:[#allocation2 + $0x70] sm:$0xff]
      %v3264 = vld [vmem:[#allocation2 + $0x78] sm:$0xff]
      %3280 = vrot.lane.b32.xlu0 %v3250, 17
      %v3281 = vpop.permute.xlu0 %3280
      %3282 = vrot.lane.b32.xlu0 %v3251, 17
      %v3283 = vpop.permute.xlu0 %3282
      %3284 = vrot.lane.b32.xlu0 %v3252, 17
      %v3285 = vpop.permute.xlu0 %3284
      %3286 = vrot.lane.b32.xlu0 %v3253, 17
      %v3287 = vpop.permute.xlu0 %3286
      %3288 = vrot.lane.b32.xlu0 %v3254, 17
      %v3289 = vpop.permute.xlu0 %3288
      %3290 = vrot.lane.b32.xlu0 %v3255, 17
      %v3291 = vpop.permute.xlu0 %3290
      %3292 = vrot.lane.b32.xlu0 %v3256, 17
      %v3293 = vpop.permute.xlu0 %3292
      %3294 = vrot.lane.b32.xlu0 %v3257, 17
      %v3295 = vpop.permute.xlu0 %3294
      %3296 = vrot.lane.b32.xlu0 %v3258, 17
      %v3297 = vpop.permute.xlu0 %3296
      %3298 = vrot.lane.b32.xlu0 %v3259, 17
      %v3299 = vpop.permute.xlu0 %3298
      %3300 = vrot.lane.b32.xlu0 %v3260, 17
      %v3301 = vpop.permute.xlu0 %3300
      %3302 = vrot.lane.b32.xlu0 %v3261, 17
      %v3303 = vpop.permute.xlu0 %3302
      %3304 = vrot.lane.b32.xlu0 %v3262, 17
      %v3305 = vpop.permute.xlu0 %3304
      %3306 = vrot.lane.b32.xlu0 %v3263, 17
      %v3307 = vpop.permute.xlu0 %3306
      %3308 = vrot.lane.b32.xlu0 %v3264, 17
      %v3309 = vpop.permute.xlu0 %3308
      %vm3310 = vcmask 138240
      %v3311 = vsel %vm3310, %v3281, %v3283
      %v3312 = vsel %vm3310, %v3283, %v3285
      %v3313 = vsel %vm3310, %v3285, %v3287
      %v3314 = vsel %vm3310, %v3287, %v3289
      %v3315 = vsel %vm3310, %v3289, %v3291
      %v3316 = vsel %vm3310, %v3291, %v3293
      %v3317 = vsel %vm3310, %v3293, %v3295
      %v3318 = vsel %vm3310, %v3295, %v3297
      %v3319 = vsel %vm3310, %v3297, %v3299
      %v3320 = vsel %vm3310, %v3299, %v3301
      %v3321 = vsel %vm3310, %v3301, %v3303
      %v3322 = vsel %vm3310, %v3303, %v3305
      %v3323 = vsel %vm3310, %v3305, %v3307
      %v3324 = vsel %vm3310, %v3307, %v3309
      %3339 = vst [vmem:[#allocation3 + $0xb60] sm:$0xff] %v3311
      %3340 = vst [vmem:[#allocation3 + $0xb68] sm:$0xff] %v3312
      %3341 = vst [vmem:[#allocation3 + $0xb70] sm:$0xff] %v3313
      %3342 = vst [vmem:[#allocation3 + $0xb78] sm:$0xff] %v3314
      %3343 = vst [vmem:[#allocation3 + $0xb80] sm:$0xff] %v3315
      %3344 = vst [vmem:[#allocation3 + $0xb88] sm:$0xff] %v3316
      %3345 = vst [vmem:[#allocation3 + $0xb90] sm:$0xff] %v3317
      %3346 = vst [vmem:[#allocation3 + $0xb98] sm:$0xff] %v3318
      %3347 = vst [vmem:[#allocation3 + $0xba0] sm:$0xff] %v3319
      %3348 = vst [vmem:[#allocation3 + $0xba8] sm:$0xff] %v3320
      %3349 = vst [vmem:[#allocation3 + $0xbb0] sm:$0xff] %v3321
      %3350 = vst [vmem:[#allocation3 + $0xbb8] sm:$0xff] %v3322
      %3351 = vst [vmem:[#allocation3 + $0xbc0] sm:$0xff] %v3323
      %3352 = vst [vmem:[#allocation3 + $0xbc8] sm:$0xff] %v3324
      %v3353 = vld [vmem:[%s1] sm:$0xff]
      %v3354 = vld [vmem:[%s1 + $0x8] sm:$0xff]
      %v3355 = vld [vmem:[#allocation3] sm:$0xff]
      %v3356 = vld [vmem:[#allocation3 + $0x8] sm:$0xff]
      %v3357 = vld [vmem:[#allocation3 + $0x10] sm:$0xff]
      %v3358 = vld [vmem:[#allocation3 + $0x18] sm:$0xff]
      %v3359 = vld [vmem:[#allocation3 + $0x20] sm:$0xff]
      %v3360 = vld [vmem:[#allocation3 + $0x28] sm:$0xff]
      %v3361 = vld [vmem:[#allocation3 + $0x30] sm:$0xff]
      %v3362 = vld [vmem:[#allocation3 + $0x38] sm:$0xff]
      %v3363 = vld [vmem:[#allocation3 + $0x40] sm:$0xff]
      %v3364 = vld [vmem:[#allocation3 + $0x48] sm:$0xff]
      %v3365 = vld [vmem:[#allocation3 + $0x50] sm:$0xff]
      %v3366 = vld [vmem:[#allocation3 + $0x58] sm:$0xff]
      %v3367 = vld [vmem:[#allocation3 + $0x60] sm:$0xff]
      %v3368 = vld [vmem:[#allocation3 + $0x68] sm:$0xff]
      %v3369 = vld [vmem:[#allocation3 + $0x70] sm:$0xff]
      %v3370 = vld [vmem:[#allocation3 + $0x78] sm:$0xff]
      %v3371 = vld [vmem:[#allocation3 + $0x80] sm:$0xff]
      %v3372 = vld [vmem:[#allocation3 + $0x88] sm:$0xff]
      %v3373 = vld [vmem:[#allocation3 + $0x90] sm:$0xff]
      %v3374 = vld [vmem:[#allocation3 + $0x98] sm:$0xff]
      %v3375 = vld [vmem:[#allocation3 + $0xa0] sm:$0xff]
      %v3376 = vld [vmem:[#allocation3 + $0xa8] sm:$0xff]
      %v3377 = vld [vmem:[#allocation3 + $0xb0] sm:$0xff]
      %v3378 = vld [vmem:[#allocation3 + $0xb8] sm:$0xff]
      %v3379 = vld [vmem:[#allocation3 + $0xc0] sm:$0xff]
      %v3380 = vld [vmem:[#allocation3 + $0xc8] sm:$0xff]
      %v3381 = vld [vmem:[#allocation3 + $0xd0] sm:$0xff]
      %v3382 = vld [vmem:[#allocation3 + $0xd8] sm:$0xff]
      %v3383 = vld [vmem:[#allocation3 + $0xe0] sm:$0xff]
      %v3384 = vld [vmem:[#allocation3 + $0xe8] sm:$0xff]
      %v3385 = vld [vmem:[#allocation3 + $0xf0] sm:$0xff]
      %v3386 = vld [vmem:[#allocation3 + $0xf8] sm:$0xff]
      %v3387 = vld [vmem:[#allocation3 + $0x100] sm:$0xff]
      %v3388 = vld [vmem:[#allocation3 + $0x108] sm:$0xff]
      %v3389 = vld [vmem:[#allocation3 + $0x110] sm:$0xff]
      %v3390 = vld [vmem:[#allocation3 + $0x118] sm:$0xff]
      %v3391 = vld [vmem:[#allocation3 + $0x120] sm:$0xff]
      %v3392 = vld [vmem:[#allocation3 + $0x128] sm:$0xff]
      %v3393 = vld [vmem:[#allocation3 + $0x130] sm:$0xff]
      %v3394 = vld [vmem:[#allocation3 + $0x138] sm:$0xff]
      %v3395 = vld [vmem:[#allocation3 + $0x140] sm:$0xff]
      %v3396 = vld [vmem:[#allocation3 + $0x148] sm:$0xff]
      %v3397 = vld [vmem:[#allocation3 + $0x150] sm:$0xff]
      %v3398 = vld [vmem:[#allocation3 + $0x158] sm:$0xff]
      %v3399 = vld [vmem:[#allocation3 + $0x160] sm:$0xff]
      %v3400 = vld [vmem:[#allocation3 + $0x168] sm:$0xff]
      %v3401 = vld [vmem:[#allocation3 + $0x170] sm:$0xff]
      %v3402 = vld [vmem:[#allocation3 + $0x178] sm:$0xff]
      %v3403 = vld [vmem:[#allocation3 + $0x180] sm:$0xff]
      %v3404 = vld [vmem:[#allocation3 + $0x188] sm:$0xff]
      %v3405 = vld [vmem:[#allocation3 + $0x190] sm:$0xff]
      %v3406 = vld [vmem:[#allocation3 + $0x198] sm:$0xff]
      %v3407 = vld [vmem:[#allocation3 + $0x1a0] sm:$0xff]
      %v3408 = vld [vmem:[#allocation3 + $0x1a8] sm:$0xff]
      %v3409 = vld [vmem:[#allocation3 + $0x1b0] sm:$0xff]
      %v3410 = vld [vmem:[#allocation3 + $0x1b8] sm:$0xff]
      %v3411 = vld [vmem:[#allocation3 + $0x1c0] sm:$0xff]
      %v3412 = vld [vmem:[#allocation3 + $0x1c8] sm:$0xff]
      %v3413 = vld [vmem:[#allocation3 + $0x1d0] sm:$0xff]
      %v3414 = vld [vmem:[#allocation3 + $0x1d8] sm:$0xff]
      %v3415 = vld [vmem:[#allocation3 + $0x1e0] sm:$0xff]
      %v3416 = vld [vmem:[#allocation3 + $0x1e8] sm:$0xff]
      %v3417 = vld [vmem:[#allocation3 + $0x1f0] sm:$0xff]
      %v3418 = vld [vmem:[#allocation3 + $0x1f8] sm:$0xff]
      %v3419 = vld [vmem:[#allocation3 + $0x200] sm:$0xff]
      %v3420 = vld [vmem:[#allocation3 + $0x208] sm:$0xff]
      %v3421 = vld [vmem:[#allocation3 + $0x210] sm:$0xff]
      %v3422 = vld [vmem:[#allocation3 + $0x218] sm:$0xff]
      %v3423 = vld [vmem:[#allocation3 + $0x220] sm:$0xff]
      %v3424 = vld [vmem:[#allocation3 + $0x228] sm:$0xff]
      %v3425 = vld [vmem:[#allocation3 + $0x230] sm:$0xff]
      %v3426 = vld [vmem:[#allocation3 + $0x238] sm:$0xff]
      %v3427 = vld [vmem:[#allocation3 + $0x240] sm:$0xff]
      %v3428 = vld [vmem:[#allocation3 + $0x248] sm:$0xff]
      %v3429 = vld [vmem:[#allocation3 + $0x250] sm:$0xff]
      %v3430 = vld [vmem:[#allocation3 + $0x258] sm:$0xff]
      %v3431 = vld [vmem:[#allocation3 + $0x260] sm:$0xff]
      %v3432 = vld [vmem:[#allocation3 + $0x268] sm:$0xff]
      %v3433 = vld [vmem:[#allocation3 + $0x270] sm:$0xff]
      %v3434 = vld [vmem:[#allocation3 + $0x278] sm:$0xff]
      %v3435 = vld [vmem:[#allocation3 + $0x280] sm:$0xff]
      %v3436 = vld [vmem:[#allocation3 + $0x288] sm:$0xff]
      %v3437 = vld [vmem:[#allocation3 + $0x290] sm:$0xff]
      %v3438 = vld [vmem:[#allocation3 + $0x298] sm:$0xff]
      %v3439 = vld [vmem:[#allocation3 + $0x2a0] sm:$0xff]
      %v3440 = vld [vmem:[#allocation3 + $0x2a8] sm:$0xff]
      %v3441 = vld [vmem:[#allocation3 + $0x2b0] sm:$0xff]
      %v3442 = vld [vmem:[#allocation3 + $0x2b8] sm:$0xff]
      %v3443 = vld [vmem:[#allocation3 + $0x2c0] sm:$0xff]
      %v3444 = vld [vmem:[#allocation3 + $0x2c8] sm:$0xff]
      %v3445 = vld [vmem:[#allocation3 + $0x2d0] sm:$0xff]
      %v3446 = vld [vmem:[#allocation3 + $0x2d8] sm:$0xff]
      %v3447 = vld [vmem:[#allocation3 + $0x2e0] sm:$0xff]
      %v3448 = vld [vmem:[#allocation3 + $0x2e8] sm:$0xff]
      %v3449 = vld [vmem:[#allocation3 + $0x2f0] sm:$0xff]
      %v3450 = vld [vmem:[#allocation3 + $0x2f8] sm:$0xff]
      %v3451 = vld [vmem:[#allocation3 + $0x300] sm:$0xff]
      %v3452 = vld [vmem:[#allocation3 + $0x308] sm:$0xff]
      %v3453 = vld [vmem:[#allocation3 + $0x310] sm:$0xff]
      %v3454 = vld [vmem:[#allocation3 + $0x318] sm:$0xff]
      %v3455 = vld [vmem:[#allocation3 + $0x320] sm:$0xff]
      %v3456 = vld [vmem:[#allocation3 + $0x328] sm:$0xff]
      %v3457 = vld [vmem:[#allocation3 + $0x330] sm:$0xff]
      %v3458 = vld [vmem:[#allocation3 + $0x338] sm:$0xff]
      %v3459 = vld [vmem:[#allocation3 + $0x340] sm:$0xff]
      %v3460 = vld [vmem:[#allocation3 + $0x348] sm:$0xff]
      %v3461 = vld [vmem:[#allocation3 + $0x350] sm:$0xff]
      %v3462 = vld [vmem:[#allocation3 + $0x358] sm:$0xff]
      %v3463 = vld [vmem:[#allocation3 + $0x360] sm:$0xff]
      %v3464 = vld [vmem:[#allocation3 + $0x368] sm:$0xff]
      %v3465 = vld [vmem:[#allocation3 + $0x370] sm:$0xff]
      %v3466 = vld [vmem:[#allocation3 + $0x378] sm:$0xff]
      %v3467 = vld [vmem:[#allocation3 + $0x380] sm:$0xff]
      %v3468 = vld [vmem:[#allocation3 + $0x388] sm:$0xff]
      %v3469 = vld [vmem:[#allocation3 + $0x390] sm:$0xff]
      %v3470 = vld [vmem:[#allocation3 + $0x398] sm:$0xff]
      %v3471 = vld [vmem:[#allocation3 + $0x3a0] sm:$0xff]
      %v3472 = vld [vmem:[#allocation3 + $0x3a8] sm:$0xff]
      %v3473 = vld [vmem:[#allocation3 + $0x3b0] sm:$0xff]
      %v3474 = vld [vmem:[#allocation3 + $0x3b8] sm:$0xff]
      %v3475 = vld [vmem:[#allocation3 + $0x3c0] sm:$0xff]
      %v3476 = vld [vmem:[#allocation3 + $0x3c8] sm:$0xff]
      %v3477 = vld [vmem:[#allocation3 + $0x3d0] sm:$0xff]
      %v3478 = vld [vmem:[#allocation3 + $0x3d8] sm:$0xff]
      %v3479 = vld [vmem:[#allocation3 + $0x3e0] sm:$0xff]
      %v3480 = vld [vmem:[#allocation3 + $0x3e8] sm:$0xff]
      %v3481 = vld [vmem:[#allocation3 + $0x3f0] sm:$0xff]
      %v3482 = vld [vmem:[#allocation3 + $0x3f8] sm:$0xff]
      %v3483 = vld [vmem:[#allocation3 + $0x400] sm:$0xff]
      %v3484 = vld [vmem:[#allocation3 + $0x408] sm:$0xff]
      %v3485 = vld [vmem:[#allocation3 + $0x410] sm:$0xff]
      %v3486 = vld [vmem:[#allocation3 + $0x418] sm:$0xff]
      %v3487 = vld [vmem:[#allocation3 + $0x420] sm:$0xff]
      %v3488 = vld [vmem:[#allocation3 + $0x428] sm:$0xff]
      %v3489 = vld [vmem:[#allocation3 + $0x430] sm:$0xff]
      %v3490 = vld [vmem:[#allocation3 + $0x438] sm:$0xff]
      %v3491 = vld [vmem:[#allocation3 + $0x440] sm:$0xff]
      %v3492 = vld [vmem:[#allocation3 + $0x448] sm:$0xff]
      %v3493 = vld [vmem:[#allocation3 + $0x450] sm:$0xff]
      %v3494 = vld [vmem:[#allocation3 + $0x458] sm:$0xff]
      %v3495 = vld [vmem:[#allocation3 + $0x460] sm:$0xff]
      %v3496 = vld [vmem:[#allocation3 + $0x468] sm:$0xff]
      %v3497 = vld [vmem:[#allocation3 + $0x470] sm:$0xff]
      %v3498 = vld [vmem:[#allocation3 + $0x478] sm:$0xff]
      %v3499 = vld [vmem:[#allocation3 + $0x480] sm:$0xff]
      %v3500 = vld [vmem:[#allocation3 + $0x488] sm:$0xff]
      %v3501 = vld [vmem:[#allocation3 + $0x490] sm:$0xff]
      %v3502 = vld [vmem:[#allocation3 + $0x498] sm:$0xff]
      %v3503 = vld [vmem:[#allocation3 + $0x4a0] sm:$0xff]
      %v3504 = vld [vmem:[#allocation3 + $0x4a8] sm:$0xff]
      %v3505 = vld [vmem:[#allocation3 + $0x4b0] sm:$0xff]
      %v3506 = vld [vmem:[#allocation3 + $0x4b8] sm:$0xff]
      %v3507 = vld [vmem:[#allocation3 + $0x4c0] sm:$0xff]
      %v3508 = vld [vmem:[#allocation3 + $0x4c8] sm:$0xff]
      %v3509 = vld [vmem:[#allocation3 + $0x4d0] sm:$0xff]
      %v3510 = vld [vmem:[#allocation3 + $0x4d8] sm:$0xff]
      %v3511 = vld [vmem:[#allocation3 + $0x4e0] sm:$0xff]
      %v3512 = vld [vmem:[#allocation3 + $0x4e8] sm:$0xff]
      %v3513 = vld [vmem:[#allocation3 + $0x4f0] sm:$0xff]
      %v3514 = vld [vmem:[#allocation3 + $0x4f8] sm:$0xff]
      %v3515 = vld [vmem:[#allocation3 + $0x500] sm:$0xff]
      %v3516 = vld [vmem:[#allocation3 + $0x508] sm:$0xff]
      %v3517 = vld [vmem:[#allocation3 + $0x510] sm:$0xff]
      %v3518 = vld [vmem:[#allocation3 + $0x518] sm:$0xff]
      %v3519 = vld [vmem:[#allocation3 + $0x520] sm:$0xff]
      %v3520 = vld [vmem:[#allocation3 + $0x528] sm:$0xff]
      %v3521 = vld [vmem:[#allocation3 + $0x530] sm:$0xff]
      %v3522 = vld [vmem:[#allocation3 + $0x538] sm:$0xff]
      %v3523 = vld [vmem:[#allocation3 + $0x540] sm:$0xff]
      %v3524 = vld [vmem:[#allocation3 + $0x548] sm:$0xff]
      %v3525 = vld [vmem:[#allocation3 + $0x550] sm:$0xff]
      %v3526 = vld [vmem:[#allocation3 + $0x558] sm:$0xff]
      %v3527 = vld [vmem:[#allocation3 + $0x560] sm:$0xff]
      %v3528 = vld [vmem:[#allocation3 + $0x568] sm:$0xff]
      %v3529 = vld [vmem:[#allocation3 + $0x570] sm:$0xff]
      %v3530 = vld [vmem:[#allocation3 + $0x578] sm:$0xff]
      %v3531 = vld [vmem:[#allocation3 + $0x580] sm:$0xff]
      %v3532 = vld [vmem:[#allocation3 + $0x588] sm:$0xff]
      %v3533 = vld [vmem:[#allocation3 + $0x590] sm:$0xff]
      %v3534 = vld [vmem:[#allocation3 + $0x598] sm:$0xff]
      %v3535 = vld [vmem:[#allocation3 + $0x5a0] sm:$0xff]
      %v3536 = vld [vmem:[#allocation3 + $0x5a8] sm:$0xff]
      %v3537 = vld [vmem:[#allocation3 + $0x5b0] sm:$0xff]
      %v3538 = vld [vmem:[#allocation3 + $0x5b8] sm:$0xff]
      %v3539 = vld [vmem:[#allocation3 + $0x5c0] sm:$0xff]
      %v3540 = vld [vmem:[#allocation3 + $0x5c8] sm:$0xff]
      %v3541 = vld [vmem:[#allocation3 + $0x5d0] sm:$0xff]
      %v3542 = vld [vmem:[#allocation3 + $0x5d8] sm:$0xff]
      %v3543 = vld [vmem:[#allocation3 + $0x5e0] sm:$0xff]
      %v3544 = vld [vmem:[#allocation3 + $0x5e8] sm:$0xff]
      %v3545 = vld [vmem:[#allocation3 + $0x5f0] sm:$0xff]
      %v3546 = vld [vmem:[#allocation3 + $0x5f8] sm:$0xff]
      %v3547 = vld [vmem:[#allocation3 + $0x600] sm:$0xff]
      %v3548 = vld [vmem:[#allocation3 + $0x608] sm:$0xff]
      %v3549 = vld [vmem:[#allocation3 + $0x610] sm:$0xff]
      %v3550 = vld [vmem:[#allocation3 + $0x618] sm:$0xff]
      %v3551 = vld [vmem:[#allocation3 + $0x620] sm:$0xff]
      %v3552 = vld [vmem:[#allocation3 + $0x628] sm:$0xff]
      %v3553 = vld [vmem:[#allocation3 + $0x630] sm:$0xff]
      %v3554 = vld [vmem:[#allocation3 + $0x638] sm:$0xff]
      %v3555 = vld [vmem:[#allocation3 + $0x640] sm:$0xff]
      %v3556 = vld [vmem:[#allocation3 + $0x648] sm:$0xff]
      %v3557 = vld [vmem:[#allocation3 + $0x650] sm:$0xff]
      %v3558 = vld [vmem:[#allocation3 + $0x658] sm:$0xff]
      %v3559 = vld [vmem:[#allocation3 + $0x660] sm:$0xff]
      %v3560 = vld [vmem:[#allocation3 + $0x668] sm:$0xff]
      %v3561 = vld [vmem:[#allocation3 + $0x670] sm:$0xff]
      %v3562 = vld [vmem:[#allocation3 + $0x678] sm:$0xff]
      %v3563 = vld [vmem:[#allocation3 + $0x680] sm:$0xff]
      %v3564 = vld [vmem:[#allocation3 + $0x688] sm:$0xff]
      %v3565 = vld [vmem:[#allocation3 + $0x690] sm:$0xff]
      %v3566 = vld [vmem:[#allocation3 + $0x698] sm:$0xff]
      %v3567 = vld [vmem:[#allocation3 + $0x6a0] sm:$0xff]
      %v3568 = vld [vmem:[#allocation3 + $0x6a8] sm:$0xff]
      %v3569 = vld [vmem:[#allocation3 + $0x6b0] sm:$0xff]
      %v3570 = vld [vmem:[#allocation3 + $0x6b8] sm:$0xff]
      %v3571 = vld [vmem:[#allocation3 + $0x6c0] sm:$0xff]
      %v3572 = vld [vmem:[#allocation3 + $0x6c8] sm:$0xff]
      %v3573 = vld [vmem:[#allocation3 + $0x6d0] sm:$0xff]
      %v3574 = vld [vmem:[#allocation3 + $0x6d8] sm:$0xff]
      %v3575 = vld [vmem:[#allocation3 + $0x6e0] sm:$0xff]
      %v3576 = vld [vmem:[#allocation3 + $0x6e8] sm:$0xff]
      %v3577 = vld [vmem:[#allocation3 + $0x6f0] sm:$0xff]
      %v3578 = vld [vmem:[#allocation3 + $0x6f8] sm:$0xff]
      %v3579 = vld [vmem:[#allocation3 + $0x700] sm:$0xff]
      %v3580 = vld [vmem:[#allocation3 + $0x708] sm:$0xff]
      %v3581 = vld [vmem:[#allocation3 + $0x710] sm:$0xff]
      %v3582 = vld [vmem:[#allocation3 + $0x718] sm:$0xff]
      %v3583 = vld [vmem:[#allocation3 + $0x720] sm:$0xff]
      %v3584 = vld [vmem:[#allocation3 + $0x728] sm:$0xff]
      %v3585 = vld [vmem:[#allocation3 + $0x730] sm:$0xff]
      %v3586 = vld [vmem:[#allocation3 + $0x738] sm:$0xff]
      %v3587 = vld [vmem:[#allocation3 + $0x740] sm:$0xff]
      %v3588 = vld [vmem:[#allocation3 + $0x748] sm:$0xff]
      %v3589 = vld [vmem:[#allocation3 + $0x750] sm:$0xff]
      %v3590 = vld [vmem:[#allocation3 + $0x758] sm:$0xff]
      %v3591 = vld [vmem:[#allocation3 + $0x760] sm:$0xff]
      %v3592 = vld [vmem:[#allocation3 + $0x768] sm:$0xff]
      %v3593 = vld [vmem:[#allocation3 + $0x770] sm:$0xff]
      %v3594 = vld [vmem:[#allocation3 + $0x778] sm:$0xff]
      %v3595 = vld [vmem:[#allocation3 + $0x780] sm:$0xff]
      %v3596 = vld [vmem:[#allocation3 + $0x788] sm:$0xff]
      %v3597 = vld [vmem:[#allocation3 + $0x790] sm:$0xff]
      %v3598 = vld [vmem:[#allocation3 + $0x798] sm:$0xff]
      %v3599 = vld [vmem:[#allocation3 + $0x7a0] sm:$0xff]
      %v3600 = vld [vmem:[#allocation3 + $0x7a8] sm:$0xff]
      %v3601 = vld [vmem:[#allocation3 + $0x7b0] sm:$0xff]
      %v3602 = vld [vmem:[#allocation3 + $0x7b8] sm:$0xff]
      %v3603 = vld [vmem:[#allocation3 + $0x7c0] sm:$0xff]
      %v3604 = vld [vmem:[#allocation3 + $0x7c8] sm:$0xff]
      %v3605 = vld [vmem:[#allocation3 + $0x7d0] sm:$0xff]
      %v3606 = vld [vmem:[#allocation3 + $0x7d8] sm:$0xff]
      %v3607 = vld [vmem:[#allocation3 + $0x7e0] sm:$0xff]
      %v3608 = vld [vmem:[#allocation3 + $0x7e8] sm:$0xff]
      %v3609 = vld [vmem:[#allocation3 + $0x7f0] sm:$0xff]
      %v3610 = vld [vmem:[#allocation3 + $0x7f8] sm:$0xff]
      %v3611 = vld [vmem:[#allocation3 + $0x800] sm:$0xff]
      %v3612 = vld [vmem:[#allocation3 + $0x808] sm:$0xff]
      %v3613 = vld [vmem:[#allocation3 + $0x810] sm:$0xff]
      %v3614 = vld [vmem:[#allocation3 + $0x818] sm:$0xff]
      %v3615 = vld [vmem:[#allocation3 + $0x820] sm:$0xff]
      %v3616 = vld [vmem:[#allocation3 + $0x828] sm:$0xff]
      %v3617 = vld [vmem:[#allocation3 + $0x830] sm:$0xff]
      %v3618 = vld [vmem:[#allocation3 + $0x838] sm:$0xff]
      %v3619 = vld [vmem:[#allocation3 + $0x840] sm:$0xff]
      %v3620 = vld [vmem:[#allocation3 + $0x848] sm:$0xff]
      %v3621 = vld [vmem:[#allocation3 + $0x850] sm:$0xff]
      %v3622 = vld [vmem:[#allocation3 + $0x858] sm:$0xff]
      %v3623 = vld [vmem:[#allocation3 + $0x860] sm:$0xff]
      %v3624 = vld [vmem:[#allocation3 + $0x868] sm:$0xff]
      %v3625 = vld [vmem:[#allocation3 + $0x870] sm:$0xff]
      %v3626 = vld [vmem:[#allocation3 + $0x878] sm:$0xff]
      %v3627 = vld [vmem:[#allocation3 + $0x880] sm:$0xff]
      %v3628 = vld [vmem:[#allocation3 + $0x888] sm:$0xff]
      %v3629 = vld [vmem:[#allocation3 + $0x890] sm:$0xff]
      %v3630 = vld [vmem:[#allocation3 + $0x898] sm:$0xff]
      %v3631 = vld [vmem:[#allocation3 + $0x8a0] sm:$0xff]
      %v3632 = vld [vmem:[#allocation3 + $0x8a8] sm:$0xff]
      %v3633 = vld [vmem:[#allocation3 + $0x8b0] sm:$0xff]
      %v3634 = vld [vmem:[#allocation3 + $0x8b8] sm:$0xff]
      %v3635 = vld [vmem:[#allocation3 + $0x8c0] sm:$0xff]
      %v3636 = vld [vmem:[#allocation3 + $0x8c8] sm:$0xff]
      %v3637 = vld [vmem:[#allocation3 + $0x8d0] sm:$0xff]
      %v3638 = vld [vmem:[#allocation3 + $0x8d8] sm:$0xff]
      %v3639 = vld [vmem:[#allocation3 + $0x8e0] sm:$0xff]
      %v3640 = vld [vmem:[#allocation3 + $0x8e8] sm:$0xff]
      %v3641 = vld [vmem:[#allocation3 + $0x8f0] sm:$0xff]
      %v3642 = vld [vmem:[#allocation3 + $0x8f8] sm:$0xff]
      %v3643 = vld [vmem:[#allocation3 + $0x900] sm:$0xff]
      %v3644 = vld [vmem:[#allocation3 + $0x908] sm:$0xff]
      %v3645 = vld [vmem:[#allocation3 + $0x910] sm:$0xff]
      %v3646 = vld [vmem:[#allocation3 + $0x918] sm:$0xff]
      %v3647 = vld [vmem:[#allocation3 + $0x920] sm:$0xff]
      %v3648 = vld [vmem:[#allocation3 + $0x928] sm:$0xff]
      %v3649 = vld [vmem:[#allocation3 + $0x930] sm:$0xff]
      %v3650 = vld [vmem:[#allocation3 + $0x938] sm:$0xff]
      %v3651 = vld [vmem:[#allocation3 + $0x940] sm:$0xff]
      %v3652 = vld [vmem:[#allocation3 + $0x948] sm:$0xff]
      %v3653 = vld [vmem:[#allocation3 + $0x950] sm:$0xff]
      %v3654 = vld [vmem:[#allocation3 + $0x958] sm:$0xff]
      %v3655 = vld [vmem:[#allocation3 + $0x960] sm:$0xff]
      %v3656 = vld [vmem:[#allocation3 + $0x968] sm:$0xff]
      %v3657 = vld [vmem:[#allocation3 + $0x970] sm:$0xff]
      %v3658 = vld [vmem:[#allocation3 + $0x978] sm:$0xff]
      %v3659 = vld [vmem:[#allocation3 + $0x980] sm:$0xff]
      %v3660 = vld [vmem:[#allocation3 + $0x988] sm:$0xff]
      %v3661 = vld [vmem:[#allocation3 + $0x990] sm:$0xff]
      %v3662 = vld [vmem:[#allocation3 + $0x998] sm:$0xff]
      %v3663 = vld [vmem:[#allocation3 + $0x9a0] sm:$0xff]
      %v3664 = vld [vmem:[#allocation3 + $0x9a8] sm:$0xff]
      %v3665 = vld [vmem:[#allocation3 + $0x9b0] sm:$0xff]
      %v3666 = vld [vmem:[#allocation3 + $0x9b8] sm:$0xff]
      %v3667 = vld [vmem:[#allocation3 + $0x9c0] sm:$0xff]
      %v3668 = vld [vmem:[#allocation3 + $0x9c8] sm:$0xff]
      %v3669 = vld [vmem:[#allocation3 + $0x9d0] sm:$0xff]
      %v3670 = vld [vmem:[#allocation3 + $0x9d8] sm:$0xff]
      %v3671 = vld [vmem:[#allocation3 + $0x9e0] sm:$0xff]
      %v3672 = vld [vmem:[#allocation3 + $0x9e8] sm:$0xff]
      %v3673 = vld [vmem:[#allocation3 + $0x9f0] sm:$0xff]
      %v3674 = vld [vmem:[#allocation3 + $0x9f8] sm:$0xff]
      %v3675 = vld [vmem:[#allocation3 + $0xa00] sm:$0xff]
      %v3676 = vld [vmem:[#allocation3 + $0xa08] sm:$0xff]
      %v3677 = vld [vmem:[#allocation3 + $0xa10] sm:$0xff]
      %v3678 = vld [vmem:[#allocation3 + $0xa18] sm:$0xff]
      %v3679 = vld [vmem:[#allocation3 + $0xa20] sm:$0xff]
      %v3680 = vld [vmem:[#allocation3 + $0xa28] sm:$0xff]
      %v3681 = vld [vmem:[#allocation3 + $0xa30] sm:$0xff]
      %v3682 = vld [vmem:[#allocation3 + $0xa38] sm:$0xff]
      %v3683 = vld [vmem:[#allocation3 + $0xa40] sm:$0xff]
      %v3684 = vld [vmem:[#allocation3 + $0xa48] sm:$0xff]
      %v3685 = vld [vmem:[#allocation3 + $0xa50] sm:$0xff]
      %v3686 = vld [vmem:[#allocation3 + $0xa58] sm:$0xff]
      %v3687 = vld [vmem:[#allocation3 + $0xa60] sm:$0xff]
      %v3688 = vld [vmem:[#allocation3 + $0xa68] sm:$0xff]
      %v3689 = vld [vmem:[#allocation3 + $0xa70] sm:$0xff]
      %v3690 = vld [vmem:[#allocation3 + $0xa78] sm:$0xff]
      %v3691 = vld [vmem:[#allocation3 + $0xa80] sm:$0xff]
      %v3692 = vld [vmem:[#allocation3 + $0xa88] sm:$0xff]
      %v3693 = vld [vmem:[#allocation3 + $0xa90] sm:$0xff]
      %v3694 = vld [vmem:[#allocation3 + $0xa98] sm:$0xff]
      %v3695 = vld [vmem:[#allocation3 + $0xaa0] sm:$0xff]
      %v3696 = vld [vmem:[#allocation3 + $0xaa8] sm:$0xff]
      %v3697 = vld [vmem:[#allocation3 + $0xab0] sm:$0xff]
      %v3698 = vld [vmem:[#allocation3 + $0xab8] sm:$0xff]
      %v3699 = vld [vmem:[#allocation3 + $0xac0] sm:$0xff]
      %v3700 = vld [vmem:[#allocation3 + $0xac8] sm:$0xff]
      %v3701 = vld [vmem:[#allocation3 + $0xad0] sm:$0xff]
      %v3702 = vld [vmem:[#allocation3 + $0xad8] sm:$0xff]
      %v3703 = vld [vmem:[#allocation3 + $0xae0] sm:$0xff]
      %v3704 = vld [vmem:[#allocation3 + $0xae8] sm:$0xff]
      %v3705 = vld [vmem:[#allocation3 + $0xaf0] sm:$0xff]
      %v3706 = vld [vmem:[#allocation3 + $0xaf8] sm:$0xff]
      %v3707 = vld [vmem:[#allocation3 + $0xb00] sm:$0xff]
      %v3708 = vld [vmem:[#allocation3 + $0xb08] sm:$0xff]
      %v3709 = vld [vmem:[#allocation3 + $0xb10] sm:$0xff]
      %v3710 = vld [vmem:[#allocation3 + $0xb18] sm:$0xff]
      %v3711 = vld [vmem:[#allocation3 + $0xb20] sm:$0xff]
      %v3712 = vld [vmem:[#allocation3 + $0xb28] sm:$0xff]
      %v3713 = vld [vmem:[#allocation3 + $0xb30] sm:$0xff]
      %v3714 = vld [vmem:[#allocation3 + $0xb38] sm:$0xff]
      %v3715 = vld [vmem:[#allocation3 + $0xb40] sm:$0xff]
      %v3716 = vld [vmem:[#allocation3 + $0xb48] sm:$0xff]
      %v3717 = vld [vmem:[#allocation3 + $0xb50] sm:$0xff]
      %v3718 = vld [vmem:[#allocation3 + $0xb58] sm:$0xff]
      %v3719 = vld [vmem:[#allocation3 + $0xb60] sm:$0xff]
      %v3720 = vld [vmem:[#allocation3 + $0xb68] sm:$0xff]
      %v3721 = vld [vmem:[#allocation3 + $0xb70] sm:$0xff]
      %v3722 = vld [vmem:[#allocation3 + $0xb78] sm:$0xff]
      %v3723 = vld [vmem:[#allocation3 + $0xb80] sm:$0xff]
      %v3724 = vld [vmem:[#allocation3 + $0xb88] sm:$0xff]
      %v3725 = vld [vmem:[#allocation3 + $0xb90] sm:$0xff]
      %v3726 = vld [vmem:[#allocation3 + $0xb98] sm:$0xff]
      %v3727 = vld [vmem:[#allocation3 + $0xba0] sm:$0xff]
      %v3728 = vld [vmem:[#allocation3 + $0xba8] sm:$0xff]
      %v3729 = vld [vmem:[#allocation3 + $0xbb0] sm:$0xff]
      %v3730 = vld [vmem:[#allocation3 + $0xbb8] sm:$0xff]
      %v3731 = vld [vmem:[#allocation3 + $0xbc0] sm:$0xff]
      %v3732 = vld [vmem:[#allocation3 + $0xbc8] sm:$0xff]
      %v3733 = vld [vmem:[#allocation3 + $0xbd0] sm:$0xff]
      %v3734 = vld [vmem:[#allocation3 + $0xbd8] sm:$0xff]
      %v3735 = vld [vmem:[#allocation3 + $0xbe0] sm:$0xff]
      %v3736 = vld [vmem:[#allocation3 + $0xbe8] sm:$0xff]
      %v3737 = vld [vmem:[#allocation3 + $0xbf0] sm:$0xff]
      %v3738 = vld [vmem:[#allocation3 + $0xbf8] sm:$0xff]
      %v3739 = vld [vmem:[#allocation3 + $0xc00] sm:$0xff]
      %v3740 = vld [vmem:[#allocation3 + $0xc08] sm:$0xff]
      %v3741 = vld [vmem:[#allocation3 + $0xc10] sm:$0xff]
      %v3742 = vld [vmem:[#allocation3 + $0xc18] sm:$0xff]
      %v3743 = vld [vmem:[#allocation3 + $0xc20] sm:$0xff]
      %v3744 = vld [vmem:[#allocation3 + $0xc28] sm:$0xff]
      %v3745 = vld [vmem:[#allocation3 + $0xc30] sm:$0xff]
      %v3746 = vld [vmem:[#allocation3 + $0xc38] sm:$0xff]
      %v3747 = vld [vmem:[#allocation3 + $0xc40] sm:$0xff]
      %v3748 = vld [vmem:[#allocation3 + $0xc48] sm:$0xff]
      %v3749 = vld [vmem:[#allocation3 + $0xc50] sm:$0xff]
      %v3750 = vld [vmem:[#allocation3 + $0xc58] sm:$0xff]
      %v3751 = vld [vmem:[#allocation3 + $0xc60] sm:$0xff]
      %v3752 = vld [vmem:[#allocation3 + $0xc68] sm:$0xff]
      %v3753 = vld [vmem:[#allocation3 + $0xc70] sm:$0xff]
      %v3754 = vld [vmem:[#allocation3 + $0xc78] sm:$0xff]
      %v3755 = vld [vmem:[#allocation3 + $0xc80] sm:$0xff]
      %v3756 = vld [vmem:[#allocation3 + $0xc88] sm:$0xff]
      %v3757 = vld [vmem:[#allocation3 + $0xc90] sm:$0xff]
      %v3758 = vld [vmem:[#allocation3 + $0xc98] sm:$0xff]
      %v3759 = vld [vmem:[#allocation3 + $0xca0] sm:$0xff]
      %v3760 = vld [vmem:[#allocation3 + $0xca8] sm:$0xff]
      %v3761 = vld [vmem:[#allocation3 + $0xcb0] sm:$0xff]
      %v3762 = vld [vmem:[#allocation3 + $0xcb8] sm:$0xff]
      %v3763 = vld [vmem:[#allocation3 + $0xcc0] sm:$0xff]
      %v3764 = vld [vmem:[#allocation3 + $0xcc8] sm:$0xff]
      %v3765 = vld [vmem:[#allocation3 + $0xcd0] sm:$0xff]
      %v3766 = vld [vmem:[#allocation3 + $0xcd8] sm:$0xff]
      %v3767 = vld [vmem:[#allocation3 + $0xce0] sm:$0xff]
      %v3768 = vld [vmem:[#allocation3 + $0xce8] sm:$0xff]
      %v3769 = vld [vmem:[#allocation3 + $0xcf0] sm:$0xff]
      %v3770 = vld [vmem:[#allocation3 + $0xcf8] sm:$0xff]
      %v3771 = vld [vmem:[#allocation3 + $0xd00] sm:$0xff]
      %v3772 = vld [vmem:[#allocation3 + $0xd08] sm:$0xff]
      %v3773 = vld [vmem:[#allocation3 + $0xd10] sm:$0xff]
      %v3774 = vld [vmem:[#allocation3 + $0xd18] sm:$0xff]
      %v3775 = vld [vmem:[#allocation3 + $0xd20] sm:$0xff]
      %v3776 = vld [vmem:[#allocation3 + $0xd28] sm:$0xff]
      %v3777 = vld [vmem:[#allocation3 + $0xd30] sm:$0xff]
      %v3778 = vld [vmem:[#allocation3 + $0xd38] sm:$0xff]
      %v3779 = vld [vmem:[#allocation3 + $0xd40] sm:$0xff]
      %v3780 = vld [vmem:[#allocation3 + $0xd48] sm:$0xff]
      %v3781 = vld [vmem:[#allocation3 + $0xd50] sm:$0xff]
      %v3782 = vld [vmem:[#allocation3 + $0xd58] sm:$0xff]
      %v3783 = vld [vmem:[#allocation3 + $0xd60] sm:$0xff]
      %v3784 = vld [vmem:[#allocation3 + $0xd68] sm:$0xff]
      %v3785 = vld [vmem:[#allocation3 + $0xd70] sm:$0xff]
      %v3786 = vld [vmem:[#allocation3 + $0xd78] sm:$0xff]
      %v3787 = vld [vmem:[#allocation3 + $0xd80] sm:$0xff]
      %v3788 = vld [vmem:[#allocation3 + $0xd88] sm:$0xff]
      %v3789 = vld [vmem:[#allocation3 + $0xd90] sm:$0xff]
      %v3790 = vld [vmem:[#allocation3 + $0xd98] sm:$0xff]
      %v3791 = vld [vmem:[#allocation3 + $0xda0] sm:$0xff]
      %v3792 = vld [vmem:[#allocation3 + $0xda8] sm:$0xff]
      %v3793 = vld [vmem:[#allocation3 + $0xdb0] sm:$0xff]
      %v3794 = vld [vmem:[#allocation3 + $0xdb8] sm:$0xff]
      %v3795 = vld [vmem:[#allocation3 + $0xdc0] sm:$0xff]
      %v3796 = vld [vmem:[#allocation3 + $0xdc8] sm:$0xff]
      %v3797 = vld [vmem:[#allocation3 + $0xdd0] sm:$0xff]
      %v3798 = vld [vmem:[#allocation3 + $0xdd8] sm:$0xff]
      %v3799 = vld [vmem:[#allocation3 + $0xde0] sm:$0xff]
      %v3800 = vld [vmem:[#allocation3 + $0xde8] sm:$0xff]
      %v3801 = vld [vmem:[#allocation3 + $0xdf0] sm:$0xff]
      %v3802 = vld [vmem:[#allocation3 + $0xdf8] sm:$0xff]
      %v3803 = vld [vmem:[%s2] sm:$0xff]
      %v3804 = vld [vmem:[%s3] sm:$0xff]
      %v3805 = vld [vmem:[%s3 + $0x8] sm:$0x3f]
      %3807 = vset.pattern.permute.xlu0 0
      %3808 = vperm.xlu0 %3807, %v3803
      %v3809 = vpop.permute.xlu0 %3808
      %3811 = vmatprep.subr.mxu0 %v3356
      %3812 = vmatpush1.msra.mxu0 %v3355
      %3813 = vmatprep.subr.mxu0 %v3370
      %3814 = vmatpush1.msra.mxu0 %v3369
      %3815 = vmatprep.subr.mxu0 %v3384
      %3816 = vmatpush1.msra.mxu0 %v3383
      %3817 = vmatprep.subr.mxu0 %v3398
      %3818 = vmatpush1.msra.mxu0 %v3397
      %3819 = vmatprep.subr.mxu0 %v3412
      %3820 = vmatpush1.msra.mxu0 %v3411
      %3821 = vmatprep.subr.mxu0 %v3426
      %3822 = vmatpush1.msra.mxu0 %v3425
      %3823 = vmatprep.subr.mxu0 %v3440
      %3824 = vmatpush1.msra.mxu0 %v3439
      %3825 = vmatprep.subr.mxu0 %v3454
      %3826 = vmatpush1.msra.mxu0 %v3453
      %3827 = vmatprep.subr.mxu0 %v3468
      %3828 = vmatpush1.msra.mxu0 %v3467
      %3829 = vmatprep.subr.mxu0 %v3482
      %3830 = vmatpush1.msra.mxu0 %v3481
      %3831 = vmatprep.subr.mxu0 %v3496
      %3832 = vmatpush1.msra.mxu0 %v3495
      %3833 = vmatprep.subr.mxu0 %v3510
      %3834 = vmatpush1.msra.mxu0 %v3509
      %3835 = vmatprep.subr.mxu0 %v3524
      %3836 = vmatpush1.msra.mxu0 %v3523
      %3837 = vmatprep.subr.mxu0 %v3538
      %3838 = vmatpush1.msra.mxu0 %v3537
      %3839 = vmatprep.subr.mxu0 %v3552
      %3840 = vmatpush1.msra.mxu0 %v3551
      %3841 = vmatprep.subr.mxu0 %v3566
      %3842 = vmatpush1.msra.mxu0 %v3565
      %3843 = vmatprep.subr.mxu0 %v3580
      %3844 = vmatpush1.msra.mxu0 %v3579
      %3845 = vmatprep.subr.mxu0 %v3594
      %3846 = vmatpush1.msra.mxu0 %v3593
      %3847 = vmatprep.subr.mxu0 %v3608
      %3848 = vmatpush1.msra.mxu0 %v3607
      %3849 = vmatprep.subr.mxu0 %v3622
      %3850 = vmatpush1.msra.mxu0 %v3621
      %3851 = vmatprep.subr.mxu0 %v3636
      %3852 = vmatpush1.msra.mxu0 %v3635
      %3853 = vmatprep.subr.mxu0 %v3650
      %3854 = vmatpush1.msra.mxu0 %v3649
      %3855 = vmatprep.subr.mxu0 %v3664
      %3856 = vmatpush1.msra.mxu0 %v3663
      %3857 = vmatprep.subr.mxu0 %v3678
      %3858 = vmatpush1.msra.mxu0 %v3677
      %3859 = vmatprep.subr.mxu0 %v3692
      %3860 = vmatpush1.msra.mxu0 %v3691
      %3861 = vmatprep.subr.mxu0 %v3706
      %3862 = vmatpush1.msra.mxu0 %v3705
      %3863 = vmatprep.subr.mxu0 %v3720
      %3864 = vmatpush1.msra.mxu0 %v3719
      %3865 = vmatprep.subr.mxu0 %v3734
      %3866 = vmatpush1.msra.mxu0 %v3733
      %3867 = vmatprep.subr.mxu0 %v3748
      %3868 = vmatpush1.msra.mxu0 %v3747
      %3869 = vmatprep.subr.mxu0 %v3762
      %3870 = vmatpush1.msra.mxu0 %v3761
      %3871 = vmatprep.subr.mxu0 %v3776
      %3872 = vmatpush1.msra.mxu0 %v3775
      %3873 = vmatprep.subr.mxu0 %v3790
      %3874 = vmatpush1.msra.mxu0 %v3789
      %3875 = vmatprep.mubr.f32.mxu0 %v3354
      %3876 = vmatmul.mubr.f32.gmra.mrb[0].mxu0 %v3353
      %v3877 = vpop.f32.mrb[0].mxu0
      %v3878 = vadd.f32 %v3809, %v3877
      %v3879 = vpop.f32.mrb[0].mxu0
      %v3880 = vadd.f32 %v3809, %v3879
      %3881 = vdwg.mxu0
      %3882 = vmatprep.subr.mxu0 %v3358
      %3883 = vmatpush1.msra.mxu0 %v3357
      %3884 = vmatprep.subr.mxu0 %v3372
      %3885 = vmatpush1.msra.mxu0 %v3371
      %3886 = vmatprep.subr.mxu0 %v3386
      %3887 = vmatpush1.msra.mxu0 %v3385
      %3888 = vmatprep.subr.mxu0 %v3400
      %3889 = vmatpush1.msra.mxu0 %v3399
      %3890 = vmatprep.subr.mxu0 %v3414
      %3891 = vmatpush1.msra.mxu0 %v3413
      %3892 = vmatprep.subr.mxu0 %v3428
      %3893 = vmatpush1.msra.mxu0 %v3427
      %3894 = vmatprep.subr.mxu0 %v3442
      %3895 = vmatpush1.msra.mxu0 %v3441
      %3896 = vmatprep.subr.mxu0 %v3456
      %3897 = vmatpush1.msra.mxu0 %v3455
      %3898 = vmatprep.subr.mxu0 %v3470
      %3899 = vmatpush1.msra.mxu0 %v3469
      %3900 = vmatprep.subr.mxu0 %v3484
      %3901 = vmatpush1.msra.mxu0 %v3483
      %3902 = vmatprep.subr.mxu0 %v3498
      %3903 = vmatpush1.msra.mxu0 %v3497
      %3904 = vmatprep.subr.mxu0 %v3512
      %3905 = vmatpush1.msra.mxu0 %v3511
      %3906 = vmatprep.subr.mxu0 %v3526
      %3907 = vmatpush1.msra.mxu0 %v3525
      %3908 = vmatprep.subr.mxu0 %v3540
      %3909 = vmatpush1.msra.mxu0 %v3539
      %3910 = vmatprep.subr.mxu0 %v3554
      %3911 = vmatpush1.msra.mxu0 %v3553
      %3912 = vmatprep.subr.mxu0 %v3568
      %3913 = vmatpush1.msra.mxu0 %v3567
      %3914 = vmatprep.subr.mxu0 %v3582
      %3915 = vmatpush1.msra.mxu0 %v3581
      %3916 = vmatprep.subr.mxu0 %v3596
      %3917 = vmatpush1.msra.mxu0 %v3595
      %3918 = vmatprep.subr.mxu0 %v3610
      %3919 = vmatpush1.msra.mxu0 %v3609
      %3920 = vmatprep.subr.mxu0 %v3624
      %3921 = vmatpush1.msra.mxu0 %v3623
      %3922 = vmatprep.subr.mxu0 %v3638
      %3923 = vmatpush1.msra.mxu0 %v3637
      %3924 = vmatprep.subr.mxu0 %v3652
      %3925 = vmatpush1.msra.mxu0 %v3651
      %3926 = vmatprep.subr.mxu0 %v3666
      %3927 = vmatpush1.msra.mxu0 %v3665
      %3928 = vmatprep.subr.mxu0 %v3680
      %3929 = vmatpush1.msra.mxu0 %v3679
      %3930 = vmatprep.subr.mxu0 %v3694
      %3931 = vmatpush1.msra.mxu0 %v3693
      %3932 = vmatprep.subr.mxu0 %v3708
      %3933 = vmatpush1.msra.mxu0 %v3707
      %3934 = vmatprep.subr.mxu0 %v3722
      %3935 = vmatpush1.msra.mxu0 %v3721
      %3936 = vmatprep.subr.mxu0 %v3736
      %3937 = vmatpush1.msra.mxu0 %v3735
      %3938 = vmatprep.subr.mxu0 %v3750
      %3939 = vmatpush1.msra.mxu0 %v3749
      %3940 = vmatprep.subr.mxu0 %v3764
      %3941 = vmatpush1.msra.mxu0 %v3763
      %3942 = vmatprep.subr.mxu0 %v3778
      %3943 = vmatpush1.msra.mxu0 %v3777
      %3944 = vmatprep.subr.mxu0 %v3792
      %3945 = vmatpush1.msra.mxu0 %v3791
      %3946 = vmatprep.mubr.f32.mxu0 %v3354
      %3947 = vmatmul.mubr.f32.gmra.mrb[0].mxu0 %v3353
      %v3948 = vpop.f32.mrb[0].mxu0
      %v3949 = vadd.f32 %v3809, %v3948
      %v3950 = vpop.f32.mrb[0].mxu0
      %v3951 = vadd.f32 %v3809, %v3950
      %3952 = vdwg.mxu0
      %3953 = vmatprep.subr.mxu0 %v3360
      %3954 = vmatpush1.msra.mxu0 %v3359
      %3955 = vmatprep.subr.mxu0 %v3374
      %3956 = vmatpush1.msra.mxu0 %v3373
      %3957 = vmatprep.subr.mxu0 %v3388
      %3958 = vmatpush1.msra.mxu0 %v3387
      %3959 = vmatprep.subr.mxu0 %v3402
      %3960 = vmatpush1.msra.mxu0 %v3401
      %3961 = vmatprep.subr.mxu0 %v3416
      %3962 = vmatpush1.msra.mxu0 %v3415
      %3963 = vmatprep.subr.mxu0 %v3430
      %3964 = vmatpush1.msra.mxu0 %v3429
      %3965 = vmatprep.subr.mxu0 %v3444
      %3966 = vmatpush1.msra.mxu0 %v3443
      %3967 = vmatprep.subr.mxu0 %v3458
      %3968 = vmatpush1.msra.mxu0 %v3457
      %3969 = vmatprep.subr.mxu0 %v3472
      %3970 = vmatpush1.msra.mxu0 %v3471
      %3971 = vmatprep.subr.mxu0 %v3486
      %3972 = vmatpush1.msra.mxu0 %v3485
      %3973 = vmatprep.subr.mxu0 %v3500
      %3974 = vmatpush1.msra.mxu0 %v3499
      %3975 = vmatprep.subr.mxu0 %v3514
      %3976 = vmatpush1.msra.mxu0 %v3513
      %3977 = vmatprep.subr.mxu0 %v3528
      %3978 = vmatpush1.msra.mxu0 %v3527
      %3979 = vmatprep.subr.mxu0 %v3542
      %3980 = vmatpush1.msra.mxu0 %v3541
      %3981 = vmatprep.subr.mxu0 %v3556
      %3982 = vmatpush1.msra.mxu0 %v3555
      %3983 = vmatprep.subr.mxu0 %v3570
      %3984 = vmatpush1.msra.mxu0 %v3569
      %3985 = vmatprep.subr.mxu0 %v3584
      %3986 = vmatpush1.msra.mxu0 %v3583
      %3987 = vmatprep.subr.mxu0 %v3598
      %3988 = vmatpush1.msra.mxu0 %v3597
      %3989 = vmatprep.subr.mxu0 %v3612
      %3990 = vmatpush1.msra.mxu0 %v3611
      %3991 = vmatprep.subr.mxu0 %v3626
      %3992 = vmatpush1.msra.mxu0 %v3625
      %3993 = vmatprep.subr.mxu0 %v3640
      %3994 = vmatpush1.msra.mxu0 %v3639
      %3995 = vmatprep.subr.mxu0 %v3654
      %3996 = vmatpush1.msra.mxu0 %v3653
      %3997 = vmatprep.subr.mxu0 %v3668
      %3998 = vmatpush1.msra.mxu0 %v3667
      %3999 = vmatprep.subr.mxu0 %v3682
      %4000 = vmatpush1.msra.mxu0 %v3681
      %4001 = vmatprep.subr.mxu0 %v3696
      %4002 = vmatpush1.msra.mxu0 %v3695
      %4003 = vmatprep.subr.mxu0 %v3710
      %4004 = vmatpush1.msra.mxu0 %v3709
      %4005 = vmatprep.subr.mxu0 %v3724
      %4006 = vmatpush1.msra.mxu0 %v3723
      %4007 = vmatprep.subr.mxu0 %v3738
      %4008 = vmatpush1.msra.mxu0 %v3737
      %4009 = vmatprep.subr.mxu0 %v3752
      %4010 = vmatpush1.msra.mxu0 %v3751
      %4011 = vmatprep.subr.mxu0 %v3766
      %4012 = vmatpush1.msra.mxu0 %v3765
      %4013 = vmatprep.subr.mxu0 %v3780
      %4014 = vmatpush1.msra.mxu0 %v3779
      %4015 = vmatprep.subr.mxu0 %v3794
      %4016 = vmatpush1.msra.mxu0 %v3793
      %4017 = vmatprep.mubr.f32.mxu0 %v3354
      %4018 = vmatmul.mubr.f32.gmra.mrb[0].mxu0 %v3353
      %v4019 = vpop.f32.mrb[0].mxu0
      %v4020 = vadd.f32 %v3809, %v4019
      %v4021 = vpop.f32.mrb[0].mxu0
      %v4022 = vadd.f32 %v3809, %v4021
      %4023 = vdwg.mxu0
      %4024 = vmatprep.subr.mxu0 %v3362
      %4025 = vmatpush1.msra.mxu0 %v3361
      %4026 = vmatprep.subr.mxu0 %v3376
      %4027 = vmatpush1.msra.mxu0 %v3375
      %4028 = vmatprep.subr.mxu0 %v3390
      %4029 = vmatpush1.msra.mxu0 %v3389
      %4030 = vmatprep.subr.mxu0 %v3404
      %4031 = vmatpush1.msra.mxu0 %v3403
      %4032 = vmatprep.subr.mxu0 %v3418
      %4033 = vmatpush1.msra.mxu0 %v3417
      %4034 = vmatprep.subr.mxu0 %v3432
      %4035 = vmatpush1.msra.mxu0 %v3431
      %4036 = vmatprep.subr.mxu0 %v3446
      %4037 = vmatpush1.msra.mxu0 %v3445
      %4038 = vmatprep.subr.mxu0 %v3460
      %4039 = vmatpush1.msra.mxu0 %v3459
      %4040 = vmatprep.subr.mxu0 %v3474
      %4041 = vmatpush1.msra.mxu0 %v3473
      %4042 = vmatprep.subr.mxu0 %v3488
      %4043 = vmatpush1.msra.mxu0 %v3487
      %4044 = vmatprep.subr.mxu0 %v3502
      %4045 = vmatpush1.msra.mxu0 %v3501
      %4046 = vmatprep.subr.mxu0 %v3516
      %4047 = vmatpush1.msra.mxu0 %v3515
      %4048 = vmatprep.subr.mxu0 %v3530
      %4049 = vmatpush1.msra.mxu0 %v3529
      %4050 = vmatprep.subr.mxu0 %v3544
      %4051 = vmatpush1.msra.mxu0 %v3543
      %4052 = vmatprep.subr.mxu0 %v3558
      %4053 = vmatpush1.msra.mxu0 %v3557
      %4054 = vmatprep.subr.mxu0 %v3572
      %4055 = vmatpush1.msra.mxu0 %v3571
      %4056 = vmatprep.subr.mxu0 %v3586
      %4057 = vmatpush1.msra.mxu0 %v3585
      %4058 = vmatprep.subr.mxu0 %v3600
      %4059 = vmatpush1.msra.mxu0 %v3599
      %4060 = vmatprep.subr.mxu0 %v3614
      %4061 = vmatpush1.msra.mxu0 %v3613
      %4062 = vmatprep.subr.mxu0 %v3628
      %4063 = vmatpush1.msra.mxu0 %v3627
      %4064 = vmatprep.subr.mxu0 %v3642
      %4065 = vmatpush1.msra.mxu0 %v3641
      %4066 = vmatprep.subr.mxu0 %v3656
      %4067 = vmatpush1.msra.mxu0 %v3655
      %4068 = vmatprep.subr.mxu0 %v3670
      %4069 = vmatpush1.msra.mxu0 %v3669
      %4070 = vmatprep.subr.mxu0 %v3684
      %4071 = vmatpush1.msra.mxu0 %v3683
      %4072 = vmatprep.subr.mxu0 %v3698
      %4073 = vmatpush1.msra.mxu0 %v3697
      %4074 = vmatprep.subr.mxu0 %v3712
      %4075 = vmatpush1.msra.mxu0 %v3711
      %4076 = vmatprep.subr.mxu0 %v3726
      %4077 = vmatpush1.msra.mxu0 %v3725
      %4078 = vmatprep.subr.mxu0 %v3740
      %4079 = vmatpush1.msra.mxu0 %v3739
      %4080 = vmatprep.subr.mxu0 %v3754
      %4081 = vmatpush1.msra.mxu0 %v3753
      %4082 = vmatprep.subr.mxu0 %v3768
      %4083 = vmatpush1.msra.mxu0 %v3767
      %4084 = vmatprep.subr.mxu0 %v3782
      %4085 = vmatpush1.msra.mxu0 %v3781
      %4086 = vmatprep.subr.mxu0 %v3796
      %4087 = vmatpush1.msra.mxu0 %v3795
      %4088 = vmatprep.mubr.f32.mxu0 %v3354
      %4089 = vmatmul.mubr.f32.gmra.mrb[0].mxu0 %v3353
      %v4090 = vpop.f32.mrb[0].mxu0
      %v4091 = vadd.f32 %v3809, %v4090
      %v4092 = vpop.f32.mrb[0].mxu0
      %v4093 = vadd.f32 %v3809, %v4092
      %4094 = vdwg.mxu0
      %4095 = vmatprep.subr.mxu0 %v3364
      %4096 = vmatpush1.msra.mxu0 %v3363
      %4097 = vmatprep.subr.mxu0 %v3378
      %4098 = vmatpush1.msra.mxu0 %v3377
      %4099 = vmatprep.subr.mxu0 %v3392
      %4100 = vmatpush1.msra.mxu0 %v3391
      %4101 = vmatprep.subr.mxu0 %v3406
      %4102 = vmatpush1.msra.mxu0 %v3405
      %4103 = vmatprep.subr.mxu0 %v3420
      %4104 = vmatpush1.msra.mxu0 %v3419
      %4105 = vmatprep.subr.mxu0 %v3434
      %4106 = vmatpush1.msra.mxu0 %v3433
      %4107 = vmatprep.subr.mxu0 %v3448
      %4108 = vmatpush1.msra.mxu0 %v3447
      %4109 = vmatprep.subr.mxu0 %v3462
      %4110 = vmatpush1.msra.mxu0 %v3461
      %4111 = vmatprep.subr.mxu0 %v3476
      %4112 = vmatpush1.msra.mxu0 %v3475
      %4113 = vmatprep.subr.mxu0 %v3490
      %4114 = vmatpush1.msra.mxu0 %v3489
      %4115 = vmatprep.subr.mxu0 %v3504
      %4116 = vmatpush1.msra.mxu0 %v3503
      %4117 = vmatprep.subr.mxu0 %v3518
      %4118 = vmatpush1.msra.mxu0 %v3517
      %4119 = vmatprep.subr.mxu0 %v3532
      %4120 = vmatpush1.msra.mxu0 %v3531
      %4121 = vmatprep.subr.mxu0 %v3546
      %4122 = vmatpush1.msra.mxu0 %v3545
      %4123 = vmatprep.subr.mxu0 %v3560
      %4124 = vmatpush1.msra.mxu0 %v3559
      %4125 = vmatprep.subr.mxu0 %v3574
      %4126 = vmatpush1.msra.mxu0 %v3573
      %4127 = vmatprep.subr.mxu0 %v3588
      %4128 = vmatpush1.msra.mxu0 %v3587
      %4129 = vmatprep.subr.mxu0 %v3602
      %4130 = vmatpush1.msra.mxu0 %v3601
      %4131 = vmatprep.subr.mxu0 %v3616
      %4132 = vmatpush1.msra.mxu0 %v3615
      %4133 = vmatprep.subr.mxu0 %v3630
      %4134 = vmatpush1.msra.mxu0 %v3629
      %4135 = vmatprep.subr.mxu0 %v3644
      %4136 = vmatpush1.msra.mxu0 %v3643
      %4137 = vmatprep.subr.mxu0 %v3658
      %4138 = vmatpush1.msra.mxu0 %v3657
      %4139 = vmatprep.subr.mxu0 %v3672
      %4140 = vmatpush1.msra.mxu0 %v3671
      %4141 = vmatprep.subr.mxu0 %v3686
      %4142 = vmatpush1.msra.mxu0 %v3685
      %4143 = vmatprep.subr.mxu0 %v3700
      %4144 = vmatpush1.msra.mxu0 %v3699
      %4145 = vmatprep.subr.mxu0 %v3714
      %4146 = vmatpush1.msra.mxu0 %v3713
      %4147 = vmatprep.subr.mxu0 %v3728
      %4148 = vmatpush1.msra.mxu0 %v3727
      %4149 = vmatprep.subr.mxu0 %v3742
      %4150 = vmatpush1.msra.mxu0 %v3741
      %4151 = vmatprep.subr.mxu0 %v3756
      %4152 = vmatpush1.msra.mxu0 %v3755
      %4153 = vmatprep.subr.mxu0 %v3770
      %4154 = vmatpush1.msra.mxu0 %v3769
      %4155 = vmatprep.subr.mxu0 %v3784
      %4156 = vmatpush1.msra.mxu0 %v3783
      %4157 = vmatprep.subr.mxu0 %v3798
      %4158 = vmatpush1.msra.mxu0 %v3797
      %4159 = vmatprep.mubr.f32.mxu0 %v3354
      %4160 = vmatmul.mubr.f32.gmra.mrb[0].mxu0 %v3353
      %v4161 = vpop.f32.mrb[0].mxu0
      %v4162 = vadd.f32 %v3809, %v4161
      %v4163 = vpop.f32.mrb[0].mxu0
      %v4164 = vadd.f32 %v3809, %v4163
      %4165 = vdwg.mxu0
      %4166 = vmatprep.subr.mxu0 %v3366
      %4167 = vmatpush1.msra.mxu0 %v3365
      %4168 = vmatprep.subr.mxu0 %v3380
      %4169 = vmatpush1.msra.mxu0 %v3379
      %4170 = vmatprep.subr.mxu0 %v3394
      %4171 = vmatpush1.msra.mxu0 %v3393
      %4172 = vmatprep.subr.mxu0 %v3408
      %4173 = vmatpush1.msra.mxu0 %v3407
      %4174 = vmatprep.subr.mxu0 %v3422
      %4175 = vmatpush1.msra.mxu0 %v3421
      %4176 = vmatprep.subr.mxu0 %v3436
      %4177 = vmatpush1.msra.mxu0 %v3435
      %4178 = vmatprep.subr.mxu0 %v3450
      %4179 = vmatpush1.msra.mxu0 %v3449
      %4180 = vmatprep.subr.mxu0 %v3464
      %4181 = vmatpush1.msra.mxu0 %v3463
      %4182 = vmatprep.subr.mxu0 %v3478
      %4183 = vmatpush1.msra.mxu0 %v3477
      %4184 = vmatprep.subr.mxu0 %v3492
      %4185 = vmatpush1.msra.mxu0 %v3491
      %4186 = vmatprep.subr.mxu0 %v3506
      %4187 = vmatpush1.msra.mxu0 %v3505
      %4188 = vmatprep.subr.mxu0 %v3520
      %4189 = vmatpush1.msra.mxu0 %v3519
      %4190 = vmatprep.subr.mxu0 %v3534
      %4191 = vmatpush1.msra.mxu0 %v3533
      %4192 = vmatprep.subr.mxu0 %v3548
      %4193 = vmatpush1.msra.mxu0 %v3547
      %4194 = vmatprep.subr.mxu0 %v3562
      %4195 = vmatpush1.msra.mxu0 %v3561
      %4196 = vmatprep.subr.mxu0 %v3576
      %4197 = vmatpush1.msra.mxu0 %v3575
      %4198 = vmatprep.subr.mxu0 %v3590
      %4199 = vmatpush1.msra.mxu0 %v3589
      %4200 = vmatprep.subr.mxu0 %v3604
      %4201 = vmatpush1.msra.mxu0 %v3603
      %4202 = vmatprep.subr.mxu0 %v3618
      %4203 = vmatpush1.msra.mxu0 %v3617
      %4204 = vmatprep.subr.mxu0 %v3632
      %4205 = vmatpush1.msra.mxu0 %v3631
      %4206 = vmatprep.subr.mxu0 %v3646
      %4207 = vmatpush1.msra.mxu0 %v3645
      %4208 = vmatprep.subr.mxu0 %v3660
      %4209 = vmatpush1.msra.mxu0 %v3659
      %4210 = vmatprep.subr.mxu0 %v3674
      %4211 = vmatpush1.msra.mxu0 %v3673
      %4212 = vmatprep.subr.mxu0 %v3688
      %4213 = vmatpush1.msra.mxu0 %v3687
      %4214 = vmatprep.subr.mxu0 %v3702
      %4215 = vmatpush1.msra.mxu0 %v3701
      %4216 = vmatprep.subr.mxu0 %v3716
      %4217 = vmatpush1.msra.mxu0 %v3715
      %4218 = vmatprep.subr.mxu0 %v3730
      %4219 = vmatpush1.msra.mxu0 %v3729
      %4220 = vmatprep.subr.mxu0 %v3744
      %4221 = vmatpush1.msra.mxu0 %v3743
      %4222 = vmatprep.subr.mxu0 %v3758
      %4223 = vmatpush1.msra.mxu0 %v3757
      %4224 = vmatprep.subr.mxu0 %v3772
      %4225 = vmatpush1.msra.mxu0 %v3771
      %4226 = vmatprep.subr.mxu0 %v3786
      %4227 = vmatpush1.msra.mxu0 %v3785
      %4228 = vmatprep.subr.mxu0 %v3800
      %4229 = vmatpush1.msra.mxu0 %v3799
      %4230 = vmatprep.mubr.f32.mxu0 %v3354
      %4231 = vmatmul.mubr.f32.gmra.mrb[0].mxu0 %v3353
      %v4232 = vpop.f32.mrb[0].mxu0
      %v4233 = vadd.f32 %v3809, %v4232
      %v4234 = vpop.f32.mrb[0].mxu0
      %v4235 = vadd.f32 %v3809, %v4234
      %4236 = vdwg.mxu0
      %4237 = vmatprep.subr.mxu0 %v3368
      %4238 = vmatpush1.msra.mxu0 %v3367
      %4239 = vmatprep.subr.mxu0 %v3382
      %4240 = vmatpush1.msra.mxu0 %v3381
      %4241 = vmatprep.subr.mxu0 %v3396
      %4242 = vmatpush1.msra.mxu0 %v3395
      %4243 = vmatprep.subr.mxu0 %v3410
      %4244 = vmatpush1.msra.mxu0 %v3409
      %4245 = vmatprep.subr.mxu0 %v3424
      %4246 = vmatpush1.msra.mxu0 %v3423
      %4247 = vmatprep.subr.mxu0 %v3438
      %4248 = vmatpush1.msra.mxu0 %v3437
      %4249 = vmatprep.subr.mxu0 %v3452
      %4250 = vmatpush1.msra.mxu0 %v3451
      %4251 = vmatprep.subr.mxu0 %v3466
      %4252 = vmatpush1.msra.mxu0 %v3465
      %4253 = vmatprep.subr.mxu0 %v3480
      %4254 = vmatpush1.msra.mxu0 %v3479
      %4255 = vmatprep.subr.mxu0 %v3494
      %4256 = vmatpush1.msra.mxu0 %v3493
      %4257 = vmatprep.subr.mxu0 %v3508
      %4258 = vmatpush1.msra.mxu0 %v3507
      %4259 = vmatprep.subr.mxu0 %v3522
      %4260 = vmatpush1.msra.mxu0 %v3521
      %4261 = vmatprep.subr.mxu0 %v3536
      %4262 = vmatpush1.msra.mxu0 %v3535
      %4263 = vmatprep.subr.mxu0 %v3550
      %4264 = vmatpush1.msra.mxu0 %v3549
      %4265 = vmatprep.subr.mxu0 %v3564
      %4266 = vmatpush1.msra.mxu0 %v3563
      %4267 = vmatprep.subr.mxu0 %v3578
      %4268 = vmatpush1.msra.mxu0 %v3577
      %4269 = vmatprep.subr.mxu0 %v3592
      %4270 = vmatpush1.msra.mxu0 %v3591
      %4271 = vmatprep.subr.mxu0 %v3606
      %4272 = vmatpush1.msra.mxu0 %v3605
      %4273 = vmatprep.subr.mxu0 %v3620
      %4274 = vmatpush1.msra.mxu0 %v3619
      %4275 = vmatprep.subr.mxu0 %v3634
      %4276 = vmatpush1.msra.mxu0 %v3633
      %4277 = vmatprep.subr.mxu0 %v3648
      %4278 = vmatpush1.msra.mxu0 %v3647
      %4279 = vmatprep.subr.mxu0 %v3662
      %4280 = vmatpush1.msra.mxu0 %v3661
      %4281 = vmatprep.subr.mxu0 %v3676
      %4282 = vmatpush1.msra.mxu0 %v3675
      %4283 = vmatprep.subr.mxu0 %v3690
      %4284 = vmatpush1.msra.mxu0 %v3689
      %4285 = vmatprep.subr.mxu0 %v3704
      %4286 = vmatpush1.msra.mxu0 %v3703
      %4287 = vmatprep.subr.mxu0 %v3718
      %4288 = vmatpush1.msra.mxu0 %v3717
      %4289 = vmatprep.subr.mxu0 %v3732
      %4290 = vmatpush1.msra.mxu0 %v3731
      %4291 = vmatprep.subr.mxu0 %v3746
      %4292 = vmatpush1.msra.mxu0 %v3745
      %4293 = vmatprep.subr.mxu0 %v3760
      %4294 = vmatpush1.msra.mxu0 %v3759
      %4295 = vmatprep.subr.mxu0 %v3774
      %4296 = vmatpush1.msra.mxu0 %v3773
      %4297 = vmatprep.subr.mxu0 %v3788
      %4298 = vmatpush1.msra.mxu0 %v3787
      %4299 = vmatprep.subr.mxu0 %v3802
      %4300 = vmatpush1.msra.mxu0 %v3801
      %4301 = vmatprep.mubr.f32.mxu0 %v3354
      %4302 = vmatmul.mubr.f32.gmra.mrb[0].mxu0 %v3353
      %v4303 = vpop.f32.mrb[0].mxu0
      %v4304 = vadd.f32 %v3809, %v4303
      %v4305 = vpop.f32.mrb[0].mxu0
      %v4306 = vadd.f32 %v3809, %v4305
      %4307 = vdwg.mxu0
      %v4310 = vlaneseq
      %v4311 = vshrl.u32 %v4310, 7
      %v4312 = vsub.s32 0, %v4311
      %v4313 = vrot.slane %v3804, %v4312
      %v4314 = vlaneseq
      %v4315 = vshrl.u32 %v4314, 7
      %v4316 = vsub.s32 1, %v4315
      %v4317 = vrot.slane %v3804, %v4316
      %v4318 = vlaneseq
      %v4319 = vshrl.u32 %v4318, 7
      %v4320 = vsub.s32 2, %v4319
      %v4321 = vrot.slane %v3804, %v4320
      %v4322 = vlaneseq
      %v4323 = vshrl.u32 %v4322, 7
      %v4324 = vsub.s32 3, %v4323
      %v4325 = vrot.slane %v3804, %v4324
      %v4326 = vlaneseq
      %v4327 = vshrl.u32 %v4326, 7
      %v4328 = vsub.s32 4, %v4327
      %v4329 = vrot.slane %v3804, %v4328
      %v4330 = vlaneseq
      %v4331 = vshrl.u32 %v4330, 7
      %v4332 = vsub.s32 5, %v4331
      %v4333 = vrot.slane %v3804, %v4332
      %v4334 = vlaneseq
      %v4335 = vshrl.u32 %v4334, 7
      %v4336 = vsub.s32 6, %v4335
      %v4337 = vrot.slane %v3804, %v4336
      %v4338 = vlaneseq
      %v4339 = vshrl.u32 %v4338, 7
      %v4340 = vsub.s32 7, %v4339
      %v4341 = vrot.slane %v3804, %v4340
      %v4342 = vlaneseq
      %v4343 = vshrl.u32 %v4342, 7
      %v4344 = vsub.s32 0, %v4343
      %v4345 = vrot.slane %v3805, %v4344
      %v4346 = vlaneseq
      %v4347 = vshrl.u32 %v4346, 7
      %v4348 = vsub.s32 1, %v4347
      %v4349 = vrot.slane %v3805, %v4348
      %v4350 = vlaneseq
      %v4351 = vshrl.u32 %v4350, 7
      %v4352 = vsub.s32 2, %v4351
      %v4353 = vrot.slane %v3805, %v4352
      %v4354 = vlaneseq
      %v4355 = vshrl.u32 %v4354, 7
      %v4356 = vsub.s32 3, %v4355
      %v4357 = vrot.slane %v3805, %v4356
      %v4358 = vlaneseq
      %v4359 = vshrl.u32 %v4358, 7
      %v4360 = vsub.s32 4, %v4359
      %v4361 = vrot.slane %v3805, %v4360
      %v4362 = vlaneseq
      %v4363 = vshrl.u32 %v4362, 7
      %v4364 = vsub.s32 5, %v4363
      %v4365 = vrot.slane %v3805, %v4364
      %v4380 = vmul.f32 %v3878, %v4313
      %v4381 = vmul.f32 %v3880, %v4317
      %v4382 = vmul.f32 %v3949, %v4321
      %v4383 = vmul.f32 %v3951, %v4325
      %v4384 = vmul.f32 %v4020, %v4329
      %v4385 = vmul.f32 %v4022, %v4333
      %v4386 = vmul.f32 %v4091, %v4337
      %v4387 = vmul.f32 %v4093, %v4341
      %v4388 = vmul.f32 %v4162, %v4345
      %v4389 = vmul.f32 %v4164, %v4349
      %v4390 = vmul.f32 %v4233, %v4353
      %v4391 = vmul.f32 %v4235, %v4357
      %v4392 = vmul.f32 %v4304, %v4361
      %v4393 = vmul.f32 %v4306, %v4365
      %v4394 = vadd.f32 %v4380, %v4381
      %v4395 = vadd.f32 %v4394, %v4382
      %v4396 = vadd.f32 %v4395, %v4383
      %v4397 = vadd.f32 %v4396, %v4384
      %v4398 = vadd.f32 %v4397, %v4385
      %v4399 = vadd.f32 %v4398, %v4386
      %v4400 = vadd.f32 %v4399, %v4387
      %v4401 = vadd.f32 %v4400, %v4388
      %v4402 = vadd.f32 %v4401, %v4389
      %v4403 = vadd.f32 %v4402, %v4390
      %v4404 = vadd.f32 %v4403, %v4391
      %v4405 = vadd.f32 %v4404, %v4392
      %v4406 = vadd.f32 %v4405, %v4393
      %4407 = vadd.xlane.f32.xlu0 %v4406
      %v4408 = vpop.xlane.xlu0 %4407
      %v4409 = vmul.f32 %v3878, %v3878
      %v4410 = vmul.f32 %v3880, %v3880
      %v4411 = vmul.f32 %v3949, %v3949
      %v4412 = vmul.f32 %v3951, %v3951
      %v4413 = vmul.f32 %v4020, %v4020
      %v4414 = vmul.f32 %v4022, %v4022
      %v4415 = vmul.f32 %v4091, %v4091
      %v4416 = vmul.f32 %v4093, %v4093
      %v4417 = vmul.f32 %v4162, %v4162
      %v4418 = vmul.f32 %v4164, %v4164
      %v4419 = vmul.f32 %v4233, %v4233
      %v4420 = vmul.f32 %v4235, %v4235
      %v4421 = vmul.f32 %v4304, %v4304
      %v4422 = vmul.f32 %v4306, %v4306
      %v4423 = vmul.f32 %v4409, %v4313
      %v4424 = vmul.f32 %v4410, %v4317
      %v4425 = vmul.f32 %v4411, %v4321
      %v4426 = vmul.f32 %v4412, %v4325
      %v4427 = vmul.f32 %v4413, %v4329
      %v4428 = vmul.f32 %v4414, %v4333
      %v4429 = vmul.f32 %v4415, %v4337
      %v4430 = vmul.f32 %v4416, %v4341
      %v4431 = vmul.f32 %v4417, %v4345
      %v4432 = vmul.f32 %v4418, %v4349
      %v4433 = vmul.f32 %v4419, %v4353
      %v4434 = vmul.f32 %v4420, %v4357
      %v4435 = vmul.f32 %v4421, %v4361
      %v4436 = vmul.f32 %v4422, %v4365
      %v4437 = vadd.f32 %v4423, %v4424
      %v4438 = vadd.f32 %v4437, %v4425
      %v4439 = vadd.f32 %v4438, %v4426
      %v4440 = vadd.f32 %v4439, %v4427
      %v4441 = vadd.f32 %v4440, %v4428
      %v4442 = vadd.f32 %v4441, %v4429
      %v4443 = vadd.f32 %v4442, %v4430
      %v4444 = vadd.f32 %v4443, %v4431
      %v4445 = vadd.f32 %v4444, %v4432
      %v4446 = vadd.f32 %v4445, %v4433
      %v4447 = vadd.f32 %v4446, %v4434
      %v4448 = vadd.f32 %v4447, %v4435
      %v4449 = vadd.f32 %v4448, %v4436
      %4450 = vadd.xlane.f32.xlu0 %v4449
      %v4451 = vpop.xlane.xlu0 %4450
      %v4452 = vmul.f32 %v4408, 0.0009765625
      %v4453 = vmul.f32 %v4451, 0.0009765625
      %v4454 = vmul.f32 %v4452, %v4452
      %v4455 = vsub.f32 %v4453, %v4454
      %v4456 = vsub.f32 %v3878, %v4452
      %v4457 = vsub.f32 %v3880, %v4452
      %v4458 = vsub.f32 %v3949, %v4452
      %v4459 = vsub.f32 %v3951, %v4452
      %v4460 = vsub.f32 %v4020, %v4452
      %v4461 = vsub.f32 %v4022, %v4452
      %v4462 = vsub.f32 %v4091, %v4452
      %v4463 = vsub.f32 %v4093, %v4452
      %v4464 = vsub.f32 %v4162, %v4452
      %v4465 = vsub.f32 %v4164, %v4452
      %v4466 = vsub.f32 %v4233, %v4452
      %v4467 = vsub.f32 %v4235, %v4452
      %v4468 = vsub.f32 %v4304, %v4452
      %v4469 = vsub.f32 %v4306, %v4452
      %v4470 = vadd.f32 %v4455, 1e-05
      %v4471 = vrsqrt.pop %v4470
      %v4472 = vmul.f32 %v4456, %v4471
      %v4473 = vmul.f32 %v4457, %v4471
      %v4474 = vmul.f32 %v4458, %v4471
      %v4475 = vmul.f32 %v4459, %v4471
      %v4476 = vmul.f32 %v4460, %v4471
      %v4477 = vmul.f32 %v4461, %v4471
      %v4478 = vmul.f32 %v4462, %v4471
      %v4479 = vmul.f32 %v4463, %v4471
      %v4480 = vmul.f32 %v4464, %v4471
      %v4481 = vmul.f32 %v4465, %v4471
      %v4482 = vmul.f32 %v4466, %v4471
      %v4483 = vmul.f32 %v4467, %v4471
      %v4484 = vmul.f32 %v4468, %v4471
      %v4485 = vmul.f32 %v4469, %v4471
      %4486 = vset.pattern.permute.xlu0 1
      %4487 = vperm.xlu0 %4486, %v3803
      %v4488 = vpop.permute.xlu0 %4487
      %v4490 = vmul.f32 %v4472, %v4488
      %v4491 = vmul.f32 %v4473, %v4488
      %v4492 = vmul.f32 %v4474, %v4488
      %v4493 = vmul.f32 %v4475, %v4488
      %v4494 = vmul.f32 %v4476, %v4488
      %v4495 = vmul.f32 %v4477, %v4488
      %v4496 = vmul.f32 %v4478, %v4488
      %v4497 = vmul.f32 %v4479, %v4488
      %v4498 = vmul.f32 %v4480, %v4488
      %v4499 = vmul.f32 %v4481, %v4488
      %v4500 = vmul.f32 %v4482, %v4488
      %v4501 = vmul.f32 %v4483, %v4488
      %v4502 = vmul.f32 %v4484, %v4488
      %v4503 = vmul.f32 %v4485, %v4488
      %4504 = vset.pattern.permute.xlu0 2
      %4505 = vperm.xlu0 %4504, %v3803
      %v4506 = vpop.permute.xlu0 %4505
      %v4508 = vadd.f32 %v4490, %v4506
      %v4509 = vadd.f32 %v4491, %v4506
      %v4510 = vadd.f32 %v4492, %v4506
      %v4511 = vadd.f32 %v4493, %v4506
      %v4512 = vadd.f32 %v4494, %v4506
      %v4513 = vadd.f32 %v4495, %v4506
      %v4514 = vadd.f32 %v4496, %v4506
      %v4515 = vadd.f32 %v4497, %v4506
      %v4516 = vadd.f32 %v4498, %v4506
      %v4517 = vadd.f32 %v4499, %v4506
      %v4518 = vadd.f32 %v4500, %v4506
      %v4519 = vadd.f32 %v4501, %v4506
      %v4520 = vadd.f32 %v4502, %v4506
      %v4521 = vadd.f32 %v4503, %v4506
      %v4522 = vmax.f32 %v4508, 0.0
      %v4523 = vmax.f32 %v4509, 0.0
      %v4524 = vmax.f32 %v4510, 0.0
      %v4525 = vmax.f32 %v4511, 0.0
      %v4526 = vmax.f32 %v4512, 0.0
      %v4527 = vmax.f32 %v4513, 0.0
      %v4528 = vmax.f32 %v4514, 0.0
      %v4529 = vmax.f32 %v4515, 0.0
      %v4530 = vmax.f32 %v4516, 0.0
      %v4531 = vmax.f32 %v4517, 0.0
      %v4532 = vmax.f32 %v4518, 0.0
      %v4533 = vmax.f32 %v4519, 0.0
      %v4534 = vmax.f32 %v4520, 0.0
      %v4535 = vmax.f32 %v4521, 0.0
      %4536 = vst [vmem:[%s4] sm:$0xff] %v4522
      %4537 = vst [vmem:[%s4 + $0x8] sm:$0xff] %v4523
      %4538 = vst [vmem:[%s4 + $0x10] sm:$0xff] %v4524
      %4539 = vst [vmem:[%s4 + $0x18] sm:$0xff] %v4525
      %4540 = vst [vmem:[%s4 + $0x20] sm:$0xff] %v4526
      %4541 = vst [vmem:[%s4 + $0x28] sm:$0xff] %v4527
      %4542 = vst [vmem:[%s4 + $0x30] sm:$0xff] %v4528
      %4543 = vst [vmem:[%s4 + $0x38] sm:$0xff] %v4529
      %4544 = vst [vmem:[%s4 + $0x40] sm:$0xff] %v4530
      %4545 = vst [vmem:[%s4 + $0x48] sm:$0xff] %v4531
      %4546 = vst [vmem:[%s4 + $0x50] sm:$0xff] %v4532
      %4547 = vst [vmem:[%s4 + $0x58] sm:$0xff] %v4533
      %4548 = vst [vmem:[%s4 + $0x60] sm:$0xff] %v4534
      %4549 = vst [vmem:[%s4 + $0x68] sm:$0xff] %v4535
      %p4550 = scmp.ne.s32.totalorder %s15, 2
      // Predicated region
      $region41: #{recurrent_block_forward.1} parent=35 // pred_check
        %p4551 = pneg %p4550
      $region42: #{recurrent_block_forward.1} parent=35 // pred_check_branch
        %4553 = sbr.rel (%p4551) target = $region44
      $region43: #{recurrent_block_forward.1} parent=35 // pred_region
        %v4554 = vld [vmem:[%s0 + $0x8] sm:$0xff]
        %v4555 = vld [vmem:[%s0 + $0x10] sm:$0xff]
        %v4556 = vld [vmem:[%s0 + $0x18] sm:$0xff]
        %v4557 = vld [vmem:[%s0 + $0x20] sm:$0xff]
        %v4558 = vld [vmem:[%s0 + $0x28] sm:$0xff]
        %v4559 = vld [vmem:[%s0 + $0x30] sm:$0xff]
        %v4560 = vld [vmem:[%s0 + $0x38] sm:$0xff]
        %v4561 = vld [vmem:[%s0 + $0x40] sm:$0xff]
        %v4562 = vld [vmem:[%s0 + $0x48] sm:$0xff]
        %v4563 = vld [vmem:[%s0 + $0x50] sm:$0xff]
        %v4564 = vld [vmem:[%s0 + $0x58] sm:$0xff]
        %v4565 = vld [vmem:[%s0 + $0x60] sm:$0xff]
        %v4566 = vld [vmem:[%s0 + $0x68] sm:$0xff]
        %v4567 = vld [vmem:[%s0 + $0x70] sm:$0xff]
        %v4568 = vadd.f32 %v4554, %v4522
        %v4569 = vadd.f32 %v4555, %v4523
        %v4570 = vadd.f32 %v4556, %v4524
        %v4571 = vadd.f32 %v4557, %v4525
        %v4572 = vadd.f32 %v4558, %v4526
        %v4573 = vadd.f32 %v4559, %v4527
        %v4574 = vadd.f32 %v4560, %v4528
        %v4575 = vadd.f32 %v4561, %v4529
        %v4576 = vadd.f32 %v4562, %v4530
        %v4577 = vadd.f32 %v4563, %v4531
        %v4578 = vadd.f32 %v4564, %v4532
        %v4579 = vadd.f32 %v4565, %v4533
        %v4580 = vadd.f32 %v4566, %v4534
        %v4581 = vadd.f32 %v4567, %v4535
        %v4582 = vmul.f32 %v4313, %v4568
        %v4583 = vmul.f32 %v4317, %v4569
        %v4584 = vmul.f32 %v4321, %v4570
        %v4585 = vmul.f32 %v4325, %v4571
        %v4586 = vmul.f32 %v4329, %v4572
        %v4587 = vmul.f32 %v4333, %v4573
        %v4588 = vmul.f32 %v4337, %v4574
        %v4589 = vmul.f32 %v4341, %v4575
        %v4590 = vmul.f32 %v4345, %v4576
        %v4591 = vmul.f32 %v4349, %v4577
        %v4592 = vmul.f32 %v4353, %v4578
        %v4593 = vmul.f32 %v4357, %v4579
        %v4594 = vmul.f32 %v4361, %v4580
        %v4595 = vmul.f32 %v4365, %v4581
        %4596 = vst [vmem:[#allocation2 + $0x8] sm:$0xff] %v4582
        %4597 = vst [vmem:[#allocation2 + $0x10] sm:$0xff] %v4583
        %4598 = vst [vmem:[#allocation2 + $0x18] sm:$0xff] %v4584
        %4599 = vst [vmem:[#allocation2 + $0x20] sm:$0xff] %v4585
        %4600 = vst [vmem:[#allocation2 + $0x28] sm:$0xff] %v4586
        %4601 = vst [vmem:[#allocation2 + $0x30] sm:$0xff] %v4587
        %4602 = vst [vmem:[#allocation2 + $0x38] sm:$0xff] %v4588
        %4603 = vst [vmem:[#allocation2 + $0x40] sm:$0xff] %v4589
        %4604 = vst [vmem:[#allocation2 + $0x48] sm:$0xff] %v4590
        %4605 = vst [vmem:[#allocation2 + $0x50] sm:$0xff] %v4591
        %4606 = vst [vmem:[#allocation2 + $0x58] sm:$0xff] %v4592
        %4607 = vst [vmem:[#allocation2 + $0x60] sm:$0xff] %v4593
        %4608 = vst [vmem:[#allocation2 + $0x68] sm:$0xff] %v4594
        %4609 = vst [vmem:[#allocation2 + $0x70] sm:$0xff] %v4595
      $region44: #{recurrent_block_forward.1} parent=35 // pred_fallthru
        _
      // Predicated region
      $region45: #{recurrent_block_forward.1} parent=35 // pred_check
        %p4610 = pneg %p112
      $region46: #{recurrent_block_forward.1} parent=35 // pred_check_branch
        %4612 = sbr.rel (%p4610) target = $region48
      $region47: #{recurrent_block_forward.1} parent=35 // pred_region
        _
      $region48: #{recurrent_block_forward.1} parent=35 // pred_fallthru
        _
      // Predicated region
      $region49: #{recurrent_block_forward.1} parent=35 // pred_check
        %p4613 = pneg %p112
      $region50: #{recurrent_block_forward.1} parent=35 // pred_check_branch
        %4615 = sbr.rel (%p4613) target = $region52
      $region51: #{recurrent_block_forward.1} parent=35 // pred_region
        _
      $region52: #{recurrent_block_forward.1} parent=35 // pred_fallthru
        _
    $region36: #{recurrent_block_forward.1} parent=5 // pred_fallthru
      _
    %p4616 = scmp.le.s32.totalorder 2, %s10
    // Predicated region
    $region53: #{recurrent_block_forward.1} parent=5 // pred_check
      %p4617 = pneg %p4616
    $region54: #{recurrent_block_forward.1} parent=5 // pred_check_branch
      %4619 = sbr.rel (%p4617) target = $region56
    $region55: #{recurrent_block_forward.1} parent=5 // pred_region
      %s4620 = ssub.s32 %s10, 2
    $region56: #{recurrent_block_forward.1} parent=5 // pred_fallthru
      _
  $region6: #{recurrent_block_forward.1} parent=0 // loop_footer
    %s14 = sadd.s32 1, %s10
  $region7: #{recurrent_block_forward.1} parent=0 // loop_footer_branch
    %9 = sbr.rel target = $region3
  $region8: #{recurrent_block_forward.1} parent=0 // loop_exit
    _

</llo_original>
